<compile_context>
chip_gen: v7x
topology: tpu7x:2x2x1
jax: 0.10.0
libtpu: 0.0.40
codegen_flags: <defaults>
</compile_context>

<pallas_src>
import functools

import jax
import jax.numpy as jnp
from jax.experimental import pallas as pl
from jax.experimental.pallas import tpu as pltpu


def _round_up(x, m):
    return ((x + m - 1) // m) * m


def _lstm_kernel(x_ref, wih_ref, whh_ref, b_ref, h0_ref, c0_ref,
                 wfc_ref, bfc_ref,
                 out_ref, hN_ref, cN_ref,
                 xw_scr, hs_scr, *, seq_len, batch_pad):
    """Single invocation: prologue matmul, unrolled recurrence, epilogue matmul.

    x_ref   : (T*Bp, H)  bf16   time-major embedded inputs (batch padded)
    wih_ref : (H, 4H)    bf16   W_ih^T
    whh_ref : (H, 4H)    bf16   W_hh^T
    b_ref   : (1, 4H)    f32    b_ih + b_hh  (gate order i, f, g, o)
    h0/c0   : (Bp, H)    f32    initial state
    wfc_ref : (H, Op)    bf16   fc head weight (lane-padded)
    bfc_ref : (1, Op)    f32    fc head bias   (lane-padded)
    out_ref : (T*Bp, Op) f32    per-step logits (lane-dense store)
    hN/cN   : (Bp, H)    f32    final state
    xw_scr  : (T*Bp, 4H) f32    hoisted input projection
    hs_scr  : (T*Bp, H)  f32    per-step hidden states
    """
    T, Bp = seq_len, batch_pad
    H = h0_ref.shape[1]

    # ---- Prologue (off the serial chain): x @ W_ih + b for all timesteps.
    xw_scr[...] = (
        jnp.dot(x_ref[...], wih_ref[...], preferred_element_type=jnp.float32)
        + b_ref[...])

    # ---- Serial recurrence: only h_prev @ W_hh sits on the dependency chain.
    def step(t, carry):
        h_prev, c_prev = carry
        row = t * Bp
        gates = xw_scr[pl.ds(row, Bp), :] + jnp.dot(
            h_prev.astype(whh_ref.dtype), whh_ref[...],
            preferred_element_type=jnp.float32)           # (Bp, 4H) f32

        if_g = jax.nn.sigmoid(gates[:, :2 * H])           # one wide EUP push (i|f)
        i_g = if_g[:, :H]
        f_g = if_g[:, H:]
        g_g = jnp.tanh(gates[:, 2 * H:3 * H])
        o_g = jax.nn.sigmoid(gates[:, 3 * H:])

        c_new = f_g * c_prev + i_g * g_g                  # f32 cell update
        h_new = o_g * jnp.tanh(c_new)
        hs_scr[pl.ds(row, Bp), :] = h_new
        return h_new, c_new

    h_fin, c_fin = jax.lax.fori_loop(
        0, T, step, (h0_ref[...], c0_ref[...]), unroll=True)

    # ---- Epilogue: fc head as one lane-dense (T*Bp, H) @ (H, Op) matmul.
    logits = (
        jnp.dot(hs_scr[...].astype(wfc_ref.dtype), wfc_ref[...],
                preferred_element_type=jnp.float32)
        + bfc_ref[...])
    out_ref[...] = logits.astype(out_ref.dtype)
    hN_ref[...] = h_fin.astype(hN_ref.dtype)
    cN_ref[...] = c_fin.astype(cN_ref.dtype)


@jax.jit
def lstm_forward(params, input_seq, hidden_in, mem_in):
    """Mirrors LSTM.forward(input_seq, hidden_in, mem_in).

    input_seq : (B, T) int32 token ids
    hidden_in : (1, B, H) float32
    mem_in    : (1, B, H) float32
    returns (logits (B, T, O), hidden_out (1, B, H), mem_out (1, B, H))
    """
    emb_w = params["embedding"]          # (num_emb, H)
    w_ih = params["w_ih"]                # (H, 4H)
    w_hh = params["w_hh"]                # (H, 4H)
    b_g = params["b_gates"]              # (1, 4H)
    w_fc = params["w_fc"]                # (H, O)
    b_fc = params["b_fc"]                # (1, O)

    B, T = input_seq.shape
    H = emb_w.shape[1]
    O = w_fc.shape[1]
    Bp = _round_up(B, 8)                 # sublane-pad batch
    Op = _round_up(O, 128)               # lane-pad head output

    # Embedding gather (glue: stays in XLA) -> time-major, batch-padded, bf16.
    x_emb = jnp.take(emb_w, input_seq, axis=0)            # (B, T, H)
    x_tm = jnp.transpose(x_emb, (1, 0, 2))                # (T, B, H)
    x_tm = jnp.pad(x_tm, ((0, 0), (0, Bp - B), (0, 0)))   # (T, Bp, H)
    x_flat = x_tm.reshape(T * Bp, H).astype(jnp.bfloat16)

    h0 = jnp.pad(hidden_in[0], ((0, Bp - B), (0, 0)))     # (Bp, H) f32
    c0 = jnp.pad(mem_in[0], ((0, Bp - B), (0, 0)))        # (Bp, H) f32

    w_ih_b = w_ih.astype(jnp.bfloat16)
    w_hh_b = w_hh.astype(jnp.bfloat16)
    w_fc_p = jnp.pad(w_fc, ((0, 0), (0, Op - O))).astype(jnp.bfloat16)
    b_fc_p = jnp.pad(b_fc, ((0, 0), (0, Op - O)))

    kernel = functools.partial(_lstm_kernel, seq_len=T, batch_pad=Bp)
    vmem = pltpu.MemorySpace.VMEM

    logits_flat, h_n, c_n = pl.pallas_call(
        kernel,
        out_shape=(
            jax.ShapeDtypeStruct((T * Bp, Op), jnp.float32),  # logits
            jax.ShapeDtypeStruct((Bp, H), jnp.float32),       # final hidden
            jax.ShapeDtypeStruct((Bp, H), jnp.float32),       # final cell
        ),
        in_specs=[pl.BlockSpec(memory_space=vmem)] * 8,
        out_specs=(
            pl.BlockSpec(memory_space=vmem),
            pl.BlockSpec(memory_space=vmem),
            pl.BlockSpec(memory_space=vmem),
        ),
        scratch_shapes=[
            pltpu.VMEM((T * Bp, 4 * H), jnp.float32),   # hoisted x@W_ih + b
            pltpu.VMEM((T * Bp, H), jnp.float32),       # per-step hidden states
        ],
    )(x_flat, w_ih_b, w_hh_b, b_g, h0, c0, w_fc_p, b_fc_p)

    logits = logits_flat.reshape(T, Bp, Op)[:, :B, :O]    # un-pad
    logits = jnp.transpose(logits, (1, 0, 2))             # (B, T, O) batch-first
    return logits, h_n[:B][None], c_n[:B][None]


def init_params(key, num_emb, output_size, hidden_size):
    ks = jax.random.split(key, 7)
    scale = 1.0 / jnp.sqrt(hidden_size)
    # PyTorch stores weight_ih_l0 (4H, H), weight_hh_l0 (4H, H); kernel uses
    # their transposes. Gate order i, f, g, o is preserved.
    return {
        "embedding": jax.random.normal(ks[0], (num_emb, hidden_size), jnp.float32),
        "w_ih": jax.random.uniform(ks[1], (hidden_size, 4 * hidden_size),
                                   jnp.float32, -scale, scale),
        "w_hh": jax.random.uniform(ks[2], (hidden_size, 4 * hidden_size),
                                   jnp.float32, -scale, scale),
        "b_gates": (jax.random.uniform(ks[3], (1, 4 * hidden_size),
                                       jnp.float32, -scale, scale)
                    + jax.random.uniform(ks[4], (1, 4 * hidden_size),
                                         jnp.float32, -scale, scale)),
        "w_fc": jax.random.uniform(ks[5], (hidden_size, output_size),
                                   jnp.float32, -scale, scale),
        "b_fc": jax.random.uniform(ks[6], (1, output_size),
                                   jnp.float32, -scale, scale),
    }


def _reference_forward(params, input_seq, hidden_in, mem_in,
                       matmul_dtype=jnp.float32):
    """Pure-JAX reference. matmul_dtype=bfloat16 mirrors the kernel numerics
    (bf16 matmul operands, f32 accumulation); float32 is the exact PyTorch math."""
    emb = jnp.take(params["embedding"], input_seq, axis=0)  # (B, T, H)
    H = emb.shape[-1]
    w_ih = params["w_ih"].astype(matmul_dtype)
    w_hh = params["w_hh"].astype(matmul_dtype)
    w_fc = params["w_fc"].astype(matmul_dtype)
    h, c = hidden_in[0], mem_in[0]

    def step(carry, x_t):
        h, c = carry
        xw = jnp.dot(x_t.astype(matmul_dtype), w_ih,
                     preferred_element_type=jnp.float32) + params["b_gates"]
        gates = xw + jnp.dot(h.astype(matmul_dtype), w_hh,
                             preferred_element_type=jnp.float32)
        i = jax.nn.sigmoid(gates[:, :H])
        f = jax.nn.sigmoid(gates[:, H:2 * H])
        g = jnp.tanh(gates[:, 2 * H:3 * H])
        o = jax.nn.sigmoid(gates[:, 3 * H:])
        c = f * c + i * g
        h = o * jnp.tanh(c)
        return (h, c), h

    (h, c), hs = jax.lax.scan(step, (h, c), jnp.transpose(emb, (1, 0, 2)))
    hs = jnp.transpose(hs, (1, 0, 2))                        # (B, T, H)
    logits = jnp.dot(hs.astype(matmul_dtype), w_fc,
                     preferred_element_type=jnp.float32) + params["b_fc"]
    return logits, h[None], c[None]


if __name__ == "__main__":
    NUM_EMB, OUTPUT_SIZE, HIDDEN = 50, 16, 128
    B, T = 2, 8

    key = jax.random.PRNGKey(0)
    kp, kt, kh, kc = jax.random.split(key, 4)

    params = init_params(kp, NUM_EMB, OUTPUT_SIZE, HIDDEN)
    input_seq = jax.random.randint(kt, (B, T), 0, NUM_EMB, dtype=jnp.int32)
    hidden_in = jax.random.normal(kh, (1, B, HIDDEN), jnp.float32)
    mem_in = jax.random.normal(kc, (1, B, HIDDEN), jnp.float32)

    logits, h_out, c_out = lstm_forward(params, input_seq, hidden_in, mem_in)
    jax.block_until_ready((logits, h_out, c_out))

    assert logits.shape == (B, T, OUTPUT_SIZE)
    assert h_out.shape == (1, B, HIDDEN) and c_out.shape == (1, B, HIDDEN)

    # Tight check vs a reference with matched numerics (bf16 matmul operands).
    ref_l, ref_h, ref_c = _reference_forward(params, input_seq, hidden_in,
                                             mem_in, matmul_dtype=jnp.bfloat16)
    assert jnp.allclose(logits, ref_l, atol=5e-3, rtol=5e-3)
    assert jnp.allclose(h_out, ref_h, atol=5e-3, rtol=5e-3)
    assert jnp.allclose(c_out, ref_c, atol=5e-3, rtol=5e-3)

    # Looser check vs the exact f32 PyTorch math (bf16 weight rounding only).
    f32_l, f32_h, f32_c = _reference_forward(params, input_seq, hidden_in, mem_in)
    assert jnp.allclose(logits, f32_l, atol=3e-2, rtol=3e-2)
    assert jnp.allclose(h_out, f32_h, atol=3e-2, rtol=3e-2)
    assert jnp.allclose(c_out, f32_c, atol=3e-2, rtol=3e-2)

    print("KERNEL_OK")
</pallas_src>

<mosaic_0001>
module attributes {stable_mosaic.version = 11 : i64} {
  func.func @_lstm_kernel(%arg0: memref<64x128xbf16, #tpu.memory_space<vmem>>, %arg1: memref<128x512xbf16, #tpu.memory_space<vmem>>, %arg2: memref<128x512xbf16, #tpu.memory_space<vmem>>, %arg3: memref<1x512xf32, #tpu.memory_space<vmem>>, %arg4: memref<8x128xf32, #tpu.memory_space<vmem>>, %arg5: memref<8x128xf32, #tpu.memory_space<vmem>>, %arg6: memref<128x128xbf16, #tpu.memory_space<vmem>>, %arg7: memref<1x128xf32, #tpu.memory_space<vmem>>, %arg8: memref<64x128xf32, #tpu.memory_space<vmem>>, %arg9: memref<8x128xf32, #tpu.memory_space<vmem>>, %arg10: memref<8x128xf32, #tpu.memory_space<vmem>>, %arg11: memref<64x512xf32, #tpu.memory_space<vmem>>, %arg12: memref<64x128xf32, #tpu.memory_space<vmem>>) attributes {dimension_semantics = [], scalar_prefetch = 0 : i64, scratch_operands = 2 : i64, tpu.core_type = #tpu.core_type<tc>} {
    %c0 = arith.constant 0 : index
    %c0_0 = arith.constant 0 : index
    %0 = vector.load %arg0[%c0, %c0_0] : memref<64x128xbf16, #tpu.memory_space<vmem>>, vector<64x128xbf16>
    %c0_1 = arith.constant 0 : index
    %c0_2 = arith.constant 0 : index
    %1 = vector.load %arg1[%c0_1, %c0_2] : memref<128x512xbf16, #tpu.memory_space<vmem>>, vector<128x512xbf16>
    %cst = arith.constant dense<0.000000e+00> : vector<64x512xf32>
    %2 = tpu.matmul %0, %1, %cst {dimension_numbers = #tpu.dot_dimension_numbers<[1], [0], [0], [1], [0, 0, 1, 1], [], []>} : vector<64x128xbf16>, vector<128x512xbf16>, vector<64x512xf32> -> vector<64x512xf32>
    %c0_3 = arith.constant 0 : index
    %c0_4 = arith.constant 0 : index
    %3 = vector.load %arg3[%c0_3, %c0_4] : memref<1x512xf32, #tpu.memory_space<vmem>>, vector<1x512xf32>
    %4 = vector.broadcast %3 : vector<1x512xf32> to vector<64x512xf32>
    %5 = arith.addf %2, %4 : vector<64x512xf32>
    %c0_5 = arith.constant 0 : index
    %c0_6 = arith.constant 0 : index
    %6 = vector.load %arg11[%c0_5, %c0_6] : memref<64x512xf32, #tpu.memory_space<vmem>>, vector<64x512xf32>
    tpu.vector_store %arg11[%c0_5, %c0_6], %5 {strides = array<i32>} : memref<64x512xf32, #tpu.memory_space<vmem>>, vector<64x512xf32>,
    %c0_7 = arith.constant 0 : index
    %c0_8 = arith.constant 0 : index
    %7 = vector.load %arg4[%c0_7, %c0_8] : memref<8x128xf32, #tpu.memory_space<vmem>>, vector<8x128xf32>
    %c0_9 = arith.constant 0 : index
    %c0_10 = arith.constant 0 : index
    %8 = vector.load %arg5[%c0_9, %c0_10] : memref<8x128xf32, #tpu.memory_space<vmem>>, vector<8x128xf32>
    %c0_i32 = arith.constant 0 : i32
    %c8_i32 = arith.constant 8 : i32
    %9 = arith.muli %c0_i32, %c8_i32 : i32
    %10 = arith.index_cast %9 : i32 to index
    %c0_11 = arith.constant 0 : index
    %11 = vector.load %arg11[%10, %c0_11] : memref<64x512xf32, #tpu.memory_space<vmem>>, vector<8x512xf32>
    %12 = arith.truncf %7 : vector<8x128xf32> to vector<8x128xbf16>
    %c0_12 = arith.constant 0 : index
    %c0_13 = arith.constant 0 : index
    %13 = vector.load %arg2[%c0_12, %c0_13] : memref<128x512xbf16, #tpu.memory_space<vmem>>, vector<128x512xbf16>
    %cst_14 = arith.constant dense<0.000000e+00> : vector<8x512xf32>
    %14 = tpu.matmul %12, %13, %cst_14 {dimension_numbers = #tpu.dot_dimension_numbers<[1], [0], [0], [1], [0, 0, 1, 1], [], []>} : vector<8x128xbf16>, vector<128x512xbf16>, vector<8x512xf32> -> vector<8x512xf32>
    %15 = arith.addf %11, %14 : vector<8x512xf32>
    %16 = vector.extract_strided_slice %15 {offsets = [0, 0], sizes = [8, 256], strides = [1, 1]} : vector<8x512xf32> to vector<8x256xf32>
    %17 = arith.negf %16 : vector<8x256xf32>
    %18 = math.exp %17 : vector<8x256xf32>
    %cst_15 = arith.constant 1.000000e+00 : f32
    %19 = vector.broadcast %cst_15 : f32 to vector<8x256xf32>
    %20 = arith.addf %19, %18 : vector<8x256xf32>
    %21 = arith.divf %19, %20 : vector<8x256xf32>
    %22 = vector.extract_strided_slice %21 {offsets = [0, 0], sizes = [8, 128], strides = [1, 1]} : vector<8x256xf32> to vector<8x128xf32>
    %23 = vector.extract_strided_slice %21 {offsets = [0, 128], sizes = [8, 128], strides = [1, 1]} : vector<8x256xf32> to vector<8x128xf32>
    %24 = vector.extract_strided_slice %15 {offsets = [0, 256], sizes = [8, 128], strides = [1, 1]} : vector<8x512xf32> to vector<8x128xf32>
    %25 = math.tanh %24 : vector<8x128xf32>
    %26 = vector.extract_strided_slice %15 {offsets = [0, 384], sizes = [8, 128], strides = [1, 1]} : vector<8x512xf32> to vector<8x128xf32>
    %27 = arith.negf %26 : vector<8x128xf32>
    %28 = math.exp %27 : vector<8x128xf32>
    %cst_16 = arith.constant 1.000000e+00 : f32
    %29 = vector.broadcast %cst_16 : f32 to vector<8x128xf32>
    %30 = arith.addf %29, %28 : vector<8x128xf32>
    %31 = arith.divf %29, %30 : vector<8x128xf32>
    %32 = arith.mulf %23, %8 : vector<8x128xf32>
    %33 = arith.mulf %22, %25 : vector<8x128xf32>
    %34 = arith.addf %32, %33 : vector<8x128xf32>
    %35 = math.tanh %34 : vector<8x128xf32>
    %36 = arith.mulf %31, %35 : vector<8x128xf32>
    %37 = arith.index_cast %9 : i32 to index
    %c0_17 = arith.constant 0 : index
    %38 = vector.load %arg12[%37, %c0_17] : memref<64x128xf32, #tpu.memory_space<vmem>>, vector<8x128xf32>
    tpu.vector_store %arg12[%37, %c0_17], %36 {strides = array<i32>} : memref<64x128xf32, #tpu.memory_space<vmem>>, vector<8x128xf32>,
    %c1_i32 = arith.constant 1 : i32
    %c8_i32_18 = arith.constant 8 : i32
    %39 = arith.muli %c1_i32, %c8_i32_18 : i32
    %40 = arith.index_cast %39 : i32 to index
    %c0_19 = arith.constant 0 : index
    %41 = vector.load %arg11[%40, %c0_19] : memref<64x512xf32, #tpu.memory_space<vmem>>, vector<8x512xf32>
    %42 = arith.truncf %36 : vector<8x128xf32> to vector<8x128xbf16>
    %c0_20 = arith.constant 0 : index
    %c0_21 = arith.constant 0 : index
    %43 = vector.load %arg2[%c0_20, %c0_21] : memref<128x512xbf16, #tpu.memory_space<vmem>>, vector<128x512xbf16>
    %cst_22 = arith.constant dense<0.000000e+00> : vector<8x512xf32>
    %44 = tpu.matmul %42, %43, %cst_22 {dimension_numbers = #tpu.dot_dimension_numbers<[1], [0], [0], [1], [0, 0, 1, 1], [], []>} : vector<8x128xbf16>, vector<128x512xbf16>, vector<8x512xf32> -> vector<8x512xf32>
    %45 = arith.addf %41, %44 : vector<8x512xf32>
    %46 = vector.extract_strided_slice %45 {offsets = [0, 0], sizes = [8, 256], strides = [1, 1]} : vector<8x512xf32> to vector<8x256xf32>
    %47 = arith.negf %46 : vector<8x256xf32>
    %48 = math.exp %47 : vector<8x256xf32>
    %cst_23 = arith.constant 1.000000e+00 : f32
    %49 = vector.broadcast %cst_23 : f32 to vector<8x256xf32>
    %50 = arith.addf %49, %48 : vector<8x256xf32>
    %51 = arith.divf %49, %50 : vector<8x256xf32>
    %52 = vector.extract_strided_slice %51 {offsets = [0, 0], sizes = [8, 128], strides = [1, 1]} : vector<8x256xf32> to vector<8x128xf32>
    %53 = vector.extract_strided_slice %51 {offsets = [0, 128], sizes = [8, 128], strides = [1, 1]} : vector<8x256xf32> to vector<8x128xf32>
    %54 = vector.extract_strided_slice %45 {offsets = [0, 256], sizes = [8, 128], strides = [1, 1]} : vector<8x512xf32> to vector<8x128xf32>
    %55 = math.tanh %54 : vector<8x128xf32>
    %56 = vector.extract_strided_slice %45 {offsets = [0, 384], sizes = [8, 128], strides = [1, 1]} : vector<8x512xf32> to vector<8x128xf32>
    %57 = arith.negf %56 : vector<8x128xf32>
    %58 = math.exp %57 : vector<8x128xf32>
    %cst_24 = arith.constant 1.000000e+00 : f32
    %59 = vector.broadcast %cst_24 : f32 to vector<8x128xf32>
    %60 = arith.addf %59, %58 : vector<8x128xf32>
    %61 = arith.divf %59, %60 : vector<8x128xf32>
    %62 = arith.mulf %53, %34 : vector<8x128xf32>
    %63 = arith.mulf %52, %55 : vector<8x128xf32>
    %64 = arith.addf %62, %63 : vector<8x128xf32>
    %65 = math.tanh %64 : vector<8x128xf32>
    %66 = arith.mulf %61, %65 : vector<8x128xf32>
    %67 = arith.index_cast %39 : i32 to index
    %c0_25 = arith.constant 0 : index
    %68 = vector.load %arg12[%67, %c0_25] : memref<64x128xf32, #tpu.memory_space<vmem>>, vector<8x128xf32>
    tpu.vector_store %arg12[%67, %c0_25], %66 {strides = array<i32>} : memref<64x128xf32, #tpu.memory_space<vmem>>, vector<8x128xf32>,
    %c2_i32 = arith.constant 2 : i32
    %c8_i32_26 = arith.constant 8 : i32
    %69 = arith.muli %c2_i32, %c8_i32_26 : i32
    %70 = arith.index_cast %69 : i32 to index
    %c0_27 = arith.constant 0 : index
    %71 = vector.load %arg11[%70, %c0_27] : memref<64x512xf32, #tpu.memory_space<vmem>>, vector<8x512xf32>
    %72 = arith.truncf %66 : vector<8x128xf32> to vector<8x128xbf16>
    %c0_28 = arith.constant 0 : index
    %c0_29 = arith.constant 0 : index
    %73 = vector.load %arg2[%c0_28, %c0_29] : memref<128x512xbf16, #tpu.memory_space<vmem>>, vector<128x512xbf16>
    %cst_30 = arith.constant dense<0.000000e+00> : vector<8x512xf32>
    %74 = tpu.matmul %72, %73, %cst_30 {dimension_numbers = #tpu.dot_dimension_numbers<[1], [0], [0], [1], [0, 0, 1, 1], [], []>} : vector<8x128xbf16>, vector<128x512xbf16>, vector<8x512xf32> -> vector<8x512xf32>
    %75 = arith.addf %71, %74 : vector<8x512xf32>
    %76 = vector.extract_strided_slice %75 {offsets = [0, 0], sizes = [8, 256], strides = [1, 1]} : vector<8x512xf32> to vector<8x256xf32>
    %77 = arith.negf %76 : vector<8x256xf32>
    %78 = math.exp %77 : vector<8x256xf32>
    %cst_31 = arith.constant 1.000000e+00 : f32
    %79 = vector.broadcast %cst_31 : f32 to vector<8x256xf32>
    %80 = arith.addf %79, %78 : vector<8x256xf32>
    %81 = arith.divf %79, %80 : vector<8x256xf32>
    %82 = vector.extract_strided_slice %81 {offsets = [0, 0], sizes = [8, 128], strides = [1, 1]} : vector<8x256xf32> to vector<8x128xf32>
    %83 = vector.extract_strided_slice %81 {offsets = [0, 128], sizes = [8, 128], strides = [1, 1]} : vector<8x256xf32> to vector<8x128xf32>
    %84 = vector.extract_strided_slice %75 {offsets = [0, 256], sizes = [8, 128], strides = [1, 1]} : vector<8x512xf32> to vector<8x128xf32>
    %85 = math.tanh %84 : vector<8x128xf32>
    %86 = vector.extract_strided_slice %75 {offsets = [0, 384], sizes = [8, 128], strides = [1, 1]} : vector<8x512xf32> to vector<8x128xf32>
    %87 = arith.negf %86 : vector<8x128xf32>
    %88 = math.exp %87 : vector<8x128xf32>
    %cst_32 = arith.constant 1.000000e+00 : f32
    %89 = vector.broadcast %cst_32 : f32 to vector<8x128xf32>
    %90 = arith.addf %89, %88 : vector<8x128xf32>
    %91 = arith.divf %89, %90 : vector<8x128xf32>
    %92 = arith.mulf %83, %64 : vector<8x128xf32>
    %93 = arith.mulf %82, %85 : vector<8x128xf32>
    %94 = arith.addf %92, %93 : vector<8x128xf32>
    %95 = math.tanh %94 : vector<8x128xf32>
    %96 = arith.mulf %91, %95 : vector<8x128xf32>
    %97 = arith.index_cast %69 : i32 to index
    %c0_33 = arith.constant 0 : index
    %98 = vector.load %arg12[%97, %c0_33] : memref<64x128xf32, #tpu.memory_space<vmem>>, vector<8x128xf32>
    tpu.vector_store %arg12[%97, %c0_33], %96 {strides = array<i32>} : memref<64x128xf32, #tpu.memory_space<vmem>>, vector<8x128xf32>,
    %c3_i32 = arith.constant 3 : i32
    %c8_i32_34 = arith.constant 8 : i32
    %99 = arith.muli %c3_i32, %c8_i32_34 : i32
    %100 = arith.index_cast %99 : i32 to index
    %c0_35 = arith.constant 0 : index
    %101 = vector.load %arg11[%100, %c0_35] : memref<64x512xf32, #tpu.memory_space<vmem>>, vector<8x512xf32>
    %102 = arith.truncf %96 : vector<8x128xf32> to vector<8x128xbf16>
    %c0_36 = arith.constant 0 : index
    %c0_37 = arith.constant 0 : index
    %103 = vector.load %arg2[%c0_36, %c0_37] : memref<128x512xbf16, #tpu.memory_space<vmem>>, vector<128x512xbf16>
    %cst_38 = arith.constant dense<0.000000e+00> : vector<8x512xf32>
    %104 = tpu.matmul %102, %103, %cst_38 {dimension_numbers = #tpu.dot_dimension_numbers<[1], [0], [0], [1], [0, 0, 1, 1], [], []>} : vector<8x128xbf16>, vector<128x512xbf16>, vector<8x512xf32> -> vector<8x512xf32>
    %105 = arith.addf %101, %104 : vector<8x512xf32>
    %106 = vector.extract_strided_slice %105 {offsets = [0, 0], sizes = [8, 256], strides = [1, 1]} : vector<8x512xf32> to vector<8x256xf32>
    %107 = arith.negf %106 : vector<8x256xf32>
    %108 = math.exp %107 : vector<8x256xf32>
    %cst_39 = arith.constant 1.000000e+00 : f32
    %109 = vector.broadcast %cst_39 : f32 to vector<8x256xf32>
    %110 = arith.addf %109, %108 : vector<8x256xf32>
    %111 = arith.divf %109, %110 : vector<8x256xf32>
    %112 = vector.extract_strided_slice %111 {offsets = [0, 0], sizes = [8, 128], strides = [1, 1]} : vector<8x256xf32> to vector<8x128xf32>
    %113 = vector.extract_strided_slice %111 {offsets = [0, 128], sizes = [8, 128], strides = [1, 1]} : vector<8x256xf32> to vector<8x128xf32>
    %114 = vector.extract_strided_slice %105 {offsets = [0, 256], sizes = [8, 128], strides = [1, 1]} : vector<8x512xf32> to vector<8x128xf32>
    %115 = math.tanh %114 : vector<8x128xf32>
    %116 = vector.extract_strided_slice %105 {offsets = [0, 384], sizes = [8, 128], strides = [1, 1]} : vector<8x512xf32> to vector<8x128xf32>
    %117 = arith.negf %116 : vector<8x128xf32>
    %118 = math.exp %117 : vector<8x128xf32>
    %cst_40 = arith.constant 1.000000e+00 : f32
    %119 = vector.broadcast %cst_40 : f32 to vector<8x128xf32>
    %120 = arith.addf %119, %118 : vector<8x128xf32>
    %121 = arith.divf %119, %120 : vector<8x128xf32>
    %122 = arith.mulf %113, %94 : vector<8x128xf32>
    %123 = arith.mulf %112, %115 : vector<8x128xf32>
    %124 = arith.addf %122, %123 : vector<8x128xf32>
    %125 = math.tanh %124 : vector<8x128xf32>
    %126 = arith.mulf %121, %125 : vector<8x128xf32>
    %127 = arith.index_cast %99 : i32 to index
    %c0_41 = arith.constant 0 : index
    %128 = vector.load %arg12[%127, %c0_41] : memref<64x128xf32, #tpu.memory_space<vmem>>, vector<8x128xf32>
    tpu.vector_store %arg12[%127, %c0_41], %126 {strides = array<i32>} : memref<64x128xf32, #tpu.memory_space<vmem>>, vector<8x128xf32>,
    %c4_i32 = arith.constant 4 : i32
    %c8_i32_42 = arith.constant 8 : i32
    %129 = arith.muli %c4_i32, %c8_i32_42 : i32
    %130 = arith.index_cast %129 : i32 to index
    %c0_43 = arith.constant 0 : index
    %131 = vector.load %arg11[%130, %c0_43] : memref<64x512xf32, #tpu.memory_space<vmem>>, vector<8x512xf32>
    %132 = arith.truncf %126 : vector<8x128xf32> to vector<8x128xbf16>
    %c0_44 = arith.constant 0 : index
    %c0_45 = arith.constant 0 : index
    %133 = vector.load %arg2[%c0_44, %c0_45] : memref<128x512xbf16, #tpu.memory_space<vmem>>, vector<128x512xbf16>
    %cst_46 = arith.constant dense<0.000000e+00> : vector<8x512xf32>
    %134 = tpu.matmul %132, %133, %cst_46 {dimension_numbers = #tpu.dot_dimension_numbers<[1], [0], [0], [1], [0, 0, 1, 1], [], []>} : vector<8x128xbf16>, vector<128x512xbf16>, vector<8x512xf32> -> vector<8x512xf32>
    %135 = arith.addf %131, %134 : vector<8x512xf32>
    %136 = vector.extract_strided_slice %135 {offsets = [0, 0], sizes = [8, 256], strides = [1, 1]} : vector<8x512xf32> to vector<8x256xf32>
    %137 = arith.negf %136 : vector<8x256xf32>
    %138 = math.exp %137 : vector<8x256xf32>
    %cst_47 = arith.constant 1.000000e+00 : f32
    %139 = vector.broadcast %cst_47 : f32 to vector<8x256xf32>
    %140 = arith.addf %139, %138 : vector<8x256xf32>
    %141 = arith.divf %139, %140 : vector<8x256xf32>
    %142 = vector.extract_strided_slice %141 {offsets = [0, 0], sizes = [8, 128], strides = [1, 1]} : vector<8x256xf32> to vector<8x128xf32>
    %143 = vector.extract_strided_slice %141 {offsets = [0, 128], sizes = [8, 128], strides = [1, 1]} : vector<8x256xf32> to vector<8x128xf32>
    %144 = vector.extract_strided_slice %135 {offsets = [0, 256], sizes = [8, 128], strides = [1, 1]} : vector<8x512xf32> to vector<8x128xf32>
    %145 = math.tanh %144 : vector<8x128xf32>
    %146 = vector.extract_strided_slice %135 {offsets = [0, 384], sizes = [8, 128], strides = [1, 1]} : vector<8x512xf32> to vector<8x128xf32>
    %147 = arith.negf %146 : vector<8x128xf32>
    %148 = math.exp %147 : vector<8x128xf32>
    %cst_48 = arith.constant 1.000000e+00 : f32
    %149 = vector.broadcast %cst_48 : f32 to vector<8x128xf32>
    %150 = arith.addf %149, %148 : vector<8x128xf32>
    %151 = arith.divf %149, %150 : vector<8x128xf32>
    %152 = arith.mulf %143, %124 : vector<8x128xf32>
    %153 = arith.mulf %142, %145 : vector<8x128xf32>
    %154 = arith.addf %152, %153 : vector<8x128xf32>
    %155 = math.tanh %154 : vector<8x128xf32>
    %156 = arith.mulf %151, %155 : vector<8x128xf32>
    %157 = arith.index_cast %129 : i32 to index
    %c0_49 = arith.constant 0 : index
    %158 = vector.load %arg12[%157, %c0_49] : memref<64x128xf32, #tpu.memory_space<vmem>>, vector<8x128xf32>
    tpu.vector_store %arg12[%157, %c0_49], %156 {strides = array<i32>} : memref<64x128xf32, #tpu.memory_space<vmem>>, vector<8x128xf32>,
    %c5_i32 = arith.constant 5 : i32
    %c8_i32_50 = arith.constant 8 : i32
    %159 = arith.muli %c5_i32, %c8_i32_50 : i32
    %160 = arith.index_cast %159 : i32 to index
    %c0_51 = arith.constant 0 : index
    %161 = vector.load %arg11[%160, %c0_51] : memref<64x512xf32, #tpu.memory_space<vmem>>, vector<8x512xf32>
    %162 = arith.truncf %156 : vector<8x128xf32> to vector<8x128xbf16>
    %c0_52 = arith.constant 0 : index
    %c0_53 = arith.constant 0 : index
    %163 = vector.load %arg2[%c0_52, %c0_53] : memref<128x512xbf16, #tpu.memory_space<vmem>>, vector<128x512xbf16>
    %cst_54 = arith.constant dense<0.000000e+00> : vector<8x512xf32>
    %164 = tpu.matmul %162, %163, %cst_54 {dimension_numbers = #tpu.dot_dimension_numbers<[1], [0], [0], [1], [0, 0, 1, 1], [], []>} : vector<8x128xbf16>, vector<128x512xbf16>, vector<8x512xf32> -> vector<8x512xf32>
    %165 = arith.addf %161, %164 : vector<8x512xf32>
    %166 = vector.extract_strided_slice %165 {offsets = [0, 0], sizes = [8, 256], strides = [1, 1]} : vector<8x512xf32> to vector<8x256xf32>
    %167 = arith.negf %166 : vector<8x256xf32>
    %168 = math.exp %167 : vector<8x256xf32>
    %cst_55 = arith.constant 1.000000e+00 : f32
    %169 = vector.broadcast %cst_55 : f32 to vector<8x256xf32>
    %170 = arith.addf %169, %168 : vector<8x256xf32>
    %171 = arith.divf %169, %170 : vector<8x256xf32>
    %172 = vector.extract_strided_slice %171 {offsets = [0, 0], sizes = [8, 128], strides = [1, 1]} : vector<8x256xf32> to vector<8x128xf32>
    %173 = vector.extract_strided_slice %171 {offsets = [0, 128], sizes = [8, 128], strides = [1, 1]} : vector<8x256xf32> to vector<8x128xf32>
    %174 = vector.extract_strided_slice %165 {offsets = [0, 256], sizes = [8, 128], strides = [1, 1]} : vector<8x512xf32> to vector<8x128xf32>
    %175 = math.tanh %174 : vector<8x128xf32>
    %176 = vector.extract_strided_slice %165 {offsets = [0, 384], sizes = [8, 128], strides = [1, 1]} : vector<8x512xf32> to vector<8x128xf32>
    %177 = arith.negf %176 : vector<8x128xf32>
    %178 = math.exp %177 : vector<8x128xf32>
    %cst_56 = arith.constant 1.000000e+00 : f32
    %179 = vector.broadcast %cst_56 : f32 to vector<8x128xf32>
    %180 = arith.addf %179, %178 : vector<8x128xf32>
    %181 = arith.divf %179, %180 : vector<8x128xf32>
    %182 = arith.mulf %173, %154 : vector<8x128xf32>
    %183 = arith.mulf %172, %175 : vector<8x128xf32>
    %184 = arith.addf %182, %183 : vector<8x128xf32>
    %185 = math.tanh %184 : vector<8x128xf32>
    %186 = arith.mulf %181, %185 : vector<8x128xf32>
    %187 = arith.index_cast %159 : i32 to index
    %c0_57 = arith.constant 0 : index
    %188 = vector.load %arg12[%187, %c0_57] : memref<64x128xf32, #tpu.memory_space<vmem>>, vector<8x128xf32>
    tpu.vector_store %arg12[%187, %c0_57], %186 {strides = array<i32>} : memref<64x128xf32, #tpu.memory_space<vmem>>, vector<8x128xf32>,
    %c6_i32 = arith.constant 6 : i32
    %c8_i32_58 = arith.constant 8 : i32
    %189 = arith.muli %c6_i32, %c8_i32_58 : i32
    %190 = arith.index_cast %189 : i32 to index
    %c0_59 = arith.constant 0 : index
    %191 = vector.load %arg11[%190, %c0_59] : memref<64x512xf32, #tpu.memory_space<vmem>>, vector<8x512xf32>
    %192 = arith.truncf %186 : vector<8x128xf32> to vector<8x128xbf16>
    %c0_60 = arith.constant 0 : index
    %c0_61 = arith.constant 0 : index
    %193 = vector.load %arg2[%c0_60, %c0_61] : memref<128x512xbf16, #tpu.memory_space<vmem>>, vector<128x512xbf16>
    %cst_62 = arith.constant dense<0.000000e+00> : vector<8x512xf32>
    %194 = tpu.matmul %192, %193, %cst_62 {dimension_numbers = #tpu.dot_dimension_numbers<[1], [0], [0], [1], [0, 0, 1, 1], [], []>} : vector<8x128xbf16>, vector<128x512xbf16>, vector<8x512xf32> -> vector<8x512xf32>
    %195 = arith.addf %191, %194 : vector<8x512xf32>
    %196 = vector.extract_strided_slice %195 {offsets = [0, 0], sizes = [8, 256], strides = [1, 1]} : vector<8x512xf32> to vector<8x256xf32>
    %197 = arith.negf %196 : vector<8x256xf32>
    %198 = math.exp %197 : vector<8x256xf32>
    %cst_63 = arith.constant 1.000000e+00 : f32
    %199 = vector.broadcast %cst_63 : f32 to vector<8x256xf32>
    %200 = arith.addf %199, %198 : vector<8x256xf32>
    %201 = arith.divf %199, %200 : vector<8x256xf32>
    %202 = vector.extract_strided_slice %201 {offsets = [0, 0], sizes = [8, 128], strides = [1, 1]} : vector<8x256xf32> to vector<8x128xf32>
    %203 = vector.extract_strided_slice %201 {offsets = [0, 128], sizes = [8, 128], strides = [1, 1]} : vector<8x256xf32> to vector<8x128xf32>
    %204 = vector.extract_strided_slice %195 {offsets = [0, 256], sizes = [8, 128], strides = [1, 1]} : vector<8x512xf32> to vector<8x128xf32>
    %205 = math.tanh %204 : vector<8x128xf32>
    %206 = vector.extract_strided_slice %195 {offsets = [0, 384], sizes = [8, 128], strides = [1, 1]} : vector<8x512xf32> to vector<8x128xf32>
    %207 = arith.negf %206 : vector<8x128xf32>
    %208 = math.exp %207 : vector<8x128xf32>
    %cst_64 = arith.constant 1.000000e+00 : f32
    %209 = vector.broadcast %cst_64 : f32 to vector<8x128xf32>
    %210 = arith.addf %209, %208 : vector<8x128xf32>
    %211 = arith.divf %209, %210 : vector<8x128xf32>
    %212 = arith.mulf %203, %184 : vector<8x128xf32>
    %213 = arith.mulf %202, %205 : vector<8x128xf32>
    %214 = arith.addf %212, %213 : vector<8x128xf32>
    %215 = math.tanh %214 : vector<8x128xf32>
    %216 = arith.mulf %211, %215 : vector<8x128xf32>
    %217 = arith.index_cast %189 : i32 to index
    %c0_65 = arith.constant 0 : index
    %218 = vector.load %arg12[%217, %c0_65] : memref<64x128xf32, #tpu.memory_space<vmem>>, vector<8x128xf32>
    tpu.vector_store %arg12[%217, %c0_65], %216 {strides = array<i32>} : memref<64x128xf32, #tpu.memory_space<vmem>>, vector<8x128xf32>,
    %c7_i32 = arith.constant 7 : i32
    %c8_i32_66 = arith.constant 8 : i32
    %219 = arith.muli %c7_i32, %c8_i32_66 : i32
    %220 = arith.index_cast %219 : i32 to index
    %c0_67 = arith.constant 0 : index
    %221 = vector.load %arg11[%220, %c0_67] : memref<64x512xf32, #tpu.memory_space<vmem>>, vector<8x512xf32>
    %222 = arith.truncf %216 : vector<8x128xf32> to vector<8x128xbf16>
    %c0_68 = arith.constant 0 : index
    %c0_69 = arith.constant 0 : index
    %223 = vector.load %arg2[%c0_68, %c0_69] : memref<128x512xbf16, #tpu.memory_space<vmem>>, vector<128x512xbf16>
    %cst_70 = arith.constant dense<0.000000e+00> : vector<8x512xf32>
    %224 = tpu.matmul %222, %223, %cst_70 {dimension_numbers = #tpu.dot_dimension_numbers<[1], [0], [0], [1], [0, 0, 1, 1], [], []>} : vector<8x128xbf16>, vector<128x512xbf16>, vector<8x512xf32> -> vector<8x512xf32>
    %225 = arith.addf %221, %224 : vector<8x512xf32>
    %226 = vector.extract_strided_slice %225 {offsets = [0, 0], sizes = [8, 256], strides = [1, 1]} : vector<8x512xf32> to vector<8x256xf32>
    %227 = arith.negf %226 : vector<8x256xf32>
    %228 = math.exp %227 : vector<8x256xf32>
    %cst_71 = arith.constant 1.000000e+00 : f32
    %229 = vector.broadcast %cst_71 : f32 to vector<8x256xf32>
    %230 = arith.addf %229, %228 : vector<8x256xf32>
    %231 = arith.divf %229, %230 : vector<8x256xf32>
    %232 = vector.extract_strided_slice %231 {offsets = [0, 0], sizes = [8, 128], strides = [1, 1]} : vector<8x256xf32> to vector<8x128xf32>
    %233 = vector.extract_strided_slice %231 {offsets = [0, 128], sizes = [8, 128], strides = [1, 1]} : vector<8x256xf32> to vector<8x128xf32>
    %234 = vector.extract_strided_slice %225 {offsets = [0, 256], sizes = [8, 128], strides = [1, 1]} : vector<8x512xf32> to vector<8x128xf32>
    %235 = math.tanh %234 : vector<8x128xf32>
    %236 = vector.extract_strided_slice %225 {offsets = [0, 384], sizes = [8, 128], strides = [1, 1]} : vector<8x512xf32> to vector<8x128xf32>
    %237 = arith.negf %236 : vector<8x128xf32>
    %238 = math.exp %237 : vector<8x128xf32>
    %cst_72 = arith.constant 1.000000e+00 : f32
    %239 = vector.broadcast %cst_72 : f32 to vector<8x128xf32>
    %240 = arith.addf %239, %238 : vector<8x128xf32>
    %241 = arith.divf %239, %240 : vector<8x128xf32>
    %242 = arith.mulf %233, %214 : vector<8x128xf32>
    %243 = arith.mulf %232, %235 : vector<8x128xf32>
    %244 = arith.addf %242, %243 : vector<8x128xf32>
    %245 = math.tanh %244 : vector<8x128xf32>
    %246 = arith.mulf %241, %245 : vector<8x128xf32>
    %247 = arith.index_cast %219 : i32 to index
    %c0_73 = arith.constant 0 : index
    %248 = vector.load %arg12[%247, %c0_73] : memref<64x128xf32, #tpu.memory_space<vmem>>, vector<8x128xf32>
    tpu.vector_store %arg12[%247, %c0_73], %246 {strides = array<i32>} : memref<64x128xf32, #tpu.memory_space<vmem>>, vector<8x128xf32>,
    %c8_i32_74 = arith.constant 8 : i32
    %c0_75 = arith.constant 0 : index
    %c0_76 = arith.constant 0 : index
    %249 = vector.load %arg12[%c0_75, %c0_76] : memref<64x128xf32, #tpu.memory_space<vmem>>, vector<64x128xf32>
    %250 = arith.truncf %249 : vector<64x128xf32> to vector<64x128xbf16>
    %c0_77 = arith.constant 0 : index
    %c0_78 = arith.constant 0 : index
    %251 = vector.load %arg6[%c0_77, %c0_78] : memref<128x128xbf16, #tpu.memory_space<vmem>>, vector<128x128xbf16>
    %cst_79 = arith.constant dense<0.000000e+00> : vector<64x128xf32>
    %252 = tpu.matmul %250, %251, %cst_79 {dimension_numbers = #tpu.dot_dimension_numbers<[1], [0], [0], [1], [0, 0, 1, 1], [], []>} : vector<64x128xbf16>, vector<128x128xbf16>, vector<64x128xf32> -> vector<64x128xf32>
    %c0_80 = arith.constant 0 : index
    %c0_81 = arith.constant 0 : index
    %253 = vector.load %arg7[%c0_80, %c0_81] : memref<1x128xf32, #tpu.memory_space<vmem>>, vector<1x128xf32>
    %254 = vector.broadcast %253 : vector<1x128xf32> to vector<64x128xf32>
    %255 = arith.addf %252, %254 : vector<64x128xf32>
    %c0_82 = arith.constant 0 : index
    %c0_83 = arith.constant 0 : index
    %256 = vector.load %arg8[%c0_82, %c0_83] : memref<64x128xf32, #tpu.memory_space<vmem>>, vector<64x128xf32>
    tpu.vector_store %arg8[%c0_82, %c0_83], %255 {strides = array<i32>} : memref<64x128xf32, #tpu.memory_space<vmem>>, vector<64x128xf32>,
    %c0_84 = arith.constant 0 : index
    %c0_85 = arith.constant 0 : index
    %257 = vector.load %arg9[%c0_84, %c0_85] : memref<8x128xf32, #tpu.memory_space<vmem>>, vector<8x128xf32>
    tpu.vector_store %arg9[%c0_84, %c0_85], %246 {strides = array<i32>} : memref<8x128xf32, #tpu.memory_space<vmem>>, vector<8x128xf32>,
    %c0_86 = arith.constant 0 : index
    %c0_87 = arith.constant 0 : index
    %258 = vector.load %arg10[%c0_86, %c0_87] : memref<8x128xf32, #tpu.memory_space<vmem>>, vector<8x128xf32>
    tpu.vector_store %arg10[%c0_86, %c0_87], %244 {strides = array<i32>} : memref<8x128xf32, #tpu.memory_space<vmem>>, vector<8x128xf32>,
    return
  }
}

</mosaic_0001>

<llo_original>
// kernel: lstm_forward.1
$region0: #{lstm_forward.1}
  #allocation0 [shape = 'u32[]', space=smem, size = 0x4, offset = 0x4, fixed_abs, tag = 'smem constant byte address 0x4 - core index']
  #allocation1 [shape = 'u32[144,128]{1,0:T(1,128)}', space=vmem, size = 0x12000, scoped, tag = 'internal scratch']
  #allocation2 [shape = 'f32[64,512]{1,0:T(8,128)}', space=vmem, size = 0x20000, scoped, tag = 'scratch operand']
  #allocation3 [shape = 'f32[64,128]{1,0:T(8,128)}', space=vmem, size = 0x8000, scoped, tag = 'scratch operand']
  %s0 = inlined_call_operand.vmem [shape: bf16[64,128], index: 0, kind: input, shape index: {}]
  %s1 = inlined_call_operand.vmem [shape: bf16[128,512], index: 1, kind: input, shape index: {}]
  %s2 = inlined_call_operand.vmem [shape: bf16[128,512], index: 2, kind: input, shape index: {}]
  %s3 = inlined_call_operand.vmem [shape: f32[1,512], index: 3, kind: input, shape index: {}]
  %s4 = inlined_call_operand.vmem [shape: f32[8,128], index: 4, kind: input, shape index: {}]
  %s5 = inlined_call_operand.vmem [shape: f32[8,128], index: 5, kind: input, shape index: {}]
  %s6 = inlined_call_operand.vmem [shape: bf16[128,128], index: 6, kind: input, shape index: {}]
  %s7 = inlined_call_operand.vmem [shape: f32[1,128], index: 7, kind: input, shape index: {}]
  %s8 = inlined_call_operand.vmem [shape: f32[64,128], index: 8, kind: output, shape index: {0}]
  %s9 = inlined_call_operand.vmem [shape: f32[8,128], index: 9, kind: output, shape index: {1}]
  %s10 = inlined_call_operand.vmem [shape: f32[8,128], index: 10, kind: output, shape index: {2}]
  %11 = xla_tuple %s8, %s9, %s10
  %s12 = sld [smem:[#allocation0]]
  $region58: #{lstm_forward.1} parent=0
    _
  %s14 = ssub.s32 1, %s12
  %s15 = scalar_select 0, %s14, %s12
  // Predicated region
  $region2: #{lstm_forward.1} parent=0 // pred_check
    _
  $region3: #{lstm_forward.1} parent=0 // pred_check_branch
    %17 = sbr.rel (0) target = $region5
  $region4: #{lstm_forward.1} parent=0 // pred_region
    _
  $region5: #{lstm_forward.1} parent=0 // pred_fallthru
    _
  // Predicated region
  $region6: #{lstm_forward.1} parent=0 // pred_check
    _
  $region7: #{lstm_forward.1} parent=0 // pred_check_branch
    %19 = sbr.rel (0) target = $region9
  $region8: #{lstm_forward.1} parent=0 // pred_region
    _
  $region9: #{lstm_forward.1} parent=0 // pred_fallthru
    _
  // Predicated region
  $region10: #{lstm_forward.1} parent=0 // pred_check
    _
  $region11: #{lstm_forward.1} parent=0 // pred_check_branch
    %21 = sbr.rel (0) target = $region13
  $region12: #{lstm_forward.1} parent=0 // pred_region
    _
  $region13: #{lstm_forward.1} parent=0 // pred_fallthru
    _
  // Predicated region
  $region14: #{lstm_forward.1} parent=0 // pred_check
    _
  $region15: #{lstm_forward.1} parent=0 // pred_check_branch
    %23 = sbr.rel (0) target = $region17
  $region16: #{lstm_forward.1} parent=0 // pred_region
    _
  $region17: #{lstm_forward.1} parent=0 // pred_fallthru
    _
  // Predicated region
  $region18: #{lstm_forward.1} parent=0 // pred_check
    _
  $region19: #{lstm_forward.1} parent=0 // pred_check_branch
    %25 = sbr.rel (0) target = $region21
  $region20: #{lstm_forward.1} parent=0 // pred_region
    _
  $region21: #{lstm_forward.1} parent=0 // pred_fallthru
    _
  // Predicated region
  $region22: #{lstm_forward.1} parent=0 // pred_check
    _
  $region23: #{lstm_forward.1} parent=0 // pred_check_branch
    %27 = sbr.rel (0) target = $region25
  $region24: #{lstm_forward.1} parent=0 // pred_region
    _
  $region25: #{lstm_forward.1} parent=0 // pred_fallthru
    _
  // Predicated region
  $region26: #{lstm_forward.1} parent=0 // pred_check
    _
  $region27: #{lstm_forward.1} parent=0 // pred_check_branch
    %29 = sbr.rel (0) target = $region29
  $region28: #{lstm_forward.1} parent=0 // pred_region
    _
  $region29: #{lstm_forward.1} parent=0 // pred_fallthru
    _
  // Predicated region
  $region30: #{lstm_forward.1} parent=0 // pred_check
    _
  $region31: #{lstm_forward.1} parent=0 // pred_check_branch
    %31 = sbr.rel (0) target = $region33
  $region32: #{lstm_forward.1} parent=0 // pred_region
    _
  $region33: #{lstm_forward.1} parent=0 // pred_fallthru
    _
  %v33 = vld [vmem:[%s0] sm:$0xf]
  %v34 = vld [vmem:[%s0 + $0x4] sm:$0xf]
  %v35 = vld [vmem:[%s0 + $0x8] sm:$0xf]
  %v36 = vld [vmem:[%s0 + $0xc] sm:$0xf]
  %v37 = vld [vmem:[%s0 + $0x10] sm:$0xf]
  %v38 = vld [vmem:[%s0 + $0x14] sm:$0xf]
  %v39 = vld [vmem:[%s0 + $0x18] sm:$0xf]
  %v40 = vld [vmem:[%s0 + $0x1c] sm:$0xf]
  %v41 = vld [vmem:[%s1] sm:$0xff]
  %v42 = vld [vmem:[%s1 + $0x8] sm:$0xff]
  %v43 = vld [vmem:[%s1 + $0x10] sm:$0xff]
  %v44 = vld [vmem:[%s1 + $0x18] sm:$0xff]
  %v45 = vld [vmem:[%s1 + $0x20] sm:$0xff]
  %v46 = vld [vmem:[%s1 + $0x28] sm:$0xff]
  %v47 = vld [vmem:[%s1 + $0x30] sm:$0xff]
  %v48 = vld [vmem:[%s1 + $0x38] sm:$0xff]
  %v49 = vld [vmem:[%s1 + $0x40] sm:$0xff]
  %v50 = vld [vmem:[%s1 + $0x48] sm:$0xff]
  %v51 = vld [vmem:[%s1 + $0x50] sm:$0xff]
  %v52 = vld [vmem:[%s1 + $0x58] sm:$0xff]
  %v53 = vld [vmem:[%s1 + $0x60] sm:$0xff]
  %v54 = vld [vmem:[%s1 + $0x68] sm:$0xff]
  %v55 = vld [vmem:[%s1 + $0x70] sm:$0xff]
  %v56 = vld [vmem:[%s1 + $0x78] sm:$0xff]
  %v57 = vld [vmem:[%s1 + $0x80] sm:$0xff]
  %v58 = vld [vmem:[%s1 + $0x88] sm:$0xff]
  %v59 = vld [vmem:[%s1 + $0x90] sm:$0xff]
  %v60 = vld [vmem:[%s1 + $0x98] sm:$0xff]
  %v61 = vld [vmem:[%s1 + $0xa0] sm:$0xff]
  %v62 = vld [vmem:[%s1 + $0xa8] sm:$0xff]
  %v63 = vld [vmem:[%s1 + $0xb0] sm:$0xff]
  %v64 = vld [vmem:[%s1 + $0xb8] sm:$0xff]
  %v65 = vld [vmem:[%s1 + $0xc0] sm:$0xff]
  %v66 = vld [vmem:[%s1 + $0xc8] sm:$0xff]
  %v67 = vld [vmem:[%s1 + $0xd0] sm:$0xff]
  %v68 = vld [vmem:[%s1 + $0xd8] sm:$0xff]
  %v69 = vld [vmem:[%s1 + $0xe0] sm:$0xff]
  %v70 = vld [vmem:[%s1 + $0xe8] sm:$0xff]
  %v71 = vld [vmem:[%s1 + $0xf0] sm:$0xff]
  %v72 = vld [vmem:[%s1 + $0xf8] sm:$0xff]
  %v73 = vld [vmem:[%s3] sm:$0xf]
  %v75 = vlaneseq
  %v76 = vshrl.u32 %v75, 7
  %v77 = vsub.s32 0, %v76
  %v78 = vrot.slane %v73, %v77
  %v79 = vlaneseq
  %v80 = vshrl.u32 %v79, 7
  %v81 = vsub.s32 1, %v80
  %v82 = vrot.slane %v73, %v81
  %v83 = vlaneseq
  %v84 = vshrl.u32 %v83, 7
  %v85 = vsub.s32 2, %v84
  %v86 = vrot.slane %v73, %v85
  %v87 = vlaneseq
  %v88 = vshrl.u32 %v87, 7
  %v89 = vsub.s32 3, %v88
  %v90 = vrot.slane %v73, %v89
  %v103 = vunpack.c.l.b16 %v33
  %v104 = vunpack.c.l.b16 %v34
  %v105 = vunpack.c.l.b16 %v35
  %v106 = vunpack.c.l.b16 %v36
  %v107 = vunpack.c.l.b16 %v37
  %v108 = vunpack.c.l.b16 %v38
  %v109 = vunpack.c.l.b16 %v39
  %v110 = vunpack.c.l.b16 %v40
  %v111 = vpack.c.b16 %v104, %v103
  %v112 = vpack.c.b16 %v106, %v105
  %v113 = vpack.c.b16 %v108, %v107
  %v114 = vpack.c.b16 %v110, %v109
  %v151 = vunpack.c.l.b16 %v41
  %v152 = vunpack.c.h.b16 %v41
  %v153 = vunpack.c.l.b16 %v42
  %v154 = vunpack.c.h.b16 %v42
  %v155 = vunpack.c.l.b16 %v43
  %v156 = vunpack.c.h.b16 %v43
  %v157 = vunpack.c.l.b16 %v44
  %v158 = vunpack.c.h.b16 %v44
  %v159 = vunpack.c.l.b16 %v45
  %v160 = vunpack.c.h.b16 %v45
  %v161 = vunpack.c.l.b16 %v46
  %v162 = vunpack.c.h.b16 %v46
  %v163 = vunpack.c.l.b16 %v47
  %v164 = vunpack.c.h.b16 %v47
  %v165 = vunpack.c.l.b16 %v48
  %v166 = vunpack.c.h.b16 %v48
  %v167 = vunpack.c.l.b16 %v49
  %v168 = vunpack.c.h.b16 %v49
  %v169 = vunpack.c.l.b16 %v50
  %v170 = vunpack.c.h.b16 %v50
  %v171 = vunpack.c.l.b16 %v51
  %v172 = vunpack.c.h.b16 %v51
  %v173 = vunpack.c.l.b16 %v52
  %v174 = vunpack.c.h.b16 %v52
  %v175 = vunpack.c.l.b16 %v53
  %v176 = vunpack.c.h.b16 %v53
  %v177 = vunpack.c.l.b16 %v54
  %v178 = vunpack.c.h.b16 %v54
  %v179 = vunpack.c.l.b16 %v55
  %v180 = vunpack.c.h.b16 %v55
  %v181 = vunpack.c.l.b16 %v56
  %v182 = vunpack.c.h.b16 %v56
  %v183 = vunpack.c.l.b16 %v57
  %v184 = vunpack.c.h.b16 %v57
  %v185 = vunpack.c.l.b16 %v58
  %v186 = vunpack.c.h.b16 %v58
  %v187 = vunpack.c.l.b16 %v59
  %v188 = vunpack.c.h.b16 %v59
  %v189 = vunpack.c.l.b16 %v60
  %v190 = vunpack.c.h.b16 %v60
  %v191 = vunpack.c.l.b16 %v61
  %v192 = vunpack.c.h.b16 %v61
  %v193 = vunpack.c.l.b16 %v62
  %v194 = vunpack.c.h.b16 %v62
  %v195 = vunpack.c.l.b16 %v63
  %v196 = vunpack.c.h.b16 %v63
  %v197 = vunpack.c.l.b16 %v64
  %v198 = vunpack.c.h.b16 %v64
  %v199 = vunpack.c.l.b16 %v65
  %v200 = vunpack.c.h.b16 %v65
  %v201 = vunpack.c.l.b16 %v66
  %v202 = vunpack.c.h.b16 %v66
  %v203 = vunpack.c.l.b16 %v67
  %v204 = vunpack.c.h.b16 %v67
  %v205 = vunpack.c.l.b16 %v68
  %v206 = vunpack.c.h.b16 %v68
  %v207 = vunpack.c.l.b16 %v69
  %v208 = vunpack.c.h.b16 %v69
  %v209 = vunpack.c.l.b16 %v70
  %v210 = vunpack.c.h.b16 %v70
  %v211 = vunpack.c.l.b16 %v71
  %v212 = vunpack.c.h.b16 %v71
  %v213 = vunpack.c.l.b16 %v72
  %v214 = vunpack.c.h.b16 %v72
  %v215 = vpack.c.b16 %v155, %v151
  %v216 = vpack.c.b16 %v156, %v152
  %v217 = vpack.c.b16 %v157, %v153
  %v218 = vpack.c.b16 %v158, %v154
  %v219 = vpack.c.b16 %v163, %v159
  %v220 = vpack.c.b16 %v164, %v160
  %v221 = vpack.c.b16 %v165, %v161
  %v222 = vpack.c.b16 %v166, %v162
  %v223 = vpack.c.b16 %v171, %v167
  %v224 = vpack.c.b16 %v172, %v168
  %v225 = vpack.c.b16 %v173, %v169
  %v226 = vpack.c.b16 %v174, %v170
  %v227 = vpack.c.b16 %v179, %v175
  %v228 = vpack.c.b16 %v180, %v176
  %v229 = vpack.c.b16 %v181, %v177
  %v230 = vpack.c.b16 %v182, %v178
  %v231 = vpack.c.b16 %v187, %v183
  %v232 = vpack.c.b16 %v188, %v184
  %v233 = vpack.c.b16 %v189, %v185
  %v234 = vpack.c.b16 %v190, %v186
  %v235 = vpack.c.b16 %v195, %v191
  %v236 = vpack.c.b16 %v196, %v192
  %v237 = vpack.c.b16 %v197, %v193
  %v238 = vpack.c.b16 %v198, %v194
  %v239 = vpack.c.b16 %v203, %v199
  %v240 = vpack.c.b16 %v204, %v200
  %v241 = vpack.c.b16 %v205, %v201
  %v242 = vpack.c.b16 %v206, %v202
  %v243 = vpack.c.b16 %v211, %v207
  %v244 = vpack.c.b16 %v212, %v208
  %v245 = vpack.c.b16 %v213, %v209
  %v246 = vpack.c.b16 %v214, %v210
  %279 = vmatprep.subr.bf16.mxu0 %v216
  %280 = vmatpush1.bf16.msra.mxu0 %v215
  %281 = vmatprep.subr.bf16.mxu0 %v220
  %282 = vmatpush1.bf16.msra.mxu0 %v219
  %283 = vmatprep.subr.bf16.mxu0 %v224
  %284 = vmatpush1.bf16.msra.mxu0 %v223
  %285 = vmatprep.subr.bf16.mxu0 %v228
  %286 = vmatpush1.bf16.msra.mxu0 %v227
  %287 = vmatprep.subr.bf16.mxu0 %v232
  %288 = vmatpush1.bf16.msra.mxu0 %v231
  %289 = vmatprep.subr.bf16.mxu0 %v236
  %290 = vmatpush1.bf16.msra.mxu0 %v235
  %291 = vmatprep.subr.bf16.mxu0 %v240
  %292 = vmatpush1.bf16.msra.mxu0 %v239
  %293 = vmatprep.subr.bf16.mxu0 %v244
  %294 = vmatpush1.bf16.msra.mxu0 %v243
  %295 = vmatprep.subr.bf16.mxu0 0
  %296 = vmatpush1.bf16.msra.mxu0 0
  %297 = vmatprep.subr.bf16.mxu0 0
  %298 = vmatpush1.bf16.msra.mxu0 0
  %299 = vmatprep.subr.bf16.mxu0 0
  %300 = vmatpush1.bf16.msra.mxu0 0
  %301 = vmatprep.subr.bf16.mxu0 0
  %302 = vmatpush1.bf16.msra.mxu0 0
  %303 = vmatprep.subr.bf16.mxu0 0
  %304 = vmatpush1.bf16.msra.mxu0 0
  %305 = vmatprep.subr.bf16.mxu0 0
  %306 = vmatpush1.bf16.msra.mxu0 0
  %307 = vmatprep.subr.bf16.mxu0 0
  %308 = vmatpush1.bf16.msra.mxu0 0
  %309 = vmatprep.subr.bf16.mxu0 0
  %310 = vmatpush1.bf16.msra.mxu0 0
  %311 = vmatprep.mubr.bf16.mxu0 0
  %312 = vmatmul.mubr.bf16.gmra.mrb[0].mxu0 %v111
  %v313 = vpop.f32.mrb[0].mxu0
  %v314 = vadd.f32 %v78, %v313
  %v315 = vpop.f32.mrb[0].mxu0
  %v316 = vadd.f32 %v82, %v315
  %v317 = vpop.f32.mrb[0].mxu0
  %v318 = vadd.f32 %v78, %v317
  %v319 = vpop.f32.mrb[0].mxu0
  %v320 = vadd.f32 %v82, %v319
  %321 = vmatprep.mubr.bf16.mxu0 0
  %322 = vmatmul.mubr.bf16.gmra.mrb[0].mxu0 %v112
  %v323 = vpop.f32.mrb[0].mxu0
  %v324 = vadd.f32 %v78, %v323
  %v325 = vpop.f32.mrb[0].mxu0
  %v326 = vadd.f32 %v82, %v325
  %v327 = vpop.f32.mrb[0].mxu0
  %v328 = vadd.f32 %v78, %v327
  %v329 = vpop.f32.mrb[0].mxu0
  %v330 = vadd.f32 %v82, %v329
  %331 = vmatprep.mubr.bf16.mxu0 0
  %332 = vmatmul.mubr.bf16.gmra.mrb[0].mxu0 %v113
  %v333 = vpop.f32.mrb[0].mxu0
  %v334 = vadd.f32 %v78, %v333
  %v335 = vpop.f32.mrb[0].mxu0
  %v336 = vadd.f32 %v82, %v335
  %v337 = vpop.f32.mrb[0].mxu0
  %v338 = vadd.f32 %v78, %v337
  %v339 = vpop.f32.mrb[0].mxu0
  %v340 = vadd.f32 %v82, %v339
  %341 = vmatprep.mubr.bf16.mxu0 0
  %342 = vmatmul.mubr.bf16.gmra.mrb[0].mxu0 %v114
  %v343 = vpop.f32.mrb[0].mxu0
  %v344 = vadd.f32 %v78, %v343
  %v345 = vpop.f32.mrb[0].mxu0
  %v346 = vadd.f32 %v82, %v345
  %v347 = vpop.f32.mrb[0].mxu0
  %v348 = vadd.f32 %v78, %v347
  %v349 = vpop.f32.mrb[0].mxu0
  %v350 = vadd.f32 %v82, %v349
  %351 = vdwg.mxu0
  %352 = vmatprep.subr.bf16.mxu0 %v218
  %353 = vmatpush1.bf16.msra.mxu0 %v217
  %354 = vmatprep.subr.bf16.mxu0 %v222
  %355 = vmatpush1.bf16.msra.mxu0 %v221
  %356 = vmatprep.subr.bf16.mxu0 %v226
  %357 = vmatpush1.bf16.msra.mxu0 %v225
  %358 = vmatprep.subr.bf16.mxu0 %v230
  %359 = vmatpush1.bf16.msra.mxu0 %v229
  %360 = vmatprep.subr.bf16.mxu0 %v234
  %361 = vmatpush1.bf16.msra.mxu0 %v233
  %362 = vmatprep.subr.bf16.mxu0 %v238
  %363 = vmatpush1.bf16.msra.mxu0 %v237
  %364 = vmatprep.subr.bf16.mxu0 %v242
  %365 = vmatpush1.bf16.msra.mxu0 %v241
  %366 = vmatprep.subr.bf16.mxu0 %v246
  %367 = vmatpush1.bf16.msra.mxu0 %v245
  %368 = vmatprep.subr.bf16.mxu0 0
  %369 = vmatpush1.bf16.msra.mxu0 0
  %370 = vmatprep.subr.bf16.mxu0 0
  %371 = vmatpush1.bf16.msra.mxu0 0
  %372 = vmatprep.subr.bf16.mxu0 0
  %373 = vmatpush1.bf16.msra.mxu0 0
  %374 = vmatprep.subr.bf16.mxu0 0
  %375 = vmatpush1.bf16.msra.mxu0 0
  %376 = vmatprep.subr.bf16.mxu0 0
  %377 = vmatpush1.bf16.msra.mxu0 0
  %378 = vmatprep.subr.bf16.mxu0 0
  %379 = vmatpush1.bf16.msra.mxu0 0
  %380 = vmatprep.subr.bf16.mxu0 0
  %381 = vmatpush1.bf16.msra.mxu0 0
  %382 = vmatprep.subr.bf16.mxu0 0
  %383 = vmatpush1.bf16.msra.mxu0 0
  %384 = vmatprep.mubr.bf16.mxu0 0
  %385 = vmatmul.mubr.bf16.gmra.mrb[0].mxu0 %v111
  %v386 = vpop.f32.mrb[0].mxu0
  %v387 = vadd.f32 %v86, %v386
  %v388 = vpop.f32.mrb[0].mxu0
  %v389 = vadd.f32 %v90, %v388
  %v390 = vpop.f32.mrb[0].mxu0
  %v391 = vadd.f32 %v86, %v390
  %v392 = vpop.f32.mrb[0].mxu0
  %v393 = vadd.f32 %v90, %v392
  %394 = vmatprep.mubr.bf16.mxu0 0
  %395 = vmatmul.mubr.bf16.gmra.mrb[0].mxu0 %v112
  %v396 = vpop.f32.mrb[0].mxu0
  %v397 = vadd.f32 %v86, %v396
  %v398 = vpop.f32.mrb[0].mxu0
  %v399 = vadd.f32 %v90, %v398
  %v400 = vpop.f32.mrb[0].mxu0
  %v401 = vadd.f32 %v86, %v400
  %v402 = vpop.f32.mrb[0].mxu0
  %v403 = vadd.f32 %v90, %v402
  %404 = vmatprep.mubr.bf16.mxu0 0
  %405 = vmatmul.mubr.bf16.gmra.mrb[0].mxu0 %v113
  %v406 = vpop.f32.mrb[0].mxu0
  %v407 = vadd.f32 %v86, %v406
  %v408 = vpop.f32.mrb[0].mxu0
  %v409 = vadd.f32 %v90, %v408
  %v410 = vpop.f32.mrb[0].mxu0
  %v411 = vadd.f32 %v86, %v410
  %v412 = vpop.f32.mrb[0].mxu0
  %v413 = vadd.f32 %v90, %v412
  %414 = vmatprep.mubr.bf16.mxu0 0
  %415 = vmatmul.mubr.bf16.gmra.mrb[0].mxu0 %v114
  %v416 = vpop.f32.mrb[0].mxu0
  %v417 = vadd.f32 %v86, %v416
  %v418 = vpop.f32.mrb[0].mxu0
  %v419 = vadd.f32 %v90, %v418
  %v420 = vpop.f32.mrb[0].mxu0
  %v421 = vadd.f32 %v86, %v420
  %v422 = vpop.f32.mrb[0].mxu0
  %v423 = vadd.f32 %v90, %v422
  %424 = vdwg.mxu0
  %425 = vst [vmem:[#allocation2] sm:$0xff] %v314
  %426 = vst [vmem:[#allocation2 + $0x8] sm:$0xff] %v316
  %427 = vst [vmem:[#allocation2 + $0x10] sm:$0xff] %v387
  %428 = vst [vmem:[#allocation2 + $0x18] sm:$0xff] %v389
  %429 = vst [vmem:[#allocation2 + $0x20] sm:$0xff] %v318
  %430 = vst [vmem:[#allocation2 + $0x28] sm:$0xff] %v320
  %431 = vst [vmem:[#allocation2 + $0x30] sm:$0xff] %v391
  %432 = vst [vmem:[#allocation2 + $0x38] sm:$0xff] %v393
  %433 = vst [vmem:[#allocation2 + $0x40] sm:$0xff] %v324
  %434 = vst [vmem:[#allocation2 + $0x48] sm:$0xff] %v326
  %435 = vst [vmem:[#allocation2 + $0x50] sm:$0xff] %v397
  %436 = vst [vmem:[#allocation2 + $0x58] sm:$0xff] %v399
  %437 = vst [vmem:[#allocation2 + $0x60] sm:$0xff] %v328
  %438 = vst [vmem:[#allocation2 + $0x68] sm:$0xff] %v330
  %439 = vst [vmem:[#allocation2 + $0x70] sm:$0xff] %v401
  %440 = vst [vmem:[#allocation2 + $0x78] sm:$0xff] %v403
  %441 = vst [vmem:[#allocation2 + $0x80] sm:$0xff] %v334
  %442 = vst [vmem:[#allocation2 + $0x88] sm:$0xff] %v336
  %443 = vst [vmem:[#allocation2 + $0x90] sm:$0xff] %v407
  %444 = vst [vmem:[#allocation2 + $0x98] sm:$0xff] %v409
  %445 = vst [vmem:[#allocation2 + $0xa0] sm:$0xff] %v338
  %446 = vst [vmem:[#allocation2 + $0xa8] sm:$0xff] %v340
  %447 = vst [vmem:[#allocation2 + $0xb0] sm:$0xff] %v411
  %448 = vst [vmem:[#allocation2 + $0xb8] sm:$0xff] %v413
  %449 = vst [vmem:[#allocation2 + $0xc0] sm:$0xff] %v344
  %450 = vst [vmem:[#allocation2 + $0xc8] sm:$0xff] %v346
  %451 = vst [vmem:[#allocation2 + $0xd0] sm:$0xff] %v417
  %452 = vst [vmem:[#allocation2 + $0xd8] sm:$0xff] %v419
  %453 = vst [vmem:[#allocation2 + $0xe0] sm:$0xff] %v348
  %454 = vst [vmem:[#allocation2 + $0xe8] sm:$0xff] %v350
  %455 = vst [vmem:[#allocation2 + $0xf0] sm:$0xff] %v421
  %456 = vst [vmem:[#allocation2 + $0xf8] sm:$0xff] %v423
  %v457 = vld [vmem:[%s4] sm:$0xff]
  %v458 = vld [vmem:[%s5] sm:$0xff]
  %v459 = vld [vmem:[#allocation2] sm:$0xff]
  %v460 = vld [vmem:[#allocation2 + $0x8] sm:$0xff]
  %v461 = vld [vmem:[#allocation2 + $0x10] sm:$0xff]
  %v462 = vld [vmem:[#allocation2 + $0x18] sm:$0xff]
  %v463 = vpack.c.bf16 %v457, %v457
  %v464 = vld [vmem:[%s2] sm:$0xff]
  %v465 = vld [vmem:[%s2 + $0x8] sm:$0xff]
  %v466 = vld [vmem:[%s2 + $0x10] sm:$0xff]
  %v467 = vld [vmem:[%s2 + $0x18] sm:$0xff]
  %v468 = vld [vmem:[%s2 + $0x20] sm:$0xff]
  %v469 = vld [vmem:[%s2 + $0x28] sm:$0xff]
  %v470 = vld [vmem:[%s2 + $0x30] sm:$0xff]
  %v471 = vld [vmem:[%s2 + $0x38] sm:$0xff]
  %v472 = vld [vmem:[%s2 + $0x40] sm:$0xff]
  %v473 = vld [vmem:[%s2 + $0x48] sm:$0xff]
  %v474 = vld [vmem:[%s2 + $0x50] sm:$0xff]
  %v475 = vld [vmem:[%s2 + $0x58] sm:$0xff]
  %v476 = vld [vmem:[%s2 + $0x60] sm:$0xff]
  %v477 = vld [vmem:[%s2 + $0x68] sm:$0xff]
  %v478 = vld [vmem:[%s2 + $0x70] sm:$0xff]
  %v479 = vld [vmem:[%s2 + $0x78] sm:$0xff]
  %v480 = vld [vmem:[%s2 + $0x80] sm:$0xff]
  %v481 = vld [vmem:[%s2 + $0x88] sm:$0xff]
  %v482 = vld [vmem:[%s2 + $0x90] sm:$0xff]
  %v483 = vld [vmem:[%s2 + $0x98] sm:$0xff]
  %v484 = vld [vmem:[%s2 + $0xa0] sm:$0xff]
  %v485 = vld [vmem:[%s2 + $0xa8] sm:$0xff]
  %v486 = vld [vmem:[%s2 + $0xb0] sm:$0xff]
  %v487 = vld [vmem:[%s2 + $0xb8] sm:$0xff]
  %v488 = vld [vmem:[%s2 + $0xc0] sm:$0xff]
  %v489 = vld [vmem:[%s2 + $0xc8] sm:$0xff]
  %v490 = vld [vmem:[%s2 + $0xd0] sm:$0xff]
  %v491 = vld [vmem:[%s2 + $0xd8] sm:$0xff]
  %v492 = vld [vmem:[%s2 + $0xe0] sm:$0xff]
  %v493 = vld [vmem:[%s2 + $0xe8] sm:$0xff]
  %v494 = vld [vmem:[%s2 + $0xf0] sm:$0xff]
  %v495 = vld [vmem:[%s2 + $0xf8] sm:$0xff]
  %v528 = vunpack.c.l.b16 %v464
  %v529 = vunpack.c.h.b16 %v464
  %v530 = vunpack.c.l.b16 %v465
  %v531 = vunpack.c.h.b16 %v465
  %v532 = vunpack.c.l.b16 %v466
  %v533 = vunpack.c.h.b16 %v466
  %v534 = vunpack.c.l.b16 %v467
  %v535 = vunpack.c.h.b16 %v467
  %v536 = vunpack.c.l.b16 %v468
  %v537 = vunpack.c.h.b16 %v468
  %v538 = vunpack.c.l.b16 %v469
  %v539 = vunpack.c.h.b16 %v469
  %v540 = vunpack.c.l.b16 %v470
  %v541 = vunpack.c.h.b16 %v470
  %v542 = vunpack.c.l.b16 %v471
  %v543 = vunpack.c.h.b16 %v471
  %v544 = vunpack.c.l.b16 %v472
  %v545 = vunpack.c.h.b16 %v472
  %v546 = vunpack.c.l.b16 %v473
  %v547 = vunpack.c.h.b16 %v473
  %v548 = vunpack.c.l.b16 %v474
  %v549 = vunpack.c.h.b16 %v474
  %v550 = vunpack.c.l.b16 %v475
  %v551 = vunpack.c.h.b16 %v475
  %v552 = vunpack.c.l.b16 %v476
  %v553 = vunpack.c.h.b16 %v476
  %v554 = vunpack.c.l.b16 %v477
  %v555 = vunpack.c.h.b16 %v477
  %v556 = vunpack.c.l.b16 %v478
  %v557 = vunpack.c.h.b16 %v478
  %v558 = vunpack.c.l.b16 %v479
  %v559 = vunpack.c.h.b16 %v479
  %v560 = vunpack.c.l.b16 %v480
  %v561 = vunpack.c.h.b16 %v480
  %v562 = vunpack.c.l.b16 %v481
  %v563 = vunpack.c.h.b16 %v481
  %v564 = vunpack.c.l.b16 %v482
  %v565 = vunpack.c.h.b16 %v482
  %v566 = vunpack.c.l.b16 %v483
  %v567 = vunpack.c.h.b16 %v483
  %v568 = vunpack.c.l.b16 %v484
  %v569 = vunpack.c.h.b16 %v484
  %v570 = vunpack.c.l.b16 %v485
  %v571 = vunpack.c.h.b16 %v485
  %v572 = vunpack.c.l.b16 %v486
  %v573 = vunpack.c.h.b16 %v486
  %v574 = vunpack.c.l.b16 %v487
  %v575 = vunpack.c.h.b16 %v487
  %v576 = vunpack.c.l.b16 %v488
  %v577 = vunpack.c.h.b16 %v488
  %v578 = vunpack.c.l.b16 %v489
  %v579 = vunpack.c.h.b16 %v489
  %v580 = vunpack.c.l.b16 %v490
  %v581 = vunpack.c.h.b16 %v490
  %v582 = vunpack.c.l.b16 %v491
  %v583 = vunpack.c.h.b16 %v491
  %v584 = vunpack.c.l.b16 %v492
  %v585 = vunpack.c.h.b16 %v492
  %v586 = vunpack.c.l.b16 %v493
  %v587 = vunpack.c.h.b16 %v493
  %v588 = vunpack.c.l.b16 %v494
  %v589 = vunpack.c.h.b16 %v494
  %v590 = vunpack.c.l.b16 %v495
  %v591 = vunpack.c.h.b16 %v495
  %v592 = vpack.c.b16 %v532, %v528
  %v593 = vpack.c.b16 %v533, %v529
  %v594 = vpack.c.b16 %v534, %v530
  %v595 = vpack.c.b16 %v535, %v531
  %v596 = vpack.c.b16 %v540, %v536
  %v597 = vpack.c.b16 %v541, %v537
  %v598 = vpack.c.b16 %v542, %v538
  %v599 = vpack.c.b16 %v543, %v539
  %v600 = vpack.c.b16 %v548, %v544
  %v601 = vpack.c.b16 %v549, %v545
  %v602 = vpack.c.b16 %v550, %v546
  %v603 = vpack.c.b16 %v551, %v547
  %v604 = vpack.c.b16 %v556, %v552
  %v605 = vpack.c.b16 %v557, %v553
  %v606 = vpack.c.b16 %v558, %v554
  %v607 = vpack.c.b16 %v559, %v555
  %v608 = vpack.c.b16 %v564, %v560
  %v609 = vpack.c.b16 %v565, %v561
  %v610 = vpack.c.b16 %v566, %v562
  %v611 = vpack.c.b16 %v567, %v563
  %v612 = vpack.c.b16 %v572, %v568
  %v613 = vpack.c.b16 %v573, %v569
  %v614 = vpack.c.b16 %v574, %v570
  %v615 = vpack.c.b16 %v575, %v571
  %v616 = vpack.c.b16 %v580, %v576
  %v617 = vpack.c.b16 %v581, %v577
  %v618 = vpack.c.b16 %v582, %v578
  %v619 = vpack.c.b16 %v583, %v579
  %v620 = vpack.c.b16 %v588, %v584
  %v621 = vpack.c.b16 %v589, %v585
  %v622 = vpack.c.b16 %v590, %v586
  %v623 = vpack.c.b16 %v591, %v587
  %656 = vmatprep.subr.bf16.mxu0 %v593
  %657 = vmatpush1.bf16.msra.mxu0 %v592
  %658 = vmatprep.subr.bf16.mxu0 %v597
  %659 = vmatpush1.bf16.msra.mxu0 %v596
  %660 = vmatprep.subr.bf16.mxu0 %v601
  %661 = vmatpush1.bf16.msra.mxu0 %v600
  %662 = vmatprep.subr.bf16.mxu0 %v605
  %663 = vmatpush1.bf16.msra.mxu0 %v604
  %664 = vmatprep.subr.bf16.mxu0 %v609
  %665 = vmatpush1.bf16.msra.mxu0 %v608
  %666 = vmatprep.subr.bf16.mxu0 %v613
  %667 = vmatpush1.bf16.msra.mxu0 %v612
  %668 = vmatprep.subr.bf16.mxu0 %v617
  %669 = vmatpush1.bf16.msra.mxu0 %v616
  %670 = vmatprep.subr.bf16.mxu0 %v621
  %671 = vmatpush1.bf16.msra.mxu0 %v620
  %672 = vmatprep.subr.bf16.mxu0 0
  %673 = vmatpush1.bf16.msra.mxu0 0
  %674 = vmatprep.subr.bf16.mxu0 0
  %675 = vmatpush1.bf16.msra.mxu0 0
  %676 = vmatprep.subr.bf16.mxu0 0
  %677 = vmatpush1.bf16.msra.mxu0 0
  %678 = vmatprep.subr.bf16.mxu0 0
  %679 = vmatpush1.bf16.msra.mxu0 0
  %680 = vmatprep.subr.bf16.mxu0 0
  %681 = vmatpush1.bf16.msra.mxu0 0
  %682 = vmatprep.subr.bf16.mxu0 0
  %683 = vmatpush1.bf16.msra.mxu0 0
  %684 = vmatprep.subr.bf16.mxu0 0
  %685 = vmatpush1.bf16.msra.mxu0 0
  %686 = vmatprep.subr.bf16.mxu0 0
  %687 = vmatpush1.bf16.msra.mxu0 0
  %688 = vmatprep.mubr.bf16.mxu0 0
  %689 = vmatmul.mubr.bf16.gmra.mrb[0].mxu0 %v463
  %v690 = vpop.f32.mrb[0].mxu0
  %v691 = vadd.f32 0.0, %v690
  %v692 = vpop.f32.mrb[0].mxu0
  %v693 = vadd.f32 0.0, %v692
  %v694 = vpop.f32.mrb[0].mxu0
  %v695 = vpop.f32.mrb[0].mxu0
  %696 = vdwg.mxu0
  %697 = vmatprep.subr.bf16.mxu0 %v595
  %698 = vmatpush1.bf16.msra.mxu0 %v594
  %699 = vmatprep.subr.bf16.mxu0 %v599
  %700 = vmatpush1.bf16.msra.mxu0 %v598
  %701 = vmatprep.subr.bf16.mxu0 %v603
  %702 = vmatpush1.bf16.msra.mxu0 %v602
  %703 = vmatprep.subr.bf16.mxu0 %v607
  %704 = vmatpush1.bf16.msra.mxu0 %v606
  %705 = vmatprep.subr.bf16.mxu0 %v611
  %706 = vmatpush1.bf16.msra.mxu0 %v610
  %707 = vmatprep.subr.bf16.mxu0 %v615
  %708 = vmatpush1.bf16.msra.mxu0 %v614
  %709 = vmatprep.subr.bf16.mxu0 %v619
  %710 = vmatpush1.bf16.msra.mxu0 %v618
  %711 = vmatprep.subr.bf16.mxu0 %v623
  %712 = vmatpush1.bf16.msra.mxu0 %v622
  %713 = vmatprep.subr.bf16.mxu0 0
  %714 = vmatpush1.bf16.msra.mxu0 0
  %715 = vmatprep.subr.bf16.mxu0 0
  %716 = vmatpush1.bf16.msra.mxu0 0
  %717 = vmatprep.subr.bf16.mxu0 0
  %718 = vmatpush1.bf16.msra.mxu0 0
  %719 = vmatprep.subr.bf16.mxu0 0
  %720 = vmatpush1.bf16.msra.mxu0 0
  %721 = vmatprep.subr.bf16.mxu0 0
  %722 = vmatpush1.bf16.msra.mxu0 0
  %723 = vmatprep.subr.bf16.mxu0 0
  %724 = vmatpush1.bf16.msra.mxu0 0
  %725 = vmatprep.subr.bf16.mxu0 0
  %726 = vmatpush1.bf16.msra.mxu0 0
  %727 = vmatprep.subr.bf16.mxu0 0
  %728 = vmatpush1.bf16.msra.mxu0 0
  %729 = vmatprep.mubr.bf16.mxu0 0
  %730 = vmatmul.mubr.bf16.gmra.mrb[0].mxu0 %v463
  %v731 = vpop.f32.mrb[0].mxu0
  %v732 = vadd.f32 0.0, %v731
  %v733 = vpop.f32.mrb[0].mxu0
  %v734 = vadd.f32 0.0, %v733
  %v735 = vpop.f32.mrb[0].mxu0
  %v736 = vpop.f32.mrb[0].mxu0
  %737 = vdwg.mxu0
  %v738 = vadd.f32 %v459, %v691
  %v739 = vadd.f32 %v460, %v693
  %v740 = vadd.f32 %v461, %v732
  %v741 = vadd.f32 %v462, %v734
  %v742 = vxor.u32 %v738, 2147483648
  %v743 = vxor.u32 %v739, 2147483648
  %v744 = vmul.f32 %v742, 1.442695
  %v745 = vpow.pop %v744
  %v746 = vmul.f32 %v743, 1.442695
  %v747 = vpow.pop %v746
  %v748 = vadd.f32 %v745, 1.0
  %v749 = vadd.f32 %v747, 1.0
  %v750 = vrcp.pop %v748
  %v751 = vmul.f32 1.0, %v750
  %v752 = vrcp.pop %v749
  %v753 = vmul.f32 1.0, %v752
  %v754 = vtanh.pop %v740
  %v755 = vxor.u32 %v741, 2147483648
  %v756 = vmul.f32 %v755, 1.442695
  %v757 = vpow.pop %v756
  %v758 = vadd.f32 %v757, 1.0
  %v759 = vrcp.pop %v758
  %v760 = vmul.f32 1.0, %v759
  %v761 = vmul.f32 %v753, %v458
  %v762 = vmul.f32 %v751, %v754
  %v763 = vadd.f32 %v761, %v762
  %v764 = vtanh.pop %v763
  %v765 = vmul.f32 %v760, %v764
  %766 = vst [vmem:[#allocation3] sm:$0xff] %v765
  %v767 = vld [vmem:[#allocation2 + $0x20] sm:$0xff]
  %v768 = vld [vmem:[#allocation2 + $0x28] sm:$0xff]
  %v769 = vld [vmem:[#allocation2 + $0x30] sm:$0xff]
  %v770 = vld [vmem:[#allocation2 + $0x38] sm:$0xff]
  %v771 = vpack.c.bf16 %v765, %v765
  %v772 = vld [vmem:[%s2] sm:$0xff]
  %v773 = vld [vmem:[%s2 + $0x8] sm:$0xff]
  %v774 = vld [vmem:[%s2 + $0x10] sm:$0xff]
  %v775 = vld [vmem:[%s2 + $0x18] sm:$0xff]
  %v776 = vld [vmem:[%s2 + $0x20] sm:$0xff]
  %v777 = vld [vmem:[%s2 + $0x28] sm:$0xff]
  %v778 = vld [vmem:[%s2 + $0x30] sm:$0xff]
  %v779 = vld [vmem:[%s2 + $0x38] sm:$0xff]
  %v780 = vld [vmem:[%s2 + $0x40] sm:$0xff]
  %v781 = vld [vmem:[%s2 + $0x48] sm:$0xff]
  %v782 = vld [vmem:[%s2 + $0x50] sm:$0xff]
  %v783 = vld [vmem:[%s2 + $0x58] sm:$0xff]
  %v784 = vld [vmem:[%s2 + $0x60] sm:$0xff]
  %v785 = vld [vmem:[%s2 + $0x68] sm:$0xff]
  %v786 = vld [vmem:[%s2 + $0x70] sm:$0xff]
  %v787 = vld [vmem:[%s2 + $0x78] sm:$0xff]
  %v788 = vld [vmem:[%s2 + $0x80] sm:$0xff]
  %v789 = vld [vmem:[%s2 + $0x88] sm:$0xff]
  %v790 = vld [vmem:[%s2 + $0x90] sm:$0xff]
  %v791 = vld [vmem:[%s2 + $0x98] sm:$0xff]
  %v792 = vld [vmem:[%s2 + $0xa0] sm:$0xff]
  %v793 = vld [vmem:[%s2 + $0xa8] sm:$0xff]
  %v794 = vld [vmem:[%s2 + $0xb0] sm:$0xff]
  %v795 = vld [vmem:[%s2 + $0xb8] sm:$0xff]
  %v796 = vld [vmem:[%s2 + $0xc0] sm:$0xff]
  %v797 = vld [vmem:[%s2 + $0xc8] sm:$0xff]
  %v798 = vld [vmem:[%s2 + $0xd0] sm:$0xff]
  %v799 = vld [vmem:[%s2 + $0xd8] sm:$0xff]
  %v800 = vld [vmem:[%s2 + $0xe0] sm:$0xff]
  %v801 = vld [vmem:[%s2 + $0xe8] sm:$0xff]
  %v802 = vld [vmem:[%s2 + $0xf0] sm:$0xff]
  %v803 = vld [vmem:[%s2 + $0xf8] sm:$0xff]
  %v836 = vunpack.c.l.b16 %v772
  %v837 = vunpack.c.h.b16 %v772
  %v838 = vunpack.c.l.b16 %v773
  %v839 = vunpack.c.h.b16 %v773
  %v840 = vunpack.c.l.b16 %v774
  %v841 = vunpack.c.h.b16 %v774
  %v842 = vunpack.c.l.b16 %v775
  %v843 = vunpack.c.h.b16 %v775
  %v844 = vunpack.c.l.b16 %v776
  %v845 = vunpack.c.h.b16 %v776
  %v846 = vunpack.c.l.b16 %v777
  %v847 = vunpack.c.h.b16 %v777
  %v848 = vunpack.c.l.b16 %v778
  %v849 = vunpack.c.h.b16 %v778
  %v850 = vunpack.c.l.b16 %v779
  %v851 = vunpack.c.h.b16 %v779
  %v852 = vunpack.c.l.b16 %v780
  %v853 = vunpack.c.h.b16 %v780
  %v854 = vunpack.c.l.b16 %v781
  %v855 = vunpack.c.h.b16 %v781
  %v856 = vunpack.c.l.b16 %v782
  %v857 = vunpack.c.h.b16 %v782
  %v858 = vunpack.c.l.b16 %v783
  %v859 = vunpack.c.h.b16 %v783
  %v860 = vunpack.c.l.b16 %v784
  %v861 = vunpack.c.h.b16 %v784
  %v862 = vunpack.c.l.b16 %v785
  %v863 = vunpack.c.h.b16 %v785
  %v864 = vunpack.c.l.b16 %v786
  %v865 = vunpack.c.h.b16 %v786
  %v866 = vunpack.c.l.b16 %v787
  %v867 = vunpack.c.h.b16 %v787
  %v868 = vunpack.c.l.b16 %v788
  %v869 = vunpack.c.h.b16 %v788
  %v870 = vunpack.c.l.b16 %v789
  %v871 = vunpack.c.h.b16 %v789
  %v872 = vunpack.c.l.b16 %v790
  %v873 = vunpack.c.h.b16 %v790
  %v874 = vunpack.c.l.b16 %v791
  %v875 = vunpack.c.h.b16 %v791
  %v876 = vunpack.c.l.b16 %v792
  %v877 = vunpack.c.h.b16 %v792
  %v878 = vunpack.c.l.b16 %v793
  %v879 = vunpack.c.h.b16 %v793
  %v880 = vunpack.c.l.b16 %v794
  %v881 = vunpack.c.h.b16 %v794
  %v882 = vunpack.c.l.b16 %v795
  %v883 = vunpack.c.h.b16 %v795
  %v884 = vunpack.c.l.b16 %v796
  %v885 = vunpack.c.h.b16 %v796
  %v886 = vunpack.c.l.b16 %v797
  %v887 = vunpack.c.h.b16 %v797
  %v888 = vunpack.c.l.b16 %v798
  %v889 = vunpack.c.h.b16 %v798
  %v890 = vunpack.c.l.b16 %v799
  %v891 = vunpack.c.h.b16 %v799
  %v892 = vunpack.c.l.b16 %v800
  %v893 = vunpack.c.h.b16 %v800
  %v894 = vunpack.c.l.b16 %v801
  %v895 = vunpack.c.h.b16 %v801
  %v896 = vunpack.c.l.b16 %v802
  %v897 = vunpack.c.h.b16 %v802
  %v898 = vunpack.c.l.b16 %v803
  %v899 = vunpack.c.h.b16 %v803
  %v900 = vpack.c.b16 %v840, %v836
  %v901 = vpack.c.b16 %v841, %v837
  %v902 = vpack.c.b16 %v842, %v838
  %v903 = vpack.c.b16 %v843, %v839
  %v904 = vpack.c.b16 %v848, %v844
  %v905 = vpack.c.b16 %v849, %v845
  %v906 = vpack.c.b16 %v850, %v846
  %v907 = vpack.c.b16 %v851, %v847
  %v908 = vpack.c.b16 %v856, %v852
  %v909 = vpack.c.b16 %v857, %v853
  %v910 = vpack.c.b16 %v858, %v854
  %v911 = vpack.c.b16 %v859, %v855
  %v912 = vpack.c.b16 %v864, %v860
  %v913 = vpack.c.b16 %v865, %v861
  %v914 = vpack.c.b16 %v866, %v862
  %v915 = vpack.c.b16 %v867, %v863
  %v916 = vpack.c.b16 %v872, %v868
  %v917 = vpack.c.b16 %v873, %v869
  %v918 = vpack.c.b16 %v874, %v870
  %v919 = vpack.c.b16 %v875, %v871
  %v920 = vpack.c.b16 %v880, %v876
  %v921 = vpack.c.b16 %v881, %v877
  %v922 = vpack.c.b16 %v882, %v878
  %v923 = vpack.c.b16 %v883, %v879
  %v924 = vpack.c.b16 %v888, %v884
  %v925 = vpack.c.b16 %v889, %v885
  %v926 = vpack.c.b16 %v890, %v886
  %v927 = vpack.c.b16 %v891, %v887
  %v928 = vpack.c.b16 %v896, %v892
  %v929 = vpack.c.b16 %v897, %v893
  %v930 = vpack.c.b16 %v898, %v894
  %v931 = vpack.c.b16 %v899, %v895
  %964 = vmatprep.subr.bf16.mxu0 %v901
  %965 = vmatpush1.bf16.msra.mxu0 %v900
  %966 = vmatprep.subr.bf16.mxu0 %v905
  %967 = vmatpush1.bf16.msra.mxu0 %v904
  %968 = vmatprep.subr.bf16.mxu0 %v909
  %969 = vmatpush1.bf16.msra.mxu0 %v908
  %970 = vmatprep.subr.bf16.mxu0 %v913
  %971 = vmatpush1.bf16.msra.mxu0 %v912
  %972 = vmatprep.subr.bf16.mxu0 %v917
  %973 = vmatpush1.bf16.msra.mxu0 %v916
  %974 = vmatprep.subr.bf16.mxu0 %v921
  %975 = vmatpush1.bf16.msra.mxu0 %v920
  %976 = vmatprep.subr.bf16.mxu0 %v925
  %977 = vmatpush1.bf16.msra.mxu0 %v924
  %978 = vmatprep.subr.bf16.mxu0 %v929
  %979 = vmatpush1.bf16.msra.mxu0 %v928
  %980 = vmatprep.subr.bf16.mxu0 0
  %981 = vmatpush1.bf16.msra.mxu0 0
  %982 = vmatprep.subr.bf16.mxu0 0
  %983 = vmatpush1.bf16.msra.mxu0 0
  %984 = vmatprep.subr.bf16.mxu0 0
  %985 = vmatpush1.bf16.msra.mxu0 0
  %986 = vmatprep.subr.bf16.mxu0 0
  %987 = vmatpush1.bf16.msra.mxu0 0
  %988 = vmatprep.subr.bf16.mxu0 0
  %989 = vmatpush1.bf16.msra.mxu0 0
  %990 = vmatprep.subr.bf16.mxu0 0
  %991 = vmatpush1.bf16.msra.mxu0 0
  %992 = vmatprep.subr.bf16.mxu0 0
  %993 = vmatpush1.bf16.msra.mxu0 0
  %994 = vmatprep.subr.bf16.mxu0 0
  %995 = vmatpush1.bf16.msra.mxu0 0
  %996 = vmatprep.mubr.bf16.mxu0 0
  %997 = vmatmul.mubr.bf16.gmra.mrb[0].mxu0 %v771
  %v998 = vpop.f32.mrb[0].mxu0
  %v999 = vadd.f32 0.0, %v998
  %v1000 = vpop.f32.mrb[0].mxu0
  %v1001 = vadd.f32 0.0, %v1000
  %v1002 = vpop.f32.mrb[0].mxu0
  %v1003 = vpop.f32.mrb[0].mxu0
  %1004 = vdwg.mxu0
  %1005 = vmatprep.subr.bf16.mxu0 %v903
  %1006 = vmatpush1.bf16.msra.mxu0 %v902
  %1007 = vmatprep.subr.bf16.mxu0 %v907
  %1008 = vmatpush1.bf16.msra.mxu0 %v906
  %1009 = vmatprep.subr.bf16.mxu0 %v911
  %1010 = vmatpush1.bf16.msra.mxu0 %v910
  %1011 = vmatprep.subr.bf16.mxu0 %v915
  %1012 = vmatpush1.bf16.msra.mxu0 %v914
  %1013 = vmatprep.subr.bf16.mxu0 %v919
  %1014 = vmatpush1.bf16.msra.mxu0 %v918
  %1015 = vmatprep.subr.bf16.mxu0 %v923
  %1016 = vmatpush1.bf16.msra.mxu0 %v922
  %1017 = vmatprep.subr.bf16.mxu0 %v927
  %1018 = vmatpush1.bf16.msra.mxu0 %v926
  %1019 = vmatprep.subr.bf16.mxu0 %v931
  %1020 = vmatpush1.bf16.msra.mxu0 %v930
  %1021 = vmatprep.subr.bf16.mxu0 0
  %1022 = vmatpush1.bf16.msra.mxu0 0
  %1023 = vmatprep.subr.bf16.mxu0 0
  %1024 = vmatpush1.bf16.msra.mxu0 0
  %1025 = vmatprep.subr.bf16.mxu0 0
  %1026 = vmatpush1.bf16.msra.mxu0 0
  %1027 = vmatprep.subr.bf16.mxu0 0
  %1028 = vmatpush1.bf16.msra.mxu0 0
  %1029 = vmatprep.subr.bf16.mxu0 0
  %1030 = vmatpush1.bf16.msra.mxu0 0
  %1031 = vmatprep.subr.bf16.mxu0 0
  %1032 = vmatpush1.bf16.msra.mxu0 0
  %1033 = vmatprep.subr.bf16.mxu0 0
  %1034 = vmatpush1.bf16.msra.mxu0 0
  %1035 = vmatprep.subr.bf16.mxu0 0
  %1036 = vmatpush1.bf16.msra.mxu0 0
  %1037 = vmatprep.mubr.bf16.mxu0 0
  %1038 = vmatmul.mubr.bf16.gmra.mrb[0].mxu0 %v771
  %v1039 = vpop.f32.mrb[0].mxu0
  %v1040 = vadd.f32 0.0, %v1039
  %v1041 = vpop.f32.mrb[0].mxu0
  %v1042 = vadd.f32 0.0, %v1041
  %v1043 = vpop.f32.mrb[0].mxu0
  %v1044 = vpop.f32.mrb[0].mxu0
  %1045 = vdwg.mxu0
  %v1046 = vadd.f32 %v767, %v999
  %v1047 = vadd.f32 %v768, %v1001
  %v1048 = vadd.f32 %v769, %v1040
  %v1049 = vadd.f32 %v770, %v1042
  %v1050 = vxor.u32 %v1046, 2147483648
  %v1051 = vxor.u32 %v1047, 2147483648
  %v1052 = vmul.f32 %v1050, 1.442695
  %v1053 = vpow.pop %v1052
  %v1054 = vmul.f32 %v1051, 1.442695
  %v1055 = vpow.pop %v1054
  %v1056 = vadd.f32 %v1053, 1.0
  %v1057 = vadd.f32 %v1055, 1.0
  %v1058 = vrcp.pop %v1056
  %v1059 = vmul.f32 1.0, %v1058
  %v1060 = vrcp.pop %v1057
  %v1061 = vmul.f32 1.0, %v1060
  %v1062 = vtanh.pop %v1048
  %v1063 = vxor.u32 %v1049, 2147483648
  %v1064 = vmul.f32 %v1063, 1.442695
  %v1065 = vpow.pop %v1064
  %v1066 = vadd.f32 %v1065, 1.0
  %v1067 = vrcp.pop %v1066
  %v1068 = vmul.f32 1.0, %v1067
  %v1069 = vmul.f32 %v1061, %v763
  %v1070 = vmul.f32 %v1059, %v1062
  %v1071 = vadd.f32 %v1069, %v1070
  %v1072 = vtanh.pop %v1071
  %v1073 = vmul.f32 %v1068, %v1072
  %1074 = vst [vmem:[#allocation3 + $0x8] sm:$0xff] %v1073
  %v1075 = vld [vmem:[#allocation2 + $0x40] sm:$0xff]
  %v1076 = vld [vmem:[#allocation2 + $0x48] sm:$0xff]
  %v1077 = vld [vmem:[#allocation2 + $0x50] sm:$0xff]
  %v1078 = vld [vmem:[#allocation2 + $0x58] sm:$0xff]
  %v1079 = vpack.c.bf16 %v1073, %v1073
  %v1080 = vld [vmem:[%s2] sm:$0xff]
  %v1081 = vld [vmem:[%s2 + $0x8] sm:$0xff]
  %v1082 = vld [vmem:[%s2 + $0x10] sm:$0xff]
  %v1083 = vld [vmem:[%s2 + $0x18] sm:$0xff]
  %v1084 = vld [vmem:[%s2 + $0x20] sm:$0xff]
  %v1085 = vld [vmem:[%s2 + $0x28] sm:$0xff]
  %v1086 = vld [vmem:[%s2 + $0x30] sm:$0xff]
  %v1087 = vld [vmem:[%s2 + $0x38] sm:$0xff]
  %v1088 = vld [vmem:[%s2 + $0x40] sm:$0xff]
  %v1089 = vld [vmem:[%s2 + $0x48] sm:$0xff]
  %v1090 = vld [vmem:[%s2 + $0x50] sm:$0xff]
  %v1091 = vld [vmem:[%s2 + $0x58] sm:$0xff]
  %v1092 = vld [vmem:[%s2 + $0x60] sm:$0xff]
  %v1093 = vld [vmem:[%s2 + $0x68] sm:$0xff]
  %v1094 = vld [vmem:[%s2 + $0x70] sm:$0xff]
  %v1095 = vld [vmem:[%s2 + $0x78] sm:$0xff]
  %v1096 = vld [vmem:[%s2 + $0x80] sm:$0xff]
  %v1097 = vld [vmem:[%s2 + $0x88] sm:$0xff]
  %v1098 = vld [vmem:[%s2 + $0x90] sm:$0xff]
  %v1099 = vld [vmem:[%s2 + $0x98] sm:$0xff]
  %v1100 = vld [vmem:[%s2 + $0xa0] sm:$0xff]
  %v1101 = vld [vmem:[%s2 + $0xa8] sm:$0xff]
  %v1102 = vld [vmem:[%s2 + $0xb0] sm:$0xff]
  %v1103 = vld [vmem:[%s2 + $0xb8] sm:$0xff]
  %v1104 = vld [vmem:[%s2 + $0xc0] sm:$0xff]
  %v1105 = vld [vmem:[%s2 + $0xc8] sm:$0xff]
  %v1106 = vld [vmem:[%s2 + $0xd0] sm:$0xff]
  %v1107 = vld [vmem:[%s2 + $0xd8] sm:$0xff]
  %v1108 = vld [vmem:[%s2 + $0xe0] sm:$0xff]
  %v1109 = vld [vmem:[%s2 + $0xe8] sm:$0xff]
  %v1110 = vld [vmem:[%s2 + $0xf0] sm:$0xff]
  %v1111 = vld [vmem:[%s2 + $0xf8] sm:$0xff]
  %v1144 = vunpack.c.l.b16 %v1080
  %v1145 = vunpack.c.h.b16 %v1080
  %v1146 = vunpack.c.l.b16 %v1081
  %v1147 = vunpack.c.h.b16 %v1081
  %v1148 = vunpack.c.l.b16 %v1082
  %v1149 = vunpack.c.h.b16 %v1082
  %v1150 = vunpack.c.l.b16 %v1083
  %v1151 = vunpack.c.h.b16 %v1083
  %v1152 = vunpack.c.l.b16 %v1084
  %v1153 = vunpack.c.h.b16 %v1084
  %v1154 = vunpack.c.l.b16 %v1085
  %v1155 = vunpack.c.h.b16 %v1085
  %v1156 = vunpack.c.l.b16 %v1086
  %v1157 = vunpack.c.h.b16 %v1086
  %v1158 = vunpack.c.l.b16 %v1087
  %v1159 = vunpack.c.h.b16 %v1087
  %v1160 = vunpack.c.l.b16 %v1088
  %v1161 = vunpack.c.h.b16 %v1088
  %v1162 = vunpack.c.l.b16 %v1089
  %v1163 = vunpack.c.h.b16 %v1089
  %v1164 = vunpack.c.l.b16 %v1090
  %v1165 = vunpack.c.h.b16 %v1090
  %v1166 = vunpack.c.l.b16 %v1091
  %v1167 = vunpack.c.h.b16 %v1091
  %v1168 = vunpack.c.l.b16 %v1092
  %v1169 = vunpack.c.h.b16 %v1092
  %v1170 = vunpack.c.l.b16 %v1093
  %v1171 = vunpack.c.h.b16 %v1093
  %v1172 = vunpack.c.l.b16 %v1094
  %v1173 = vunpack.c.h.b16 %v1094
  %v1174 = vunpack.c.l.b16 %v1095
  %v1175 = vunpack.c.h.b16 %v1095
  %v1176 = vunpack.c.l.b16 %v1096
  %v1177 = vunpack.c.h.b16 %v1096
  %v1178 = vunpack.c.l.b16 %v1097
  %v1179 = vunpack.c.h.b16 %v1097
  %v1180 = vunpack.c.l.b16 %v1098
  %v1181 = vunpack.c.h.b16 %v1098
  %v1182 = vunpack.c.l.b16 %v1099
  %v1183 = vunpack.c.h.b16 %v1099
  %v1184 = vunpack.c.l.b16 %v1100
  %v1185 = vunpack.c.h.b16 %v1100
  %v1186 = vunpack.c.l.b16 %v1101
  %v1187 = vunpack.c.h.b16 %v1101
  %v1188 = vunpack.c.l.b16 %v1102
  %v1189 = vunpack.c.h.b16 %v1102
  %v1190 = vunpack.c.l.b16 %v1103
  %v1191 = vunpack.c.h.b16 %v1103
  %v1192 = vunpack.c.l.b16 %v1104
  %v1193 = vunpack.c.h.b16 %v1104
  %v1194 = vunpack.c.l.b16 %v1105
  %v1195 = vunpack.c.h.b16 %v1105
  %v1196 = vunpack.c.l.b16 %v1106
  %v1197 = vunpack.c.h.b16 %v1106
  %v1198 = vunpack.c.l.b16 %v1107
  %v1199 = vunpack.c.h.b16 %v1107
  %v1200 = vunpack.c.l.b16 %v1108
  %v1201 = vunpack.c.h.b16 %v1108
  %v1202 = vunpack.c.l.b16 %v1109
  %v1203 = vunpack.c.h.b16 %v1109
  %v1204 = vunpack.c.l.b16 %v1110
  %v1205 = vunpack.c.h.b16 %v1110
  %v1206 = vunpack.c.l.b16 %v1111
  %v1207 = vunpack.c.h.b16 %v1111
  %v1208 = vpack.c.b16 %v1148, %v1144
  %v1209 = vpack.c.b16 %v1149, %v1145
  %v1210 = vpack.c.b16 %v1150, %v1146
  %v1211 = vpack.c.b16 %v1151, %v1147
  %v1212 = vpack.c.b16 %v1156, %v1152
  %v1213 = vpack.c.b16 %v1157, %v1153
  %v1214 = vpack.c.b16 %v1158, %v1154
  %v1215 = vpack.c.b16 %v1159, %v1155
  %v1216 = vpack.c.b16 %v1164, %v1160
  %v1217 = vpack.c.b16 %v1165, %v1161
  %v1218 = vpack.c.b16 %v1166, %v1162
  %v1219 = vpack.c.b16 %v1167, %v1163
  %v1220 = vpack.c.b16 %v1172, %v1168
  %v1221 = vpack.c.b16 %v1173, %v1169
  %v1222 = vpack.c.b16 %v1174, %v1170
  %v1223 = vpack.c.b16 %v1175, %v1171
  %v1224 = vpack.c.b16 %v1180, %v1176
  %v1225 = vpack.c.b16 %v1181, %v1177
  %v1226 = vpack.c.b16 %v1182, %v1178
  %v1227 = vpack.c.b16 %v1183, %v1179
  %v1228 = vpack.c.b16 %v1188, %v1184
  %v1229 = vpack.c.b16 %v1189, %v1185
  %v1230 = vpack.c.b16 %v1190, %v1186
  %v1231 = vpack.c.b16 %v1191, %v1187
  %v1232 = vpack.c.b16 %v1196, %v1192
  %v1233 = vpack.c.b16 %v1197, %v1193
  %v1234 = vpack.c.b16 %v1198, %v1194
  %v1235 = vpack.c.b16 %v1199, %v1195
  %v1236 = vpack.c.b16 %v1204, %v1200
  %v1237 = vpack.c.b16 %v1205, %v1201
  %v1238 = vpack.c.b16 %v1206, %v1202
  %v1239 = vpack.c.b16 %v1207, %v1203
  %1272 = vmatprep.subr.bf16.mxu0 %v1209
  %1273 = vmatpush1.bf16.msra.mxu0 %v1208
  %1274 = vmatprep.subr.bf16.mxu0 %v1213
  %1275 = vmatpush1.bf16.msra.mxu0 %v1212
  %1276 = vmatprep.subr.bf16.mxu0 %v1217
  %1277 = vmatpush1.bf16.msra.mxu0 %v1216
  %1278 = vmatprep.subr.bf16.mxu0 %v1221
  %1279 = vmatpush1.bf16.msra.mxu0 %v1220
  %1280 = vmatprep.subr.bf16.mxu0 %v1225
  %1281 = vmatpush1.bf16.msra.mxu0 %v1224
  %1282 = vmatprep.subr.bf16.mxu0 %v1229
  %1283 = vmatpush1.bf16.msra.mxu0 %v1228
  %1284 = vmatprep.subr.bf16.mxu0 %v1233
  %1285 = vmatpush1.bf16.msra.mxu0 %v1232
  %1286 = vmatprep.subr.bf16.mxu0 %v1237
  %1287 = vmatpush1.bf16.msra.mxu0 %v1236
  %1288 = vmatprep.subr.bf16.mxu0 0
  %1289 = vmatpush1.bf16.msra.mxu0 0
  %1290 = vmatprep.subr.bf16.mxu0 0
  %1291 = vmatpush1.bf16.msra.mxu0 0
  %1292 = vmatprep.subr.bf16.mxu0 0
  %1293 = vmatpush1.bf16.msra.mxu0 0
  %1294 = vmatprep.subr.bf16.mxu0 0
  %1295 = vmatpush1.bf16.msra.mxu0 0
  %1296 = vmatprep.subr.bf16.mxu0 0
  %1297 = vmatpush1.bf16.msra.mxu0 0
  %1298 = vmatprep.subr.bf16.mxu0 0
  %1299 = vmatpush1.bf16.msra.mxu0 0
  %1300 = vmatprep.subr.bf16.mxu0 0
  %1301 = vmatpush1.bf16.msra.mxu0 0
  %1302 = vmatprep.subr.bf16.mxu0 0
  %1303 = vmatpush1.bf16.msra.mxu0 0
  %1304 = vmatprep.mubr.bf16.mxu0 0
  %1305 = vmatmul.mubr.bf16.gmra.mrb[0].mxu0 %v1079
  %v1306 = vpop.f32.mrb[0].mxu0
  %v1307 = vadd.f32 0.0, %v1306
  %v1308 = vpop.f32.mrb[0].mxu0
  %v1309 = vadd.f32 0.0, %v1308
  %v1310 = vpop.f32.mrb[0].mxu0
  %v1311 = vpop.f32.mrb[0].mxu0
  %1312 = vdwg.mxu0
  %1313 = vmatprep.subr.bf16.mxu0 %v1211
  %1314 = vmatpush1.bf16.msra.mxu0 %v1210
  %1315 = vmatprep.subr.bf16.mxu0 %v1215
  %1316 = vmatpush1.bf16.msra.mxu0 %v1214
  %1317 = vmatprep.subr.bf16.mxu0 %v1219
  %1318 = vmatpush1.bf16.msra.mxu0 %v1218
  %1319 = vmatprep.subr.bf16.mxu0 %v1223
  %1320 = vmatpush1.bf16.msra.mxu0 %v1222
  %1321 = vmatprep.subr.bf16.mxu0 %v1227
  %1322 = vmatpush1.bf16.msra.mxu0 %v1226
  %1323 = vmatprep.subr.bf16.mxu0 %v1231
  %1324 = vmatpush1.bf16.msra.mxu0 %v1230
  %1325 = vmatprep.subr.bf16.mxu0 %v1235
  %1326 = vmatpush1.bf16.msra.mxu0 %v1234
  %1327 = vmatprep.subr.bf16.mxu0 %v1239
  %1328 = vmatpush1.bf16.msra.mxu0 %v1238
  %1329 = vmatprep.subr.bf16.mxu0 0
  %1330 = vmatpush1.bf16.msra.mxu0 0
  %1331 = vmatprep.subr.bf16.mxu0 0
  %1332 = vmatpush1.bf16.msra.mxu0 0
  %1333 = vmatprep.subr.bf16.mxu0 0
  %1334 = vmatpush1.bf16.msra.mxu0 0
  %1335 = vmatprep.subr.bf16.mxu0 0
  %1336 = vmatpush1.bf16.msra.mxu0 0
  %1337 = vmatprep.subr.bf16.mxu0 0
  %1338 = vmatpush1.bf16.msra.mxu0 0
  %1339 = vmatprep.subr.bf16.mxu0 0
  %1340 = vmatpush1.bf16.msra.mxu0 0
  %1341 = vmatprep.subr.bf16.mxu0 0
  %1342 = vmatpush1.bf16.msra.mxu0 0
  %1343 = vmatprep.subr.bf16.mxu0 0
  %1344 = vmatpush1.bf16.msra.mxu0 0
  %1345 = vmatprep.mubr.bf16.mxu0 0
  %1346 = vmatmul.mubr.bf16.gmra.mrb[0].mxu0 %v1079
  %v1347 = vpop.f32.mrb[0].mxu0
  %v1348 = vadd.f32 0.0, %v1347
  %v1349 = vpop.f32.mrb[0].mxu0
  %v1350 = vadd.f32 0.0, %v1349
  %v1351 = vpop.f32.mrb[0].mxu0
  %v1352 = vpop.f32.mrb[0].mxu0
  %1353 = vdwg.mxu0
  %v1354 = vadd.f32 %v1075, %v1307
  %v1355 = vadd.f32 %v1076, %v1309
  %v1356 = vadd.f32 %v1077, %v1348
  %v1357 = vadd.f32 %v1078, %v1350
  %v1358 = vxor.u32 %v1354, 2147483648
  %v1359 = vxor.u32 %v1355, 2147483648
  %v1360 = vmul.f32 %v1358, 1.442695
  %v1361 = vpow.pop %v1360
  %v1362 = vmul.f32 %v1359, 1.442695
  %v1363 = vpow.pop %v1362
  %v1364 = vadd.f32 %v1361, 1.0
  %v1365 = vadd.f32 %v1363, 1.0
  %v1366 = vrcp.pop %v1364
  %v1367 = vmul.f32 1.0, %v1366
  %v1368 = vrcp.pop %v1365
  %v1369 = vmul.f32 1.0, %v1368
  %v1370 = vtanh.pop %v1356
  %v1371 = vxor.u32 %v1357, 2147483648
  %v1372 = vmul.f32 %v1371, 1.442695
  %v1373 = vpow.pop %v1372
  %v1374 = vadd.f32 %v1373, 1.0
  %v1375 = vrcp.pop %v1374
  %v1376 = vmul.f32 1.0, %v1375
  %v1377 = vmul.f32 %v1369, %v1071
  %v1378 = vmul.f32 %v1367, %v1370
  %v1379 = vadd.f32 %v1377, %v1378
  %v1380 = vtanh.pop %v1379
  %v1381 = vmul.f32 %v1376, %v1380
  %1382 = vst [vmem:[#allocation3 + $0x10] sm:$0xff] %v1381
  %v1383 = vld [vmem:[#allocation2 + $0x60] sm:$0xff]
  %v1384 = vld [vmem:[#allocation2 + $0x68] sm:$0xff]
  %v1385 = vld [vmem:[#allocation2 + $0x70] sm:$0xff]
  %v1386 = vld [vmem:[#allocation2 + $0x78] sm:$0xff]
  %v1387 = vpack.c.bf16 %v1381, %v1381
  %v1388 = vld [vmem:[%s2] sm:$0xff]
  %v1389 = vld [vmem:[%s2 + $0x8] sm:$0xff]
  %v1390 = vld [vmem:[%s2 + $0x10] sm:$0xff]
  %v1391 = vld [vmem:[%s2 + $0x18] sm:$0xff]
  %v1392 = vld [vmem:[%s2 + $0x20] sm:$0xff]
  %v1393 = vld [vmem:[%s2 + $0x28] sm:$0xff]
  %v1394 = vld [vmem:[%s2 + $0x30] sm:$0xff]
  %v1395 = vld [vmem:[%s2 + $0x38] sm:$0xff]
  %v1396 = vld [vmem:[%s2 + $0x40] sm:$0xff]
  %v1397 = vld [vmem:[%s2 + $0x48] sm:$0xff]
  %v1398 = vld [vmem:[%s2 + $0x50] sm:$0xff]
  %v1399 = vld [vmem:[%s2 + $0x58] sm:$0xff]
  %v1400 = vld [vmem:[%s2 + $0x60] sm:$0xff]
  %v1401 = vld [vmem:[%s2 + $0x68] sm:$0xff]
  %v1402 = vld [vmem:[%s2 + $0x70] sm:$0xff]
  %v1403 = vld [vmem:[%s2 + $0x78] sm:$0xff]
  %v1404 = vld [vmem:[%s2 + $0x80] sm:$0xff]
  %v1405 = vld [vmem:[%s2 + $0x88] sm:$0xff]
  %v1406 = vld [vmem:[%s2 + $0x90] sm:$0xff]
  %v1407 = vld [vmem:[%s2 + $0x98] sm:$0xff]
  %v1408 = vld [vmem:[%s2 + $0xa0] sm:$0xff]
  %v1409 = vld [vmem:[%s2 + $0xa8] sm:$0xff]
  %v1410 = vld [vmem:[%s2 + $0xb0] sm:$0xff]
  %v1411 = vld [vmem:[%s2 + $0xb8] sm:$0xff]
  %v1412 = vld [vmem:[%s2 + $0xc0] sm:$0xff]
  %v1413 = vld [vmem:[%s2 + $0xc8] sm:$0xff]
  %v1414 = vld [vmem:[%s2 + $0xd0] sm:$0xff]
  %v1415 = vld [vmem:[%s2 + $0xd8] sm:$0xff]
  %v1416 = vld [vmem:[%s2 + $0xe0] sm:$0xff]
  %v1417 = vld [vmem:[%s2 + $0xe8] sm:$0xff]
  %v1418 = vld [vmem:[%s2 + $0xf0] sm:$0xff]
  %v1419 = vld [vmem:[%s2 + $0xf8] sm:$0xff]
  %v1452 = vunpack.c.l.b16 %v1388
  %v1453 = vunpack.c.h.b16 %v1388
  %v1454 = vunpack.c.l.b16 %v1389
  %v1455 = vunpack.c.h.b16 %v1389
  %v1456 = vunpack.c.l.b16 %v1390
  %v1457 = vunpack.c.h.b16 %v1390
  %v1458 = vunpack.c.l.b16 %v1391
  %v1459 = vunpack.c.h.b16 %v1391
  %v1460 = vunpack.c.l.b16 %v1392
  %v1461 = vunpack.c.h.b16 %v1392
  %v1462 = vunpack.c.l.b16 %v1393
  %v1463 = vunpack.c.h.b16 %v1393
  %v1464 = vunpack.c.l.b16 %v1394
  %v1465 = vunpack.c.h.b16 %v1394
  %v1466 = vunpack.c.l.b16 %v1395
  %v1467 = vunpack.c.h.b16 %v1395
  %v1468 = vunpack.c.l.b16 %v1396
  %v1469 = vunpack.c.h.b16 %v1396
  %v1470 = vunpack.c.l.b16 %v1397
  %v1471 = vunpack.c.h.b16 %v1397
  %v1472 = vunpack.c.l.b16 %v1398
  %v1473 = vunpack.c.h.b16 %v1398
  %v1474 = vunpack.c.l.b16 %v1399
  %v1475 = vunpack.c.h.b16 %v1399
  %v1476 = vunpack.c.l.b16 %v1400
  %v1477 = vunpack.c.h.b16 %v1400
  %v1478 = vunpack.c.l.b16 %v1401
  %v1479 = vunpack.c.h.b16 %v1401
  %v1480 = vunpack.c.l.b16 %v1402
  %v1481 = vunpack.c.h.b16 %v1402
  %v1482 = vunpack.c.l.b16 %v1403
  %v1483 = vunpack.c.h.b16 %v1403
  %v1484 = vunpack.c.l.b16 %v1404
  %v1485 = vunpack.c.h.b16 %v1404
  %v1486 = vunpack.c.l.b16 %v1405
  %v1487 = vunpack.c.h.b16 %v1405
  %v1488 = vunpack.c.l.b16 %v1406
  %v1489 = vunpack.c.h.b16 %v1406
  %v1490 = vunpack.c.l.b16 %v1407
  %v1491 = vunpack.c.h.b16 %v1407
  %v1492 = vunpack.c.l.b16 %v1408
  %v1493 = vunpack.c.h.b16 %v1408
  %v1494 = vunpack.c.l.b16 %v1409
  %v1495 = vunpack.c.h.b16 %v1409
  %v1496 = vunpack.c.l.b16 %v1410
  %v1497 = vunpack.c.h.b16 %v1410
  %v1498 = vunpack.c.l.b16 %v1411
  %v1499 = vunpack.c.h.b16 %v1411
  %v1500 = vunpack.c.l.b16 %v1412
  %v1501 = vunpack.c.h.b16 %v1412
  %v1502 = vunpack.c.l.b16 %v1413
  %v1503 = vunpack.c.h.b16 %v1413
  %v1504 = vunpack.c.l.b16 %v1414
  %v1505 = vunpack.c.h.b16 %v1414
  %v1506 = vunpack.c.l.b16 %v1415
  %v1507 = vunpack.c.h.b16 %v1415
  %v1508 = vunpack.c.l.b16 %v1416
  %v1509 = vunpack.c.h.b16 %v1416
  %v1510 = vunpack.c.l.b16 %v1417
  %v1511 = vunpack.c.h.b16 %v1417
  %v1512 = vunpack.c.l.b16 %v1418
  %v1513 = vunpack.c.h.b16 %v1418
  %v1514 = vunpack.c.l.b16 %v1419
  %v1515 = vunpack.c.h.b16 %v1419
  %v1516 = vpack.c.b16 %v1456, %v1452
  %v1517 = vpack.c.b16 %v1457, %v1453
  %v1518 = vpack.c.b16 %v1458, %v1454
  %v1519 = vpack.c.b16 %v1459, %v1455
  %v1520 = vpack.c.b16 %v1464, %v1460
  %v1521 = vpack.c.b16 %v1465, %v1461
  %v1522 = vpack.c.b16 %v1466, %v1462
  %v1523 = vpack.c.b16 %v1467, %v1463
  %v1524 = vpack.c.b16 %v1472, %v1468
  %v1525 = vpack.c.b16 %v1473, %v1469
  %v1526 = vpack.c.b16 %v1474, %v1470
  %v1527 = vpack.c.b16 %v1475, %v1471
  %v1528 = vpack.c.b16 %v1480, %v1476
  %v1529 = vpack.c.b16 %v1481, %v1477
  %v1530 = vpack.c.b16 %v1482, %v1478
  %v1531 = vpack.c.b16 %v1483, %v1479
  %v1532 = vpack.c.b16 %v1488, %v1484
  %v1533 = vpack.c.b16 %v1489, %v1485
  %v1534 = vpack.c.b16 %v1490, %v1486
  %v1535 = vpack.c.b16 %v1491, %v1487
  %v1536 = vpack.c.b16 %v1496, %v1492
  %v1537 = vpack.c.b16 %v1497, %v1493
  %v1538 = vpack.c.b16 %v1498, %v1494
  %v1539 = vpack.c.b16 %v1499, %v1495
  %v1540 = vpack.c.b16 %v1504, %v1500
  %v1541 = vpack.c.b16 %v1505, %v1501
  %v1542 = vpack.c.b16 %v1506, %v1502
  %v1543 = vpack.c.b16 %v1507, %v1503
  %v1544 = vpack.c.b16 %v1512, %v1508
  %v1545 = vpack.c.b16 %v1513, %v1509
  %v1546 = vpack.c.b16 %v1514, %v1510
  %v1547 = vpack.c.b16 %v1515, %v1511
  %1580 = vmatprep.subr.bf16.mxu0 %v1517
  %1581 = vmatpush1.bf16.msra.mxu0 %v1516
  %1582 = vmatprep.subr.bf16.mxu0 %v1521
  %1583 = vmatpush1.bf16.msra.mxu0 %v1520
  %1584 = vmatprep.subr.bf16.mxu0 %v1525
  %1585 = vmatpush1.bf16.msra.mxu0 %v1524
  %1586 = vmatprep.subr.bf16.mxu0 %v1529
  %1587 = vmatpush1.bf16.msra.mxu0 %v1528
  %1588 = vmatprep.subr.bf16.mxu0 %v1533
  %1589 = vmatpush1.bf16.msra.mxu0 %v1532
  %1590 = vmatprep.subr.bf16.mxu0 %v1537
  %1591 = vmatpush1.bf16.msra.mxu0 %v1536
  %1592 = vmatprep.subr.bf16.mxu0 %v1541
  %1593 = vmatpush1.bf16.msra.mxu0 %v1540
  %1594 = vmatprep.subr.bf16.mxu0 %v1545
  %1595 = vmatpush1.bf16.msra.mxu0 %v1544
  %1596 = vmatprep.subr.bf16.mxu0 0
  %1597 = vmatpush1.bf16.msra.mxu0 0
  %1598 = vmatprep.subr.bf16.mxu0 0
  %1599 = vmatpush1.bf16.msra.mxu0 0
  %1600 = vmatprep.subr.bf16.mxu0 0
  %1601 = vmatpush1.bf16.msra.mxu0 0
  %1602 = vmatprep.subr.bf16.mxu0 0
  %1603 = vmatpush1.bf16.msra.mxu0 0
  %1604 = vmatprep.subr.bf16.mxu0 0
  %1605 = vmatpush1.bf16.msra.mxu0 0
  %1606 = vmatprep.subr.bf16.mxu0 0
  %1607 = vmatpush1.bf16.msra.mxu0 0
  %1608 = vmatprep.subr.bf16.mxu0 0
  %1609 = vmatpush1.bf16.msra.mxu0 0
  %1610 = vmatprep.subr.bf16.mxu0 0
  %1611 = vmatpush1.bf16.msra.mxu0 0
  %1612 = vmatprep.mubr.bf16.mxu0 0
  %1613 = vmatmul.mubr.bf16.gmra.mrb[0].mxu0 %v1387
  %v1614 = vpop.f32.mrb[0].mxu0
  %v1615 = vadd.f32 0.0, %v1614
  %v1616 = vpop.f32.mrb[0].mxu0
  %v1617 = vadd.f32 0.0, %v1616
  %v1618 = vpop.f32.mrb[0].mxu0
  %v1619 = vpop.f32.mrb[0].mxu0
  %1620 = vdwg.mxu0
  %1621 = vmatprep.subr.bf16.mxu0 %v1519
  %1622 = vmatpush1.bf16.msra.mxu0 %v1518
  %1623 = vmatprep.subr.bf16.mxu0 %v1523
  %1624 = vmatpush1.bf16.msra.mxu0 %v1522
  %1625 = vmatprep.subr.bf16.mxu0 %v1527
  %1626 = vmatpush1.bf16.msra.mxu0 %v1526
  %1627 = vmatprep.subr.bf16.mxu0 %v1531
  %1628 = vmatpush1.bf16.msra.mxu0 %v1530
  %1629 = vmatprep.subr.bf16.mxu0 %v1535
  %1630 = vmatpush1.bf16.msra.mxu0 %v1534
  %1631 = vmatprep.subr.bf16.mxu0 %v1539
  %1632 = vmatpush1.bf16.msra.mxu0 %v1538
  %1633 = vmatprep.subr.bf16.mxu0 %v1543
  %1634 = vmatpush1.bf16.msra.mxu0 %v1542
  %1635 = vmatprep.subr.bf16.mxu0 %v1547
  %1636 = vmatpush1.bf16.msra.mxu0 %v1546
  %1637 = vmatprep.subr.bf16.mxu0 0
  %1638 = vmatpush1.bf16.msra.mxu0 0
  %1639 = vmatprep.subr.bf16.mxu0 0
  %1640 = vmatpush1.bf16.msra.mxu0 0
  %1641 = vmatprep.subr.bf16.mxu0 0
  %1642 = vmatpush1.bf16.msra.mxu0 0
  %1643 = vmatprep.subr.bf16.mxu0 0
  %1644 = vmatpush1.bf16.msra.mxu0 0
  %1645 = vmatprep.subr.bf16.mxu0 0
  %1646 = vmatpush1.bf16.msra.mxu0 0
  %1647 = vmatprep.subr.bf16.mxu0 0
  %1648 = vmatpush1.bf16.msra.mxu0 0
  %1649 = vmatprep.subr.bf16.mxu0 0
  %1650 = vmatpush1.bf16.msra.mxu0 0
  %1651 = vmatprep.subr.bf16.mxu0 0
  %1652 = vmatpush1.bf16.msra.mxu0 0
  %1653 = vmatprep.mubr.bf16.mxu0 0
  %1654 = vmatmul.mubr.bf16.gmra.mrb[0].mxu0 %v1387
  %v1655 = vpop.f32.mrb[0].mxu0
  %v1656 = vadd.f32 0.0, %v1655
  %v1657 = vpop.f32.mrb[0].mxu0
  %v1658 = vadd.f32 0.0, %v1657
  %v1659 = vpop.f32.mrb[0].mxu0
  %v1660 = vpop.f32.mrb[0].mxu0
  %1661 = vdwg.mxu0
  %v1662 = vadd.f32 %v1383, %v1615
  %v1663 = vadd.f32 %v1384, %v1617
  %v1664 = vadd.f32 %v1385, %v1656
  %v1665 = vadd.f32 %v1386, %v1658
  %v1666 = vxor.u32 %v1662, 2147483648
  %v1667 = vxor.u32 %v1663, 2147483648
  %v1668 = vmul.f32 %v1666, 1.442695
  %v1669 = vpow.pop %v1668
  %v1670 = vmul.f32 %v1667, 1.442695
  %v1671 = vpow.pop %v1670
  %v1672 = vadd.f32 %v1669, 1.0
  %v1673 = vadd.f32 %v1671, 1.0
  %v1674 = vrcp.pop %v1672
  %v1675 = vmul.f32 1.0, %v1674
  %v1676 = vrcp.pop %v1673
  %v1677 = vmul.f32 1.0, %v1676
  %v1678 = vtanh.pop %v1664
  %v1679 = vxor.u32 %v1665, 2147483648
  %v1680 = vmul.f32 %v1679, 1.442695
  %v1681 = vpow.pop %v1680
  %v1682 = vadd.f32 %v1681, 1.0
  %v1683 = vrcp.pop %v1682
  %v1684 = vmul.f32 1.0, %v1683
  %v1685 = vmul.f32 %v1677, %v1379
  %v1686 = vmul.f32 %v1675, %v1678
  %v1687 = vadd.f32 %v1685, %v1686
  %v1688 = vtanh.pop %v1687
  %v1689 = vmul.f32 %v1684, %v1688
  %1690 = vst [vmem:[#allocation3 + $0x18] sm:$0xff] %v1689
  %v1691 = vld [vmem:[#allocation2 + $0x80] sm:$0xff]
  %v1692 = vld [vmem:[#allocation2 + $0x88] sm:$0xff]
  %v1693 = vld [vmem:[#allocation2 + $0x90] sm:$0xff]
  %v1694 = vld [vmem:[#allocation2 + $0x98] sm:$0xff]
  %v1695 = vpack.c.bf16 %v1689, %v1689
  %v1696 = vld [vmem:[%s2] sm:$0xff]
  %v1697 = vld [vmem:[%s2 + $0x8] sm:$0xff]
  %v1698 = vld [vmem:[%s2 + $0x10] sm:$0xff]
  %v1699 = vld [vmem:[%s2 + $0x18] sm:$0xff]
  %v1700 = vld [vmem:[%s2 + $0x20] sm:$0xff]
  %v1701 = vld [vmem:[%s2 + $0x28] sm:$0xff]
  %v1702 = vld [vmem:[%s2 + $0x30] sm:$0xff]
  %v1703 = vld [vmem:[%s2 + $0x38] sm:$0xff]
  %v1704 = vld [vmem:[%s2 + $0x40] sm:$0xff]
  %v1705 = vld [vmem:[%s2 + $0x48] sm:$0xff]
  %v1706 = vld [vmem:[%s2 + $0x50] sm:$0xff]
  %v1707 = vld [vmem:[%s2 + $0x58] sm:$0xff]
  %v1708 = vld [vmem:[%s2 + $0x60] sm:$0xff]
  %v1709 = vld [vmem:[%s2 + $0x68] sm:$0xff]
  %v1710 = vld [vmem:[%s2 + $0x70] sm:$0xff]
  %v1711 = vld [vmem:[%s2 + $0x78] sm:$0xff]
  %v1712 = vld [vmem:[%s2 + $0x80] sm:$0xff]
  %v1713 = vld [vmem:[%s2 + $0x88] sm:$0xff]
  %v1714 = vld [vmem:[%s2 + $0x90] sm:$0xff]
  %v1715 = vld [vmem:[%s2 + $0x98] sm:$0xff]
  %v1716 = vld [vmem:[%s2 + $0xa0] sm:$0xff]
  %v1717 = vld [vmem:[%s2 + $0xa8] sm:$0xff]
  %v1718 = vld [vmem:[%s2 + $0xb0] sm:$0xff]
  %v1719 = vld [vmem:[%s2 + $0xb8] sm:$0xff]
  %v1720 = vld [vmem:[%s2 + $0xc0] sm:$0xff]
  %v1721 = vld [vmem:[%s2 + $0xc8] sm:$0xff]
  %v1722 = vld [vmem:[%s2 + $0xd0] sm:$0xff]
  %v1723 = vld [vmem:[%s2 + $0xd8] sm:$0xff]
  %v1724 = vld [vmem:[%s2 + $0xe0] sm:$0xff]
  %v1725 = vld [vmem:[%s2 + $0xe8] sm:$0xff]
  %v1726 = vld [vmem:[%s2 + $0xf0] sm:$0xff]
  %v1727 = vld [vmem:[%s2 + $0xf8] sm:$0xff]
  %v1760 = vunpack.c.l.b16 %v1696
  %v1761 = vunpack.c.h.b16 %v1696
  %v1762 = vunpack.c.l.b16 %v1697
  %v1763 = vunpack.c.h.b16 %v1697
  %v1764 = vunpack.c.l.b16 %v1698
  %v1765 = vunpack.c.h.b16 %v1698
  %v1766 = vunpack.c.l.b16 %v1699
  %v1767 = vunpack.c.h.b16 %v1699
  %v1768 = vunpack.c.l.b16 %v1700
  %v1769 = vunpack.c.h.b16 %v1700
  %v1770 = vunpack.c.l.b16 %v1701
  %v1771 = vunpack.c.h.b16 %v1701
  %v1772 = vunpack.c.l.b16 %v1702
  %v1773 = vunpack.c.h.b16 %v1702
  %v1774 = vunpack.c.l.b16 %v1703
  %v1775 = vunpack.c.h.b16 %v1703
  %v1776 = vunpack.c.l.b16 %v1704
  %v1777 = vunpack.c.h.b16 %v1704
  %v1778 = vunpack.c.l.b16 %v1705
  %v1779 = vunpack.c.h.b16 %v1705
  %v1780 = vunpack.c.l.b16 %v1706
  %v1781 = vunpack.c.h.b16 %v1706
  %v1782 = vunpack.c.l.b16 %v1707
  %v1783 = vunpack.c.h.b16 %v1707
  %v1784 = vunpack.c.l.b16 %v1708
  %v1785 = vunpack.c.h.b16 %v1708
  %v1786 = vunpack.c.l.b16 %v1709
  %v1787 = vunpack.c.h.b16 %v1709
  %v1788 = vunpack.c.l.b16 %v1710
  %v1789 = vunpack.c.h.b16 %v1710
  %v1790 = vunpack.c.l.b16 %v1711
  %v1791 = vunpack.c.h.b16 %v1711
  %v1792 = vunpack.c.l.b16 %v1712
  %v1793 = vunpack.c.h.b16 %v1712
  %v1794 = vunpack.c.l.b16 %v1713
  %v1795 = vunpack.c.h.b16 %v1713
  %v1796 = vunpack.c.l.b16 %v1714
  %v1797 = vunpack.c.h.b16 %v1714
  %v1798 = vunpack.c.l.b16 %v1715
  %v1799 = vunpack.c.h.b16 %v1715
  %v1800 = vunpack.c.l.b16 %v1716
  %v1801 = vunpack.c.h.b16 %v1716
  %v1802 = vunpack.c.l.b16 %v1717
  %v1803 = vunpack.c.h.b16 %v1717
  %v1804 = vunpack.c.l.b16 %v1718
  %v1805 = vunpack.c.h.b16 %v1718
  %v1806 = vunpack.c.l.b16 %v1719
  %v1807 = vunpack.c.h.b16 %v1719
  %v1808 = vunpack.c.l.b16 %v1720
  %v1809 = vunpack.c.h.b16 %v1720
  %v1810 = vunpack.c.l.b16 %v1721
  %v1811 = vunpack.c.h.b16 %v1721
  %v1812 = vunpack.c.l.b16 %v1722
  %v1813 = vunpack.c.h.b16 %v1722
  %v1814 = vunpack.c.l.b16 %v1723
  %v1815 = vunpack.c.h.b16 %v1723
  %v1816 = vunpack.c.l.b16 %v1724
  %v1817 = vunpack.c.h.b16 %v1724
  %v1818 = vunpack.c.l.b16 %v1725
  %v1819 = vunpack.c.h.b16 %v1725
  %v1820 = vunpack.c.l.b16 %v1726
  %v1821 = vunpack.c.h.b16 %v1726
  %v1822 = vunpack.c.l.b16 %v1727
  %v1823 = vunpack.c.h.b16 %v1727
  %v1824 = vpack.c.b16 %v1764, %v1760
  %v1825 = vpack.c.b16 %v1765, %v1761
  %v1826 = vpack.c.b16 %v1766, %v1762
  %v1827 = vpack.c.b16 %v1767, %v1763
  %v1828 = vpack.c.b16 %v1772, %v1768
  %v1829 = vpack.c.b16 %v1773, %v1769
  %v1830 = vpack.c.b16 %v1774, %v1770
  %v1831 = vpack.c.b16 %v1775, %v1771
  %v1832 = vpack.c.b16 %v1780, %v1776
  %v1833 = vpack.c.b16 %v1781, %v1777
  %v1834 = vpack.c.b16 %v1782, %v1778
  %v1835 = vpack.c.b16 %v1783, %v1779
  %v1836 = vpack.c.b16 %v1788, %v1784
  %v1837 = vpack.c.b16 %v1789, %v1785
  %v1838 = vpack.c.b16 %v1790, %v1786
  %v1839 = vpack.c.b16 %v1791, %v1787
  %v1840 = vpack.c.b16 %v1796, %v1792
  %v1841 = vpack.c.b16 %v1797, %v1793
  %v1842 = vpack.c.b16 %v1798, %v1794
  %v1843 = vpack.c.b16 %v1799, %v1795
  %v1844 = vpack.c.b16 %v1804, %v1800
  %v1845 = vpack.c.b16 %v1805, %v1801
  %v1846 = vpack.c.b16 %v1806, %v1802
  %v1847 = vpack.c.b16 %v1807, %v1803
  %v1848 = vpack.c.b16 %v1812, %v1808
  %v1849 = vpack.c.b16 %v1813, %v1809
  %v1850 = vpack.c.b16 %v1814, %v1810
  %v1851 = vpack.c.b16 %v1815, %v1811
  %v1852 = vpack.c.b16 %v1820, %v1816
  %v1853 = vpack.c.b16 %v1821, %v1817
  %v1854 = vpack.c.b16 %v1822, %v1818
  %v1855 = vpack.c.b16 %v1823, %v1819
  %1888 = vmatprep.subr.bf16.mxu0 %v1825
  %1889 = vmatpush1.bf16.msra.mxu0 %v1824
  %1890 = vmatprep.subr.bf16.mxu0 %v1829
  %1891 = vmatpush1.bf16.msra.mxu0 %v1828
  %1892 = vmatprep.subr.bf16.mxu0 %v1833
  %1893 = vmatpush1.bf16.msra.mxu0 %v1832
  %1894 = vmatprep.subr.bf16.mxu0 %v1837
  %1895 = vmatpush1.bf16.msra.mxu0 %v1836
  %1896 = vmatprep.subr.bf16.mxu0 %v1841
  %1897 = vmatpush1.bf16.msra.mxu0 %v1840
  %1898 = vmatprep.subr.bf16.mxu0 %v1845
  %1899 = vmatpush1.bf16.msra.mxu0 %v1844
  %1900 = vmatprep.subr.bf16.mxu0 %v1849
  %1901 = vmatpush1.bf16.msra.mxu0 %v1848
  %1902 = vmatprep.subr.bf16.mxu0 %v1853
  %1903 = vmatpush1.bf16.msra.mxu0 %v1852
  %1904 = vmatprep.subr.bf16.mxu0 0
  %1905 = vmatpush1.bf16.msra.mxu0 0
  %1906 = vmatprep.subr.bf16.mxu0 0
  %1907 = vmatpush1.bf16.msra.mxu0 0
  %1908 = vmatprep.subr.bf16.mxu0 0
  %1909 = vmatpush1.bf16.msra.mxu0 0
  %1910 = vmatprep.subr.bf16.mxu0 0
  %1911 = vmatpush1.bf16.msra.mxu0 0
  %1912 = vmatprep.subr.bf16.mxu0 0
  %1913 = vmatpush1.bf16.msra.mxu0 0
  %1914 = vmatprep.subr.bf16.mxu0 0
  %1915 = vmatpush1.bf16.msra.mxu0 0
  %1916 = vmatprep.subr.bf16.mxu0 0
  %1917 = vmatpush1.bf16.msra.mxu0 0
  %1918 = vmatprep.subr.bf16.mxu0 0
  %1919 = vmatpush1.bf16.msra.mxu0 0
  %1920 = vmatprep.mubr.bf16.mxu0 0
  %1921 = vmatmul.mubr.bf16.gmra.mrb[0].mxu0 %v1695
  %v1922 = vpop.f32.mrb[0].mxu0
  %v1923 = vadd.f32 0.0, %v1922
  %v1924 = vpop.f32.mrb[0].mxu0
  %v1925 = vadd.f32 0.0, %v1924
  %v1926 = vpop.f32.mrb[0].mxu0
  %v1927 = vpop.f32.mrb[0].mxu0
  %1928 = vdwg.mxu0
  %1929 = vmatprep.subr.bf16.mxu0 %v1827
  %1930 = vmatpush1.bf16.msra.mxu0 %v1826
  %1931 = vmatprep.subr.bf16.mxu0 %v1831
  %1932 = vmatpush1.bf16.msra.mxu0 %v1830
  %1933 = vmatprep.subr.bf16.mxu0 %v1835
  %1934 = vmatpush1.bf16.msra.mxu0 %v1834
  %1935 = vmatprep.subr.bf16.mxu0 %v1839
  %1936 = vmatpush1.bf16.msra.mxu0 %v1838
  %1937 = vmatprep.subr.bf16.mxu0 %v1843
  %1938 = vmatpush1.bf16.msra.mxu0 %v1842
  %1939 = vmatprep.subr.bf16.mxu0 %v1847
  %1940 = vmatpush1.bf16.msra.mxu0 %v1846
  %1941 = vmatprep.subr.bf16.mxu0 %v1851
  %1942 = vmatpush1.bf16.msra.mxu0 %v1850
  %1943 = vmatprep.subr.bf16.mxu0 %v1855
  %1944 = vmatpush1.bf16.msra.mxu0 %v1854
  %1945 = vmatprep.subr.bf16.mxu0 0
  %1946 = vmatpush1.bf16.msra.mxu0 0
  %1947 = vmatprep.subr.bf16.mxu0 0
  %1948 = vmatpush1.bf16.msra.mxu0 0
  %1949 = vmatprep.subr.bf16.mxu0 0
  %1950 = vmatpush1.bf16.msra.mxu0 0
  %1951 = vmatprep.subr.bf16.mxu0 0
  %1952 = vmatpush1.bf16.msra.mxu0 0
  %1953 = vmatprep.subr.bf16.mxu0 0
  %1954 = vmatpush1.bf16.msra.mxu0 0
  %1955 = vmatprep.subr.bf16.mxu0 0
  %1956 = vmatpush1.bf16.msra.mxu0 0
  %1957 = vmatprep.subr.bf16.mxu0 0
  %1958 = vmatpush1.bf16.msra.mxu0 0
  %1959 = vmatprep.subr.bf16.mxu0 0
  %1960 = vmatpush1.bf16.msra.mxu0 0
  %1961 = vmatprep.mubr.bf16.mxu0 0
  %1962 = vmatmul.mubr.bf16.gmra.mrb[0].mxu0 %v1695
  %v1963 = vpop.f32.mrb[0].mxu0
  %v1964 = vadd.f32 0.0, %v1963
  %v1965 = vpop.f32.mrb[0].mxu0
  %v1966 = vadd.f32 0.0, %v1965
  %v1967 = vpop.f32.mrb[0].mxu0
  %v1968 = vpop.f32.mrb[0].mxu0
  %1969 = vdwg.mxu0
  %v1970 = vadd.f32 %v1691, %v1923
  %v1971 = vadd.f32 %v1692, %v1925
  %v1972 = vadd.f32 %v1693, %v1964
  %v1973 = vadd.f32 %v1694, %v1966
  %v1974 = vxor.u32 %v1970, 2147483648
  %v1975 = vxor.u32 %v1971, 2147483648
  %v1976 = vmul.f32 %v1974, 1.442695
  %v1977 = vpow.pop %v1976
  %v1978 = vmul.f32 %v1975, 1.442695
  %v1979 = vpow.pop %v1978
  %v1980 = vadd.f32 %v1977, 1.0
  %v1981 = vadd.f32 %v1979, 1.0
  %v1982 = vrcp.pop %v1980
  %v1983 = vmul.f32 1.0, %v1982
  %v1984 = vrcp.pop %v1981
  %v1985 = vmul.f32 1.0, %v1984
  %v1986 = vtanh.pop %v1972
  %v1987 = vxor.u32 %v1973, 2147483648
  %v1988 = vmul.f32 %v1987, 1.442695
  %v1989 = vpow.pop %v1988
  %v1990 = vadd.f32 %v1989, 1.0
  %v1991 = vrcp.pop %v1990
  %v1992 = vmul.f32 1.0, %v1991
  %v1993 = vmul.f32 %v1985, %v1687
  %v1994 = vmul.f32 %v1983, %v1986
  %v1995 = vadd.f32 %v1993, %v1994
  %v1996 = vtanh.pop %v1995
  %v1997 = vmul.f32 %v1992, %v1996
  %1998 = vst [vmem:[#allocation3 + $0x20] sm:$0xff] %v1997
  %v1999 = vld [vmem:[#allocation2 + $0xa0] sm:$0xff]
  %v2000 = vld [vmem:[#allocation2 + $0xa8] sm:$0xff]
  %v2001 = vld [vmem:[#allocation2 + $0xb0] sm:$0xff]
  %v2002 = vld [vmem:[#allocation2 + $0xb8] sm:$0xff]
  %v2003 = vpack.c.bf16 %v1997, %v1997
  %v2004 = vld [vmem:[%s2] sm:$0xff]
  %v2005 = vld [vmem:[%s2 + $0x8] sm:$0xff]
  %v2006 = vld [vmem:[%s2 + $0x10] sm:$0xff]
  %v2007 = vld [vmem:[%s2 + $0x18] sm:$0xff]
  %v2008 = vld [vmem:[%s2 + $0x20] sm:$0xff]
  %v2009 = vld [vmem:[%s2 + $0x28] sm:$0xff]
  %v2010 = vld [vmem:[%s2 + $0x30] sm:$0xff]
  %v2011 = vld [vmem:[%s2 + $0x38] sm:$0xff]
  %v2012 = vld [vmem:[%s2 + $0x40] sm:$0xff]
  %v2013 = vld [vmem:[%s2 + $0x48] sm:$0xff]
  %v2014 = vld [vmem:[%s2 + $0x50] sm:$0xff]
  %v2015 = vld [vmem:[%s2 + $0x58] sm:$0xff]
  %v2016 = vld [vmem:[%s2 + $0x60] sm:$0xff]
  %v2017 = vld [vmem:[%s2 + $0x68] sm:$0xff]
  %v2018 = vld [vmem:[%s2 + $0x70] sm:$0xff]
  %v2019 = vld [vmem:[%s2 + $0x78] sm:$0xff]
  %v2020 = vld [vmem:[%s2 + $0x80] sm:$0xff]
  %v2021 = vld [vmem:[%s2 + $0x88] sm:$0xff]
  %v2022 = vld [vmem:[%s2 + $0x90] sm:$0xff]
  %v2023 = vld [vmem:[%s2 + $0x98] sm:$0xff]
  %v2024 = vld [vmem:[%s2 + $0xa0] sm:$0xff]
  %v2025 = vld [vmem:[%s2 + $0xa8] sm:$0xff]
  %v2026 = vld [vmem:[%s2 + $0xb0] sm:$0xff]
  %v2027 = vld [vmem:[%s2 + $0xb8] sm:$0xff]
  %v2028 = vld [vmem:[%s2 + $0xc0] sm:$0xff]
  %v2029 = vld [vmem:[%s2 + $0xc8] sm:$0xff]
  %v2030 = vld [vmem:[%s2 + $0xd0] sm:$0xff]
  %v2031 = vld [vmem:[%s2 + $0xd8] sm:$0xff]
  %v2032 = vld [vmem:[%s2 + $0xe0] sm:$0xff]
  %v2033 = vld [vmem:[%s2 + $0xe8] sm:$0xff]
  %v2034 = vld [vmem:[%s2 + $0xf0] sm:$0xff]
  %v2035 = vld [vmem:[%s2 + $0xf8] sm:$0xff]
  %v2068 = vunpack.c.l.b16 %v2004
  %v2069 = vunpack.c.h.b16 %v2004
  %v2070 = vunpack.c.l.b16 %v2005
  %v2071 = vunpack.c.h.b16 %v2005
  %v2072 = vunpack.c.l.b16 %v2006
  %v2073 = vunpack.c.h.b16 %v2006
  %v2074 = vunpack.c.l.b16 %v2007
  %v2075 = vunpack.c.h.b16 %v2007
  %v2076 = vunpack.c.l.b16 %v2008
  %v2077 = vunpack.c.h.b16 %v2008
  %v2078 = vunpack.c.l.b16 %v2009
  %v2079 = vunpack.c.h.b16 %v2009
  %v2080 = vunpack.c.l.b16 %v2010
  %v2081 = vunpack.c.h.b16 %v2010
  %v2082 = vunpack.c.l.b16 %v2011
  %v2083 = vunpack.c.h.b16 %v2011
  %v2084 = vunpack.c.l.b16 %v2012
  %v2085 = vunpack.c.h.b16 %v2012
  %v2086 = vunpack.c.l.b16 %v2013
  %v2087 = vunpack.c.h.b16 %v2013
  %v2088 = vunpack.c.l.b16 %v2014
  %v2089 = vunpack.c.h.b16 %v2014
  %v2090 = vunpack.c.l.b16 %v2015
  %v2091 = vunpack.c.h.b16 %v2015
  %v2092 = vunpack.c.l.b16 %v2016
  %v2093 = vunpack.c.h.b16 %v2016
  %v2094 = vunpack.c.l.b16 %v2017
  %v2095 = vunpack.c.h.b16 %v2017
  %v2096 = vunpack.c.l.b16 %v2018
  %v2097 = vunpack.c.h.b16 %v2018
  %v2098 = vunpack.c.l.b16 %v2019
  %v2099 = vunpack.c.h.b16 %v2019
  %v2100 = vunpack.c.l.b16 %v2020
  %v2101 = vunpack.c.h.b16 %v2020
  %v2102 = vunpack.c.l.b16 %v2021
  %v2103 = vunpack.c.h.b16 %v2021
  %v2104 = vunpack.c.l.b16 %v2022
  %v2105 = vunpack.c.h.b16 %v2022
  %v2106 = vunpack.c.l.b16 %v2023
  %v2107 = vunpack.c.h.b16 %v2023
  %v2108 = vunpack.c.l.b16 %v2024
  %v2109 = vunpack.c.h.b16 %v2024
  %v2110 = vunpack.c.l.b16 %v2025
  %v2111 = vunpack.c.h.b16 %v2025
  %v2112 = vunpack.c.l.b16 %v2026
  %v2113 = vunpack.c.h.b16 %v2026
  %v2114 = vunpack.c.l.b16 %v2027
  %v2115 = vunpack.c.h.b16 %v2027
  %v2116 = vunpack.c.l.b16 %v2028
  %v2117 = vunpack.c.h.b16 %v2028
  %v2118 = vunpack.c.l.b16 %v2029
  %v2119 = vunpack.c.h.b16 %v2029
  %v2120 = vunpack.c.l.b16 %v2030
  %v2121 = vunpack.c.h.b16 %v2030
  %v2122 = vunpack.c.l.b16 %v2031
  %v2123 = vunpack.c.h.b16 %v2031
  %v2124 = vunpack.c.l.b16 %v2032
  %v2125 = vunpack.c.h.b16 %v2032
  %v2126 = vunpack.c.l.b16 %v2033
  %v2127 = vunpack.c.h.b16 %v2033
  %v2128 = vunpack.c.l.b16 %v2034
  %v2129 = vunpack.c.h.b16 %v2034
  %v2130 = vunpack.c.l.b16 %v2035
  %v2131 = vunpack.c.h.b16 %v2035
  %v2132 = vpack.c.b16 %v2072, %v2068
  %v2133 = vpack.c.b16 %v2073, %v2069
  %v2134 = vpack.c.b16 %v2074, %v2070
  %v2135 = vpack.c.b16 %v2075, %v2071
  %v2136 = vpack.c.b16 %v2080, %v2076
  %v2137 = vpack.c.b16 %v2081, %v2077
  %v2138 = vpack.c.b16 %v2082, %v2078
  %v2139 = vpack.c.b16 %v2083, %v2079
  %v2140 = vpack.c.b16 %v2088, %v2084
  %v2141 = vpack.c.b16 %v2089, %v2085
  %v2142 = vpack.c.b16 %v2090, %v2086
  %v2143 = vpack.c.b16 %v2091, %v2087
  %v2144 = vpack.c.b16 %v2096, %v2092
  %v2145 = vpack.c.b16 %v2097, %v2093
  %v2146 = vpack.c.b16 %v2098, %v2094
  %v2147 = vpack.c.b16 %v2099, %v2095
  %v2148 = vpack.c.b16 %v2104, %v2100
  %v2149 = vpack.c.b16 %v2105, %v2101
  %v2150 = vpack.c.b16 %v2106, %v2102
  %v2151 = vpack.c.b16 %v2107, %v2103
  %v2152 = vpack.c.b16 %v2112, %v2108
  %v2153 = vpack.c.b16 %v2113, %v2109
  %v2154 = vpack.c.b16 %v2114, %v2110
  %v2155 = vpack.c.b16 %v2115, %v2111
  %v2156 = vpack.c.b16 %v2120, %v2116
  %v2157 = vpack.c.b16 %v2121, %v2117
  %v2158 = vpack.c.b16 %v2122, %v2118
  %v2159 = vpack.c.b16 %v2123, %v2119
  %v2160 = vpack.c.b16 %v2128, %v2124
  %v2161 = vpack.c.b16 %v2129, %v2125
  %v2162 = vpack.c.b16 %v2130, %v2126
  %v2163 = vpack.c.b16 %v2131, %v2127
  %2196 = vmatprep.subr.bf16.mxu0 %v2133
  %2197 = vmatpush1.bf16.msra.mxu0 %v2132
  %2198 = vmatprep.subr.bf16.mxu0 %v2137
  %2199 = vmatpush1.bf16.msra.mxu0 %v2136
  %2200 = vmatprep.subr.bf16.mxu0 %v2141
  %2201 = vmatpush1.bf16.msra.mxu0 %v2140
  %2202 = vmatprep.subr.bf16.mxu0 %v2145
  %2203 = vmatpush1.bf16.msra.mxu0 %v2144
  %2204 = vmatprep.subr.bf16.mxu0 %v2149
  %2205 = vmatpush1.bf16.msra.mxu0 %v2148
  %2206 = vmatprep.subr.bf16.mxu0 %v2153
  %2207 = vmatpush1.bf16.msra.mxu0 %v2152
  %2208 = vmatprep.subr.bf16.mxu0 %v2157
  %2209 = vmatpush1.bf16.msra.mxu0 %v2156
  %2210 = vmatprep.subr.bf16.mxu0 %v2161
  %2211 = vmatpush1.bf16.msra.mxu0 %v2160
  %2212 = vmatprep.subr.bf16.mxu0 0
  %2213 = vmatpush1.bf16.msra.mxu0 0
  %2214 = vmatprep.subr.bf16.mxu0 0
  %2215 = vmatpush1.bf16.msra.mxu0 0
  %2216 = vmatprep.subr.bf16.mxu0 0
  %2217 = vmatpush1.bf16.msra.mxu0 0
  %2218 = vmatprep.subr.bf16.mxu0 0
  %2219 = vmatpush1.bf16.msra.mxu0 0
  %2220 = vmatprep.subr.bf16.mxu0 0
  %2221 = vmatpush1.bf16.msra.mxu0 0
  %2222 = vmatprep.subr.bf16.mxu0 0
  %2223 = vmatpush1.bf16.msra.mxu0 0
  %2224 = vmatprep.subr.bf16.mxu0 0
  %2225 = vmatpush1.bf16.msra.mxu0 0
  %2226 = vmatprep.subr.bf16.mxu0 0
  %2227 = vmatpush1.bf16.msra.mxu0 0
  %2228 = vmatprep.mubr.bf16.mxu0 0
  %2229 = vmatmul.mubr.bf16.gmra.mrb[0].mxu0 %v2003
  %v2230 = vpop.f32.mrb[0].mxu0
  %v2231 = vadd.f32 0.0, %v2230
  %v2232 = vpop.f32.mrb[0].mxu0
  %v2233 = vadd.f32 0.0, %v2232
  %v2234 = vpop.f32.mrb[0].mxu0
  %v2235 = vpop.f32.mrb[0].mxu0
  %2236 = vdwg.mxu0
  %2237 = vmatprep.subr.bf16.mxu0 %v2135
  %2238 = vmatpush1.bf16.msra.mxu0 %v2134
  %2239 = vmatprep.subr.bf16.mxu0 %v2139
  %2240 = vmatpush1.bf16.msra.mxu0 %v2138
  %2241 = vmatprep.subr.bf16.mxu0 %v2143
  %2242 = vmatpush1.bf16.msra.mxu0 %v2142
  %2243 = vmatprep.subr.bf16.mxu0 %v2147
  %2244 = vmatpush1.bf16.msra.mxu0 %v2146
  %2245 = vmatprep.subr.bf16.mxu0 %v2151
  %2246 = vmatpush1.bf16.msra.mxu0 %v2150
  %2247 = vmatprep.subr.bf16.mxu0 %v2155
  %2248 = vmatpush1.bf16.msra.mxu0 %v2154
  %2249 = vmatprep.subr.bf16.mxu0 %v2159
  %2250 = vmatpush1.bf16.msra.mxu0 %v2158
  %2251 = vmatprep.subr.bf16.mxu0 %v2163
  %2252 = vmatpush1.bf16.msra.mxu0 %v2162
  %2253 = vmatprep.subr.bf16.mxu0 0
  %2254 = vmatpush1.bf16.msra.mxu0 0
  %2255 = vmatprep.subr.bf16.mxu0 0
  %2256 = vmatpush1.bf16.msra.mxu0 0
  %2257 = vmatprep.subr.bf16.mxu0 0
  %2258 = vmatpush1.bf16.msra.mxu0 0
  %2259 = vmatprep.subr.bf16.mxu0 0
  %2260 = vmatpush1.bf16.msra.mxu0 0
  %2261 = vmatprep.subr.bf16.mxu0 0
  %2262 = vmatpush1.bf16.msra.mxu0 0
  %2263 = vmatprep.subr.bf16.mxu0 0
  %2264 = vmatpush1.bf16.msra.mxu0 0
  %2265 = vmatprep.subr.bf16.mxu0 0
  %2266 = vmatpush1.bf16.msra.mxu0 0
  %2267 = vmatprep.subr.bf16.mxu0 0
  %2268 = vmatpush1.bf16.msra.mxu0 0
  %2269 = vmatprep.mubr.bf16.mxu0 0
  %2270 = vmatmul.mubr.bf16.gmra.mrb[0].mxu0 %v2003
  %v2271 = vpop.f32.mrb[0].mxu0
  %v2272 = vadd.f32 0.0, %v2271
  %v2273 = vpop.f32.mrb[0].mxu0
  %v2274 = vadd.f32 0.0, %v2273
  %v2275 = vpop.f32.mrb[0].mxu0
  %v2276 = vpop.f32.mrb[0].mxu0
  %2277 = vdwg.mxu0
  %v2278 = vadd.f32 %v1999, %v2231
  %v2279 = vadd.f32 %v2000, %v2233
  %v2280 = vadd.f32 %v2001, %v2272
  %v2281 = vadd.f32 %v2002, %v2274
  %v2282 = vxor.u32 %v2278, 2147483648
  %v2283 = vxor.u32 %v2279, 2147483648
  %v2284 = vmul.f32 %v2282, 1.442695
  %v2285 = vpow.pop %v2284
  %v2286 = vmul.f32 %v2283, 1.442695
  %v2287 = vpow.pop %v2286
  %v2288 = vadd.f32 %v2285, 1.0
  %v2289 = vadd.f32 %v2287, 1.0
  %v2290 = vrcp.pop %v2288
  %v2291 = vmul.f32 1.0, %v2290
  %v2292 = vrcp.pop %v2289
  %v2293 = vmul.f32 1.0, %v2292
  %v2294 = vtanh.pop %v2280
  %v2295 = vxor.u32 %v2281, 2147483648
  %v2296 = vmul.f32 %v2295, 1.442695
  %v2297 = vpow.pop %v2296
  %v2298 = vadd.f32 %v2297, 1.0
  %v2299 = vrcp.pop %v2298
  %v2300 = vmul.f32 1.0, %v2299
  %v2301 = vmul.f32 %v2293, %v1995
  %v2302 = vmul.f32 %v2291, %v2294
  %v2303 = vadd.f32 %v2301, %v2302
  %v2304 = vtanh.pop %v2303
  %v2305 = vmul.f32 %v2300, %v2304
  %2306 = vst [vmem:[#allocation3 + $0x28] sm:$0xff] %v2305
  %v2307 = vld [vmem:[#allocation2 + $0xc0] sm:$0xff]
  %v2308 = vld [vmem:[#allocation2 + $0xc8] sm:$0xff]
  %v2309 = vld [vmem:[#allocation2 + $0xd0] sm:$0xff]
  %v2310 = vld [vmem:[#allocation2 + $0xd8] sm:$0xff]
  %v2311 = vpack.c.bf16 %v2305, %v2305
  %v2312 = vld [vmem:[%s2] sm:$0xff]
  %v2313 = vld [vmem:[%s2 + $0x8] sm:$0xff]
  %v2314 = vld [vmem:[%s2 + $0x10] sm:$0xff]
  %v2315 = vld [vmem:[%s2 + $0x18] sm:$0xff]
  %v2316 = vld [vmem:[%s2 + $0x20] sm:$0xff]
  %v2317 = vld [vmem:[%s2 + $0x28] sm:$0xff]
  %v2318 = vld [vmem:[%s2 + $0x30] sm:$0xff]
  %v2319 = vld [vmem:[%s2 + $0x38] sm:$0xff]
  %v2320 = vld [vmem:[%s2 + $0x40] sm:$0xff]
  %v2321 = vld [vmem:[%s2 + $0x48] sm:$0xff]
  %v2322 = vld [vmem:[%s2 + $0x50] sm:$0xff]
  %v2323 = vld [vmem:[%s2 + $0x58] sm:$0xff]
  %v2324 = vld [vmem:[%s2 + $0x60] sm:$0xff]
  %v2325 = vld [vmem:[%s2 + $0x68] sm:$0xff]
  %v2326 = vld [vmem:[%s2 + $0x70] sm:$0xff]
  %v2327 = vld [vmem:[%s2 + $0x78] sm:$0xff]
  %v2328 = vld [vmem:[%s2 + $0x80] sm:$0xff]
  %v2329 = vld [vmem:[%s2 + $0x88] sm:$0xff]
  %v2330 = vld [vmem:[%s2 + $0x90] sm:$0xff]
  %v2331 = vld [vmem:[%s2 + $0x98] sm:$0xff]
  %v2332 = vld [vmem:[%s2 + $0xa0] sm:$0xff]
  %v2333 = vld [vmem:[%s2 + $0xa8] sm:$0xff]
  %v2334 = vld [vmem:[%s2 + $0xb0] sm:$0xff]
  %v2335 = vld [vmem:[%s2 + $0xb8] sm:$0xff]
  %v2336 = vld [vmem:[%s2 + $0xc0] sm:$0xff]
  %v2337 = vld [vmem:[%s2 + $0xc8] sm:$0xff]
  %v2338 = vld [vmem:[%s2 + $0xd0] sm:$0xff]
  %v2339 = vld [vmem:[%s2 + $0xd8] sm:$0xff]
  %v2340 = vld [vmem:[%s2 + $0xe0] sm:$0xff]
  %v2341 = vld [vmem:[%s2 + $0xe8] sm:$0xff]
  %v2342 = vld [vmem:[%s2 + $0xf0] sm:$0xff]
  %v2343 = vld [vmem:[%s2 + $0xf8] sm:$0xff]
  %v2376 = vunpack.c.l.b16 %v2312
  %v2377 = vunpack.c.h.b16 %v2312
  %v2378 = vunpack.c.l.b16 %v2313
  %v2379 = vunpack.c.h.b16 %v2313
  %v2380 = vunpack.c.l.b16 %v2314
  %v2381 = vunpack.c.h.b16 %v2314
  %v2382 = vunpack.c.l.b16 %v2315
  %v2383 = vunpack.c.h.b16 %v2315
  %v2384 = vunpack.c.l.b16 %v2316
  %v2385 = vunpack.c.h.b16 %v2316
  %v2386 = vunpack.c.l.b16 %v2317
  %v2387 = vunpack.c.h.b16 %v2317
  %v2388 = vunpack.c.l.b16 %v2318
  %v2389 = vunpack.c.h.b16 %v2318
  %v2390 = vunpack.c.l.b16 %v2319
  %v2391 = vunpack.c.h.b16 %v2319
  %v2392 = vunpack.c.l.b16 %v2320
  %v2393 = vunpack.c.h.b16 %v2320
  %v2394 = vunpack.c.l.b16 %v2321
  %v2395 = vunpack.c.h.b16 %v2321
  %v2396 = vunpack.c.l.b16 %v2322
  %v2397 = vunpack.c.h.b16 %v2322
  %v2398 = vunpack.c.l.b16 %v2323
  %v2399 = vunpack.c.h.b16 %v2323
  %v2400 = vunpack.c.l.b16 %v2324
  %v2401 = vunpack.c.h.b16 %v2324
  %v2402 = vunpack.c.l.b16 %v2325
  %v2403 = vunpack.c.h.b16 %v2325
  %v2404 = vunpack.c.l.b16 %v2326
  %v2405 = vunpack.c.h.b16 %v2326
  %v2406 = vunpack.c.l.b16 %v2327
  %v2407 = vunpack.c.h.b16 %v2327
  %v2408 = vunpack.c.l.b16 %v2328
  %v2409 = vunpack.c.h.b16 %v2328
  %v2410 = vunpack.c.l.b16 %v2329
  %v2411 = vunpack.c.h.b16 %v2329
  %v2412 = vunpack.c.l.b16 %v2330
  %v2413 = vunpack.c.h.b16 %v2330
  %v2414 = vunpack.c.l.b16 %v2331
  %v2415 = vunpack.c.h.b16 %v2331
  %v2416 = vunpack.c.l.b16 %v2332
  %v2417 = vunpack.c.h.b16 %v2332
  %v2418 = vunpack.c.l.b16 %v2333
  %v2419 = vunpack.c.h.b16 %v2333
  %v2420 = vunpack.c.l.b16 %v2334
  %v2421 = vunpack.c.h.b16 %v2334
  %v2422 = vunpack.c.l.b16 %v2335
  %v2423 = vunpack.c.h.b16 %v2335
  %v2424 = vunpack.c.l.b16 %v2336
  %v2425 = vunpack.c.h.b16 %v2336
  %v2426 = vunpack.c.l.b16 %v2337
  %v2427 = vunpack.c.h.b16 %v2337
  %v2428 = vunpack.c.l.b16 %v2338
  %v2429 = vunpack.c.h.b16 %v2338
  %v2430 = vunpack.c.l.b16 %v2339
  %v2431 = vunpack.c.h.b16 %v2339
  %v2432 = vunpack.c.l.b16 %v2340
  %v2433 = vunpack.c.h.b16 %v2340
  %v2434 = vunpack.c.l.b16 %v2341
  %v2435 = vunpack.c.h.b16 %v2341
  %v2436 = vunpack.c.l.b16 %v2342
  %v2437 = vunpack.c.h.b16 %v2342
  %v2438 = vunpack.c.l.b16 %v2343
  %v2439 = vunpack.c.h.b16 %v2343
  %v2440 = vpack.c.b16 %v2380, %v2376
  %v2441 = vpack.c.b16 %v2381, %v2377
  %v2442 = vpack.c.b16 %v2382, %v2378
  %v2443 = vpack.c.b16 %v2383, %v2379
  %v2444 = vpack.c.b16 %v2388, %v2384
  %v2445 = vpack.c.b16 %v2389, %v2385
  %v2446 = vpack.c.b16 %v2390, %v2386
  %v2447 = vpack.c.b16 %v2391, %v2387
  %v2448 = vpack.c.b16 %v2396, %v2392
  %v2449 = vpack.c.b16 %v2397, %v2393
  %v2450 = vpack.c.b16 %v2398, %v2394
  %v2451 = vpack.c.b16 %v2399, %v2395
  %v2452 = vpack.c.b16 %v2404, %v2400
  %v2453 = vpack.c.b16 %v2405, %v2401
  %v2454 = vpack.c.b16 %v2406, %v2402
  %v2455 = vpack.c.b16 %v2407, %v2403
  %v2456 = vpack.c.b16 %v2412, %v2408
  %v2457 = vpack.c.b16 %v2413, %v2409
  %v2458 = vpack.c.b16 %v2414, %v2410
  %v2459 = vpack.c.b16 %v2415, %v2411
  %v2460 = vpack.c.b16 %v2420, %v2416
  %v2461 = vpack.c.b16 %v2421, %v2417
  %v2462 = vpack.c.b16 %v2422, %v2418
  %v2463 = vpack.c.b16 %v2423, %v2419
  %v2464 = vpack.c.b16 %v2428, %v2424
  %v2465 = vpack.c.b16 %v2429, %v2425
  %v2466 = vpack.c.b16 %v2430, %v2426
  %v2467 = vpack.c.b16 %v2431, %v2427
  %v2468 = vpack.c.b16 %v2436, %v2432
  %v2469 = vpack.c.b16 %v2437, %v2433
  %v2470 = vpack.c.b16 %v2438, %v2434
  %v2471 = vpack.c.b16 %v2439, %v2435
  %2504 = vmatprep.subr.bf16.mxu0 %v2441
  %2505 = vmatpush1.bf16.msra.mxu0 %v2440
  %2506 = vmatprep.subr.bf16.mxu0 %v2445
  %2507 = vmatpush1.bf16.msra.mxu0 %v2444
  %2508 = vmatprep.subr.bf16.mxu0 %v2449
  %2509 = vmatpush1.bf16.msra.mxu0 %v2448
  %2510 = vmatprep.subr.bf16.mxu0 %v2453
  %2511 = vmatpush1.bf16.msra.mxu0 %v2452
  %2512 = vmatprep.subr.bf16.mxu0 %v2457
  %2513 = vmatpush1.bf16.msra.mxu0 %v2456
  %2514 = vmatprep.subr.bf16.mxu0 %v2461
  %2515 = vmatpush1.bf16.msra.mxu0 %v2460
  %2516 = vmatprep.subr.bf16.mxu0 %v2465
  %2517 = vmatpush1.bf16.msra.mxu0 %v2464
  %2518 = vmatprep.subr.bf16.mxu0 %v2469
  %2519 = vmatpush1.bf16.msra.mxu0 %v2468
  %2520 = vmatprep.subr.bf16.mxu0 0
  %2521 = vmatpush1.bf16.msra.mxu0 0
  %2522 = vmatprep.subr.bf16.mxu0 0
  %2523 = vmatpush1.bf16.msra.mxu0 0
  %2524 = vmatprep.subr.bf16.mxu0 0
  %2525 = vmatpush1.bf16.msra.mxu0 0
  %2526 = vmatprep.subr.bf16.mxu0 0
  %2527 = vmatpush1.bf16.msra.mxu0 0
  %2528 = vmatprep.subr.bf16.mxu0 0
  %2529 = vmatpush1.bf16.msra.mxu0 0
  %2530 = vmatprep.subr.bf16.mxu0 0
  %2531 = vmatpush1.bf16.msra.mxu0 0
  %2532 = vmatprep.subr.bf16.mxu0 0
  %2533 = vmatpush1.bf16.msra.mxu0 0
  %2534 = vmatprep.subr.bf16.mxu0 0
  %2535 = vmatpush1.bf16.msra.mxu0 0
  %2536 = vmatprep.mubr.bf16.mxu0 0
  %2537 = vmatmul.mubr.bf16.gmra.mrb[0].mxu0 %v2311
  %v2538 = vpop.f32.mrb[0].mxu0
  %v2539 = vadd.f32 0.0, %v2538
  %v2540 = vpop.f32.mrb[0].mxu0
  %v2541 = vadd.f32 0.0, %v2540
  %v2542 = vpop.f32.mrb[0].mxu0
  %v2543 = vpop.f32.mrb[0].mxu0
  %2544 = vdwg.mxu0
  %2545 = vmatprep.subr.bf16.mxu0 %v2443
  %2546 = vmatpush1.bf16.msra.mxu0 %v2442
  %2547 = vmatprep.subr.bf16.mxu0 %v2447
  %2548 = vmatpush1.bf16.msra.mxu0 %v2446
  %2549 = vmatprep.subr.bf16.mxu0 %v2451
  %2550 = vmatpush1.bf16.msra.mxu0 %v2450
  %2551 = vmatprep.subr.bf16.mxu0 %v2455
  %2552 = vmatpush1.bf16.msra.mxu0 %v2454
  %2553 = vmatprep.subr.bf16.mxu0 %v2459
  %2554 = vmatpush1.bf16.msra.mxu0 %v2458
  %2555 = vmatprep.subr.bf16.mxu0 %v2463
  %2556 = vmatpush1.bf16.msra.mxu0 %v2462
  %2557 = vmatprep.subr.bf16.mxu0 %v2467
  %2558 = vmatpush1.bf16.msra.mxu0 %v2466
  %2559 = vmatprep.subr.bf16.mxu0 %v2471
  %2560 = vmatpush1.bf16.msra.mxu0 %v2470
  %2561 = vmatprep.subr.bf16.mxu0 0
  %2562 = vmatpush1.bf16.msra.mxu0 0
  %2563 = vmatprep.subr.bf16.mxu0 0
  %2564 = vmatpush1.bf16.msra.mxu0 0
  %2565 = vmatprep.subr.bf16.mxu0 0
  %2566 = vmatpush1.bf16.msra.mxu0 0
  %2567 = vmatprep.subr.bf16.mxu0 0
  %2568 = vmatpush1.bf16.msra.mxu0 0
  %2569 = vmatprep.subr.bf16.mxu0 0
  %2570 = vmatpush1.bf16.msra.mxu0 0
  %2571 = vmatprep.subr.bf16.mxu0 0
  %2572 = vmatpush1.bf16.msra.mxu0 0
  %2573 = vmatprep.subr.bf16.mxu0 0
  %2574 = vmatpush1.bf16.msra.mxu0 0
  %2575 = vmatprep.subr.bf16.mxu0 0
  %2576 = vmatpush1.bf16.msra.mxu0 0
  %2577 = vmatprep.mubr.bf16.mxu0 0
  %2578 = vmatmul.mubr.bf16.gmra.mrb[0].mxu0 %v2311
  %v2579 = vpop.f32.mrb[0].mxu0
  %v2580 = vadd.f32 0.0, %v2579
  %v2581 = vpop.f32.mrb[0].mxu0
  %v2582 = vadd.f32 0.0, %v2581
  %v2583 = vpop.f32.mrb[0].mxu0
  %v2584 = vpop.f32.mrb[0].mxu0
  %2585 = vdwg.mxu0
  %v2586 = vadd.f32 %v2307, %v2539
  %v2587 = vadd.f32 %v2308, %v2541
  %v2588 = vadd.f32 %v2309, %v2580
  %v2589 = vadd.f32 %v2310, %v2582
  %v2590 = vxor.u32 %v2586, 2147483648
  %v2591 = vxor.u32 %v2587, 2147483648
  %v2592 = vmul.f32 %v2590, 1.442695
  %v2593 = vpow.pop %v2592
  %v2594 = vmul.f32 %v2591, 1.442695
  %v2595 = vpow.pop %v2594
  %v2596 = vadd.f32 %v2593, 1.0
  %v2597 = vadd.f32 %v2595, 1.0
  %v2598 = vrcp.pop %v2596
  %v2599 = vmul.f32 1.0, %v2598
  %v2600 = vrcp.pop %v2597
  %v2601 = vmul.f32 1.0, %v2600
  %v2602 = vtanh.pop %v2588
  %v2603 = vxor.u32 %v2589, 2147483648
  %v2604 = vmul.f32 %v2603, 1.442695
  %v2605 = vpow.pop %v2604
  %v2606 = vadd.f32 %v2605, 1.0
  %v2607 = vrcp.pop %v2606
  %v2608 = vmul.f32 1.0, %v2607
  %v2609 = vmul.f32 %v2601, %v2303
  %v2610 = vmul.f32 %v2599, %v2602
  %v2611 = vadd.f32 %v2609, %v2610
  %v2612 = vtanh.pop %v2611
  %v2613 = vmul.f32 %v2608, %v2612
  %2614 = vst [vmem:[#allocation3 + $0x30] sm:$0xff] %v2613
  %v2615 = vld [vmem:[#allocation2 + $0xe0] sm:$0xff]
  %v2616 = vld [vmem:[#allocation2 + $0xe8] sm:$0xff]
  %v2617 = vld [vmem:[#allocation2 + $0xf0] sm:$0xff]
  %v2618 = vld [vmem:[#allocation2 + $0xf8] sm:$0xff]
  %v2619 = vpack.c.bf16 %v2613, %v2613
  %v2620 = vld [vmem:[%s2] sm:$0xff]
  %v2621 = vld [vmem:[%s2 + $0x8] sm:$0xff]
  %v2622 = vld [vmem:[%s2 + $0x10] sm:$0xff]
  %v2623 = vld [vmem:[%s2 + $0x18] sm:$0xff]
  %v2624 = vld [vmem:[%s2 + $0x20] sm:$0xff]
  %v2625 = vld [vmem:[%s2 + $0x28] sm:$0xff]
  %v2626 = vld [vmem:[%s2 + $0x30] sm:$0xff]
  %v2627 = vld [vmem:[%s2 + $0x38] sm:$0xff]
  %v2628 = vld [vmem:[%s2 + $0x40] sm:$0xff]
  %v2629 = vld [vmem:[%s2 + $0x48] sm:$0xff]
  %v2630 = vld [vmem:[%s2 + $0x50] sm:$0xff]
  %v2631 = vld [vmem:[%s2 + $0x58] sm:$0xff]
  %v2632 = vld [vmem:[%s2 + $0x60] sm:$0xff]
  %v2633 = vld [vmem:[%s2 + $0x68] sm:$0xff]
  %v2634 = vld [vmem:[%s2 + $0x70] sm:$0xff]
  %v2635 = vld [vmem:[%s2 + $0x78] sm:$0xff]
  %v2636 = vld [vmem:[%s2 + $0x80] sm:$0xff]
  %v2637 = vld [vmem:[%s2 + $0x88] sm:$0xff]
  %v2638 = vld [vmem:[%s2 + $0x90] sm:$0xff]
  %v2639 = vld [vmem:[%s2 + $0x98] sm:$0xff]
  %v2640 = vld [vmem:[%s2 + $0xa0] sm:$0xff]
  %v2641 = vld [vmem:[%s2 + $0xa8] sm:$0xff]
  %v2642 = vld [vmem:[%s2 + $0xb0] sm:$0xff]
  %v2643 = vld [vmem:[%s2 + $0xb8] sm:$0xff]
  %v2644 = vld [vmem:[%s2 + $0xc0] sm:$0xff]
  %v2645 = vld [vmem:[%s2 + $0xc8] sm:$0xff]
  %v2646 = vld [vmem:[%s2 + $0xd0] sm:$0xff]
  %v2647 = vld [vmem:[%s2 + $0xd8] sm:$0xff]
  %v2648 = vld [vmem:[%s2 + $0xe0] sm:$0xff]
  %v2649 = vld [vmem:[%s2 + $0xe8] sm:$0xff]
  %v2650 = vld [vmem:[%s2 + $0xf0] sm:$0xff]
  %v2651 = vld [vmem:[%s2 + $0xf8] sm:$0xff]
  %v2684 = vunpack.c.l.b16 %v2620
  %v2685 = vunpack.c.h.b16 %v2620
  %v2686 = vunpack.c.l.b16 %v2621
  %v2687 = vunpack.c.h.b16 %v2621
  %v2688 = vunpack.c.l.b16 %v2622
  %v2689 = vunpack.c.h.b16 %v2622
  %v2690 = vunpack.c.l.b16 %v2623
  %v2691 = vunpack.c.h.b16 %v2623
  %v2692 = vunpack.c.l.b16 %v2624
  %v2693 = vunpack.c.h.b16 %v2624
  %v2694 = vunpack.c.l.b16 %v2625
  %v2695 = vunpack.c.h.b16 %v2625
  %v2696 = vunpack.c.l.b16 %v2626
  %v2697 = vunpack.c.h.b16 %v2626
  %v2698 = vunpack.c.l.b16 %v2627
  %v2699 = vunpack.c.h.b16 %v2627
  %v2700 = vunpack.c.l.b16 %v2628
  %v2701 = vunpack.c.h.b16 %v2628
  %v2702 = vunpack.c.l.b16 %v2629
  %v2703 = vunpack.c.h.b16 %v2629
  %v2704 = vunpack.c.l.b16 %v2630
  %v2705 = vunpack.c.h.b16 %v2630
  %v2706 = vunpack.c.l.b16 %v2631
  %v2707 = vunpack.c.h.b16 %v2631
  %v2708 = vunpack.c.l.b16 %v2632
  %v2709 = vunpack.c.h.b16 %v2632
  %v2710 = vunpack.c.l.b16 %v2633
  %v2711 = vunpack.c.h.b16 %v2633
  %v2712 = vunpack.c.l.b16 %v2634
  %v2713 = vunpack.c.h.b16 %v2634
  %v2714 = vunpack.c.l.b16 %v2635
  %v2715 = vunpack.c.h.b16 %v2635
  %v2716 = vunpack.c.l.b16 %v2636
  %v2717 = vunpack.c.h.b16 %v2636
  %v2718 = vunpack.c.l.b16 %v2637
  %v2719 = vunpack.c.h.b16 %v2637
  %v2720 = vunpack.c.l.b16 %v2638
  %v2721 = vunpack.c.h.b16 %v2638
  %v2722 = vunpack.c.l.b16 %v2639
  %v2723 = vunpack.c.h.b16 %v2639
  %v2724 = vunpack.c.l.b16 %v2640
  %v2725 = vunpack.c.h.b16 %v2640
  %v2726 = vunpack.c.l.b16 %v2641
  %v2727 = vunpack.c.h.b16 %v2641
  %v2728 = vunpack.c.l.b16 %v2642
  %v2729 = vunpack.c.h.b16 %v2642
  %v2730 = vunpack.c.l.b16 %v2643
  %v2731 = vunpack.c.h.b16 %v2643
  %v2732 = vunpack.c.l.b16 %v2644
  %v2733 = vunpack.c.h.b16 %v2644
  %v2734 = vunpack.c.l.b16 %v2645
  %v2735 = vunpack.c.h.b16 %v2645
  %v2736 = vunpack.c.l.b16 %v2646
  %v2737 = vunpack.c.h.b16 %v2646
  %v2738 = vunpack.c.l.b16 %v2647
  %v2739 = vunpack.c.h.b16 %v2647
  %v2740 = vunpack.c.l.b16 %v2648
  %v2741 = vunpack.c.h.b16 %v2648
  %v2742 = vunpack.c.l.b16 %v2649
  %v2743 = vunpack.c.h.b16 %v2649
  %v2744 = vunpack.c.l.b16 %v2650
  %v2745 = vunpack.c.h.b16 %v2650
  %v2746 = vunpack.c.l.b16 %v2651
  %v2747 = vunpack.c.h.b16 %v2651
  %v2748 = vpack.c.b16 %v2688, %v2684
  %v2749 = vpack.c.b16 %v2689, %v2685
  %v2750 = vpack.c.b16 %v2690, %v2686
  %v2751 = vpack.c.b16 %v2691, %v2687
  %v2752 = vpack.c.b16 %v2696, %v2692
  %v2753 = vpack.c.b16 %v2697, %v2693
  %v2754 = vpack.c.b16 %v2698, %v2694
  %v2755 = vpack.c.b16 %v2699, %v2695
  %v2756 = vpack.c.b16 %v2704, %v2700
  %v2757 = vpack.c.b16 %v2705, %v2701
  %v2758 = vpack.c.b16 %v2706, %v2702
  %v2759 = vpack.c.b16 %v2707, %v2703
  %v2760 = vpack.c.b16 %v2712, %v2708
  %v2761 = vpack.c.b16 %v2713, %v2709
  %v2762 = vpack.c.b16 %v2714, %v2710
  %v2763 = vpack.c.b16 %v2715, %v2711
  %v2764 = vpack.c.b16 %v2720, %v2716
  %v2765 = vpack.c.b16 %v2721, %v2717
  %v2766 = vpack.c.b16 %v2722, %v2718
  %v2767 = vpack.c.b16 %v2723, %v2719
  %v2768 = vpack.c.b16 %v2728, %v2724
  %v2769 = vpack.c.b16 %v2729, %v2725
  %v2770 = vpack.c.b16 %v2730, %v2726
  %v2771 = vpack.c.b16 %v2731, %v2727
  %v2772 = vpack.c.b16 %v2736, %v2732
  %v2773 = vpack.c.b16 %v2737, %v2733
  %v2774 = vpack.c.b16 %v2738, %v2734
  %v2775 = vpack.c.b16 %v2739, %v2735
  %v2776 = vpack.c.b16 %v2744, %v2740
  %v2777 = vpack.c.b16 %v2745, %v2741
  %v2778 = vpack.c.b16 %v2746, %v2742
  %v2779 = vpack.c.b16 %v2747, %v2743
  %2812 = vmatprep.subr.bf16.mxu0 %v2749
  %2813 = vmatpush1.bf16.msra.mxu0 %v2748
  %2814 = vmatprep.subr.bf16.mxu0 %v2753
  %2815 = vmatpush1.bf16.msra.mxu0 %v2752
  %2816 = vmatprep.subr.bf16.mxu0 %v2757
  %2817 = vmatpush1.bf16.msra.mxu0 %v2756
  %2818 = vmatprep.subr.bf16.mxu0 %v2761
  %2819 = vmatpush1.bf16.msra.mxu0 %v2760
  %2820 = vmatprep.subr.bf16.mxu0 %v2765
  %2821 = vmatpush1.bf16.msra.mxu0 %v2764
  %2822 = vmatprep.subr.bf16.mxu0 %v2769
  %2823 = vmatpush1.bf16.msra.mxu0 %v2768
  %2824 = vmatprep.subr.bf16.mxu0 %v2773
  %2825 = vmatpush1.bf16.msra.mxu0 %v2772
  %2826 = vmatprep.subr.bf16.mxu0 %v2777
  %2827 = vmatpush1.bf16.msra.mxu0 %v2776
  %2828 = vmatprep.subr.bf16.mxu0 0
  %2829 = vmatpush1.bf16.msra.mxu0 0
  %2830 = vmatprep.subr.bf16.mxu0 0
  %2831 = vmatpush1.bf16.msra.mxu0 0
  %2832 = vmatprep.subr.bf16.mxu0 0
  %2833 = vmatpush1.bf16.msra.mxu0 0
  %2834 = vmatprep.subr.bf16.mxu0 0
  %2835 = vmatpush1.bf16.msra.mxu0 0
  %2836 = vmatprep.subr.bf16.mxu0 0
  %2837 = vmatpush1.bf16.msra.mxu0 0
  %2838 = vmatprep.subr.bf16.mxu0 0
  %2839 = vmatpush1.bf16.msra.mxu0 0
  %2840 = vmatprep.subr.bf16.mxu0 0
  %2841 = vmatpush1.bf16.msra.mxu0 0
  %2842 = vmatprep.subr.bf16.mxu0 0
  %2843 = vmatpush1.bf16.msra.mxu0 0
  %2844 = vmatprep.mubr.bf16.mxu0 0
  %2845 = vmatmul.mubr.bf16.gmra.mrb[0].mxu0 %v2619
  %v2846 = vpop.f32.mrb[0].mxu0
  %v2847 = vadd.f32 0.0, %v2846
  %v2848 = vpop.f32.mrb[0].mxu0
  %v2849 = vadd.f32 0.0, %v2848
  %v2850 = vpop.f32.mrb[0].mxu0
  %v2851 = vpop.f32.mrb[0].mxu0
  %2852 = vdwg.mxu0
  %2853 = vmatprep.subr.bf16.mxu0 %v2751
  %2854 = vmatpush1.bf16.msra.mxu0 %v2750
  %2855 = vmatprep.subr.bf16.mxu0 %v2755
  %2856 = vmatpush1.bf16.msra.mxu0 %v2754
  %2857 = vmatprep.subr.bf16.mxu0 %v2759
  %2858 = vmatpush1.bf16.msra.mxu0 %v2758
  %2859 = vmatprep.subr.bf16.mxu0 %v2763
  %2860 = vmatpush1.bf16.msra.mxu0 %v2762
  %2861 = vmatprep.subr.bf16.mxu0 %v2767
  %2862 = vmatpush1.bf16.msra.mxu0 %v2766
  %2863 = vmatprep.subr.bf16.mxu0 %v2771
  %2864 = vmatpush1.bf16.msra.mxu0 %v2770
  %2865 = vmatprep.subr.bf16.mxu0 %v2775
  %2866 = vmatpush1.bf16.msra.mxu0 %v2774
  %2867 = vmatprep.subr.bf16.mxu0 %v2779
  %2868 = vmatpush1.bf16.msra.mxu0 %v2778
  %2869 = vmatprep.subr.bf16.mxu0 0
  %2870 = vmatpush1.bf16.msra.mxu0 0
  %2871 = vmatprep.subr.bf16.mxu0 0
  %2872 = vmatpush1.bf16.msra.mxu0 0
  %2873 = vmatprep.subr.bf16.mxu0 0
  %2874 = vmatpush1.bf16.msra.mxu0 0
  %2875 = vmatprep.subr.bf16.mxu0 0
  %2876 = vmatpush1.bf16.msra.mxu0 0
  %2877 = vmatprep.subr.bf16.mxu0 0
  %2878 = vmatpush1.bf16.msra.mxu0 0
  %2879 = vmatprep.subr.bf16.mxu0 0
  %2880 = vmatpush1.bf16.msra.mxu0 0
  %2881 = vmatprep.subr.bf16.mxu0 0
  %2882 = vmatpush1.bf16.msra.mxu0 0
  %2883 = vmatprep.subr.bf16.mxu0 0
  %2884 = vmatpush1.bf16.msra.mxu0 0
  %2885 = vmatprep.mubr.bf16.mxu0 0
  %2886 = vmatmul.mubr.bf16.gmra.mrb[0].mxu0 %v2619
  %v2887 = vpop.f32.mrb[0].mxu0
  %v2888 = vadd.f32 0.0, %v2887
  %v2889 = vpop.f32.mrb[0].mxu0
  %v2890 = vadd.f32 0.0, %v2889
  %v2891 = vpop.f32.mrb[0].mxu0
  %v2892 = vpop.f32.mrb[0].mxu0
  %2893 = vdwg.mxu0
  %v2894 = vadd.f32 %v2615, %v2847
  %v2895 = vadd.f32 %v2616, %v2849
  %v2896 = vadd.f32 %v2617, %v2888
  %v2897 = vadd.f32 %v2618, %v2890
  %v2898 = vxor.u32 %v2894, 2147483648
  %v2899 = vxor.u32 %v2895, 2147483648
  %v2900 = vmul.f32 %v2898, 1.442695
  %v2901 = vpow.pop %v2900
  %v2902 = vmul.f32 %v2899, 1.442695
  %v2903 = vpow.pop %v2902
  %v2904 = vadd.f32 %v2901, 1.0
  %v2905 = vadd.f32 %v2903, 1.0
  %v2906 = vrcp.pop %v2904
  %v2907 = vmul.f32 1.0, %v2906
  %v2908 = vrcp.pop %v2905
  %v2909 = vmul.f32 1.0, %v2908
  %v2910 = vtanh.pop %v2896
  %v2911 = vxor.u32 %v2897, 2147483648
  %v2912 = vmul.f32 %v2911, 1.442695
  %v2913 = vpow.pop %v2912
  %v2914 = vadd.f32 %v2913, 1.0
  %v2915 = vrcp.pop %v2914
  %v2916 = vmul.f32 1.0, %v2915
  %v2917 = vmul.f32 %v2909, %v2611
  %v2918 = vmul.f32 %v2907, %v2910
  %v2919 = vadd.f32 %v2917, %v2918
  %v2920 = vtanh.pop %v2919
  %v2921 = vmul.f32 %v2916, %v2920
  %2922 = vst [vmem:[#allocation3 + $0x38] sm:$0xff] %v2921
  %v2923 = vld [vmem:[#allocation3] sm:$0xff]
  %v2924 = vld [vmem:[#allocation3 + $0x8] sm:$0xff]
  %v2925 = vld [vmem:[#allocation3 + $0x10] sm:$0xff]
  %v2926 = vld [vmem:[#allocation3 + $0x18] sm:$0xff]
  %v2927 = vld [vmem:[#allocation3 + $0x20] sm:$0xff]
  %v2928 = vld [vmem:[#allocation3 + $0x28] sm:$0xff]
  %v2929 = vld [vmem:[#allocation3 + $0x30] sm:$0xff]
  %v2930 = vld [vmem:[#allocation3 + $0x38] sm:$0xff]
  %v2931 = vpack.c.bf16 %v2924, %v2923
  %v2932 = vpack.c.bf16 %v2926, %v2925
  %v2933 = vpack.c.bf16 %v2928, %v2927
  %v2934 = vpack.c.bf16 %v2930, %v2929
  %v2935 = vld [vmem:[%s6] sm:$0xf]
  %v2936 = vld [vmem:[%s6 + $0x4] sm:$0xf]
  %v2937 = vld [vmem:[%s6 + $0x8] sm:$0xf]
  %v2938 = vld [vmem:[%s6 + $0xc] sm:$0xf]
  %v2939 = vld [vmem:[%s6 + $0x10] sm:$0xf]
  %v2940 = vld [vmem:[%s6 + $0x14] sm:$0xf]
  %v2941 = vld [vmem:[%s6 + $0x18] sm:$0xf]
  %v2942 = vld [vmem:[%s6 + $0x1c] sm:$0xf]
  %v2943 = vld [vmem:[%s6 + $0x20] sm:$0xf]
  %v2944 = vld [vmem:[%s6 + $0x24] sm:$0xf]
  %v2945 = vld [vmem:[%s6 + $0x28] sm:$0xf]
  %v2946 = vld [vmem:[%s6 + $0x2c] sm:$0xf]
  %v2947 = vld [vmem:[%s6 + $0x30] sm:$0xf]
  %v2948 = vld [vmem:[%s6 + $0x34] sm:$0xf]
  %v2949 = vld [vmem:[%s6 + $0x38] sm:$0xf]
  %v2950 = vld [vmem:[%s6 + $0x3c] sm:$0xf]
  %v2951 = vld [vmem:[%s7] sm:$0x1]
  %v2953 = vlaneseq
  %v2954 = vshrl.u32 %v2953, 7
  %v2955 = vsub.s32 0, %v2954
  %v2956 = vrot.slane %v2951, %v2955
  %v2974 = vunpack.c.l.b16 %v2935
  %v2975 = vunpack.c.l.b16 %v2936
  %v2976 = vunpack.c.l.b16 %v2937
  %v2977 = vunpack.c.l.b16 %v2938
  %v2978 = vunpack.c.l.b16 %v2939
  %v2979 = vunpack.c.l.b16 %v2940
  %v2980 = vunpack.c.l.b16 %v2941
  %v2981 = vunpack.c.l.b16 %v2942
  %v2982 = vunpack.c.l.b16 %v2943
  %v2983 = vunpack.c.l.b16 %v2944
  %v2984 = vunpack.c.l.b16 %v2945
  %v2985 = vunpack.c.l.b16 %v2946
  %v2986 = vunpack.c.l.b16 %v2947
  %v2987 = vunpack.c.l.b16 %v2948
  %v2988 = vunpack.c.l.b16 %v2949
  %v2989 = vunpack.c.l.b16 %v2950
  %v2990 = vpack.c.b16 %v2975, %v2974
  %v2991 = vpack.c.b16 %v2977, %v2976
  %v2992 = vpack.c.b16 %v2979, %v2978
  %v2993 = vpack.c.b16 %v2981, %v2980
  %v2994 = vpack.c.b16 %v2983, %v2982
  %v2995 = vpack.c.b16 %v2985, %v2984
  %v2996 = vpack.c.b16 %v2987, %v2986
  %v2997 = vpack.c.b16 %v2989, %v2988
  %3006 = vmatprep.subr.bf16.mxu0 0
  %3007 = vmatpush1.bf16.msra.mxu0 %v2990
  %3008 = vmatprep.subr.bf16.mxu0 0
  %3009 = vmatpush1.bf16.msra.mxu0 %v2991
  %3010 = vmatprep.subr.bf16.mxu0 0
  %3011 = vmatpush1.bf16.msra.mxu0 %v2992
  %3012 = vmatprep.subr.bf16.mxu0 0
  %3013 = vmatpush1.bf16.msra.mxu0 %v2993
  %3014 = vmatprep.subr.bf16.mxu0 0
  %3015 = vmatpush1.bf16.msra.mxu0 %v2994
  %3016 = vmatprep.subr.bf16.mxu0 0
  %3017 = vmatpush1.bf16.msra.mxu0 %v2995
  %3018 = vmatprep.subr.bf16.mxu0 0
  %3019 = vmatpush1.bf16.msra.mxu0 %v2996
  %3020 = vmatprep.subr.bf16.mxu0 0
  %3021 = vmatpush1.bf16.msra.mxu0 %v2997
  %3022 = vmatprep.subr.bf16.mxu0 0
  %3023 = vmatpush1.bf16.msra.mxu0 0
  %3024 = vmatprep.subr.bf16.mxu0 0
  %3025 = vmatpush1.bf16.msra.mxu0 0
  %3026 = vmatprep.subr.bf16.mxu0 0
  %3027 = vmatpush1.bf16.msra.mxu0 0
  %3028 = vmatprep.subr.bf16.mxu0 0
  %3029 = vmatpush1.bf16.msra.mxu0 0
  %3030 = vmatprep.subr.bf16.mxu0 0
  %3031 = vmatpush1.bf16.msra.mxu0 0
  %3032 = vmatprep.subr.bf16.mxu0 0
  %3033 = vmatpush1.bf16.msra.mxu0 0
  %3034 = vmatprep.subr.bf16.mxu0 0
  %3035 = vmatpush1.bf16.msra.mxu0 0
  %3036 = vmatprep.subr.bf16.mxu0 0
  %3037 = vmatpush1.bf16.msra.mxu0 0
  %3038 = vmatprep.mubr.bf16.mxu0 0
  %3039 = vmatmul.mubr.bf16.gmra.mrb[0].mxu0 %v2931
  %v3040 = vpop.f32.mrb[0].mxu0
  %v3041 = vadd.f32 %v2956, %v3040
  %v3042 = vpop.f32.mrb[0].mxu0
  %v3043 = vpop.f32.mrb[0].mxu0
  %v3044 = vadd.f32 %v2956, %v3043
  %v3045 = vpop.f32.mrb[0].mxu0
  %3046 = vmatprep.mubr.bf16.mxu0 0
  %3047 = vmatmul.mubr.bf16.gmra.mrb[0].mxu0 %v2932
  %v3048 = vpop.f32.mrb[0].mxu0
  %v3049 = vadd.f32 %v2956, %v3048
  %v3050 = vpop.f32.mrb[0].mxu0
  %v3051 = vpop.f32.mrb[0].mxu0
  %v3052 = vadd.f32 %v2956, %v3051
  %v3053 = vpop.f32.mrb[0].mxu0
  %3054 = vmatprep.mubr.bf16.mxu0 0
  %3055 = vmatmul.mubr.bf16.gmra.mrb[0].mxu0 %v2933
  %v3056 = vpop.f32.mrb[0].mxu0
  %v3057 = vadd.f32 %v2956, %v3056
  %v3058 = vpop.f32.mrb[0].mxu0
  %v3059 = vpop.f32.mrb[0].mxu0
  %v3060 = vadd.f32 %v2956, %v3059
  %v3061 = vpop.f32.mrb[0].mxu0
  %3062 = vmatprep.mubr.bf16.mxu0 0
  %3063 = vmatmul.mubr.bf16.gmra.mrb[0].mxu0 %v2934
  %v3064 = vpop.f32.mrb[0].mxu0
  %v3065 = vadd.f32 %v2956, %v3064
  %v3066 = vpop.f32.mrb[0].mxu0
  %v3067 = vpop.f32.mrb[0].mxu0
  %v3068 = vadd.f32 %v2956, %v3067
  %v3069 = vpop.f32.mrb[0].mxu0
  %3070 = vdwg.mxu0
  %3071 = vst [vmem:[%s8] sm:$0xff] %v3041
  %3072 = vst [vmem:[%s8 + $0x8] sm:$0xff] %v3044
  %3073 = vst [vmem:[%s8 + $0x10] sm:$0xff] %v3049
  %3074 = vst [vmem:[%s8 + $0x18] sm:$0xff] %v3052
  %3075 = vst [vmem:[%s8 + $0x20] sm:$0xff] %v3057
  %3076 = vst [vmem:[%s8 + $0x28] sm:$0xff] %v3060
  %3077 = vst [vmem:[%s8 + $0x30] sm:$0xff] %v3065
  %3078 = vst [vmem:[%s8 + $0x38] sm:$0xff] %v3068
  %3079 = vst [vmem:[%s9] sm:$0xff] %v2921
  %3080 = vst [vmem:[%s10] sm:$0xff] %v2919
  // Predicated region
  $region34: #{lstm_forward.1} parent=0 // pred_check
    _
  $region35: #{lstm_forward.1} parent=0 // pred_check_branch
    %3082 = sbr.rel (0) target = $region37
  $region36: #{lstm_forward.1} parent=0 // pred_region
    _
  $region37: #{lstm_forward.1} parent=0 // pred_fallthru
    _
  // Predicated region
  $region38: #{lstm_forward.1} parent=0 // pred_check
    _
  $region39: #{lstm_forward.1} parent=0 // pred_check_branch
    %3084 = sbr.rel (0) target = $region41
  $region40: #{lstm_forward.1} parent=0 // pred_region
    _
  $region41: #{lstm_forward.1} parent=0 // pred_fallthru
    _
  // Predicated region
  $region42: #{lstm_forward.1} parent=0 // pred_check
    _
  $region43: #{lstm_forward.1} parent=0 // pred_check_branch
    %3086 = sbr.rel (0) target = $region45
  $region44: #{lstm_forward.1} parent=0 // pred_region
    _
  $region45: #{lstm_forward.1} parent=0 // pred_fallthru
    _
  // Predicated region
  $region46: #{lstm_forward.1} parent=0 // pred_check
    _
  $region47: #{lstm_forward.1} parent=0 // pred_check_branch
    %3088 = sbr.rel (0) target = $region49
  $region48: #{lstm_forward.1} parent=0 // pred_region
    _
  $region49: #{lstm_forward.1} parent=0 // pred_fallthru
    _
  // Predicated region
  $region50: #{lstm_forward.1} parent=0 // pred_check
    _
  $region51: #{lstm_forward.1} parent=0 // pred_check_branch
    %3090 = sbr.rel (0) target = $region53
  $region52: #{lstm_forward.1} parent=0 // pred_region
    _
  $region53: #{lstm_forward.1} parent=0 // pred_fallthru
    _
  // Predicated region
  $region54: #{lstm_forward.1} parent=0 // pred_check
    _
  $region55: #{lstm_forward.1} parent=0 // pred_check_branch
    %3092 = sbr.rel (0) target = $region57
  $region56: #{lstm_forward.1} parent=0 // pred_region
    _
  $region57: #{lstm_forward.1} parent=0 // pred_fallthru
    _

</llo_original>
